<compile_context>
chip_gen: v7x
topology: tpu7x:2x2x1
jax: 0.10.0
libtpu: 0.0.40
codegen_flags: <defaults>
</compile_context>

<pallas_src>
import functools

import jax
import jax.numpy as jnp
from jax.experimental import pallas as pl
from jax.experimental.pallas import tpu as pltpu

THRESHOLD = 1.0
BN_EPS = 1e-5
LANE = 128


def _round_up(x, m):
    return (x + m - 1) // m * m


def _smogo_kernel(x_ref, w1_ref, g1_ref, be1_ref, w2_ref, g2_ref, be2_ref,
                  avg_ref, spk_ref, mem_ref,
                  mem1_sc, mem2_sc, h_buf, c2_buf,
                  *, beta1, beta2, unroll):
    """One grid step = t_blk timesteps (all refs 2-D, rows = t_blk*B).

    Phase A : batched Linear1 for all t_blk steps (single MXU pass)
    Phase A': hoisted BN1 — per-timestep batch stats via block-avg matmul
    Phase B : serial Leaky-1 scan (elementwise only); spk1 overwrites h_buf
    Phase C : batched Linear2 for all t_blk steps
    Phase C': hoisted BN2 -> staged in c2_buf (not the pipelined output block)
    Phase D : serial Leaky-2 scan; spk2/mem2 stored lane-dense, once per row

    mem1_sc / mem2_sc carry membrane state across grid steps (time blocks).
    """
    b = mem1_sc.shape[0]
    t_blk = h_buf.shape[0] // b

    @pl.when(pl.program_id(0) == 0)
    def _():
        mem1_sc[...] = jnp.zeros_like(mem1_sc)
        mem2_sc[...] = jnp.zeros_like(mem2_sc)

    avg = avg_ref[...]                      # (TB, TB) block-diagonal 1/B matrix

    # ---- Phase A: batched Linear 1 (state-independent -> off the recurrence)
    w1 = w1_ref[...]
    z1 = jnp.dot(x_ref[...].astype(w1.dtype), w1,
                 preferred_element_type=jnp.float32)            # (TB, Hp)

    # ---- Phase A': hoisted BN1 (per-timestep batch stats, one-pass variance)
    mu1 = jnp.dot(avg, z1, preferred_element_type=jnp.float32)
    ms1 = jnp.dot(avg, z1 * z1, preferred_element_type=jnp.float32)
    var1 = jnp.maximum(ms1 - mu1 * mu1, 0.0)                    # biased var
    h_buf[...] = ((z1 - mu1) * jax.lax.rsqrt(var1 + BN_EPS)
                  * g1_ref[...] + be1_ref[...])                 # cur1, all steps

    # ---- Phase B: serial Leaky-1 recurrence (VPU-only body) ----------------
    def scan1(t, mem):
        rows = pl.ds(pl.multiple_of(t * b, b), b)
        cur = h_buf[rows, :]
        reset = (mem > THRESHOLD).astype(jnp.float32)            # previous mem
        mem = beta1 * mem + cur - reset * THRESHOLD
        h_buf[rows, :] = (mem > THRESHOLD).astype(jnp.float32)   # spk1 over cur1
        return mem

    mem1_sc[...] = jax.lax.fori_loop(0, t_blk, scan1, mem1_sc[...],
                                     unroll=unroll)

    # ---- Phase C: batched Linear 2 on the spikes ----------------------------
    w2 = w2_ref[...]                          # bf16 by default (spk1 is {0,1})
    z2 = jnp.dot(h_buf[...].astype(w2.dtype), w2,
                 preferred_element_type=jnp.float32)             # (TB, Op)

    # ---- Phase C': hoisted BN2 ----------------------------------------------
    mu2 = jnp.dot(avg, z2, preferred_element_type=jnp.float32)
    ms2 = jnp.dot(avg, z2 * z2, preferred_element_type=jnp.float32)
    var2 = jnp.maximum(ms2 - mu2 * mu2, 0.0)
    c2_buf[...] = ((z2 - mu2) * jax.lax.rsqrt(var2 + BN_EPS)
                   * g2_ref[...] + be2_ref[...])                 # cur2, all steps

    # ---- Phase D: serial Leaky-2 recurrence; lane-dense output stores -------
    def scan2(t, mem):
        rows = pl.ds(pl.multiple_of(t * b, b), b)
        cur = c2_buf[rows, :]
        reset = (mem > THRESHOLD).astype(jnp.float32)
        mem = beta2 * mem + cur - reset * THRESHOLD
        spk_ref[rows, :] = (mem > THRESHOLD).astype(jnp.float32)
        mem_ref[rows, :] = mem
        return mem

    mem2_sc[...] = jax.lax.fori_loop(0, t_blk, scan2, mem2_sc[...],
                                     unroll=unroll)


def smogo_gcn_forward(x, params, beta1=0.9, beta2=0.9, t_blk=32,
                      bf16_fc1=False, bf16_fc2=True):
    """x: (T, B, D_in) float32.  Returns (spk_rec, mem_rec), each (T, B, O).

    NOTE: batch-statistics (training-mode) BatchNorm is assumed; in eval mode
    the dropped Linear biases would NOT cancel.
    TODO(synk): B not a multiple of 8 would need masked BN stats + row padding;
    not handled here (toy/benchmark batches are multiples of 8).
    """
    T, B, Din = x.shape
    H = params["w1"].shape[1]
    O = params["w2"].shape[1]

    # Pad feature dims to the 128-lane boundary -> lane-dense staging/stores.
    Hp = _round_up(H, LANE)
    Op = _round_up(O, LANE)

    # Size t_blk so t_blk*B reaches the MXU M dimension (128/256 rows), then
    # shrink until the static VMEM estimate fits the v7x budget comfortably.
    t_blk = max(1, min(t_blk, T))
    itemsize = 4

    def vmem_need(tb):
        rows = tb * B
        return itemsize * (
            2 * rows * Din                       # x block (double-buffered)
            + 2 * (Din * Hp + Hp * Op)           # weights (worst case 2-buffered)
            + 2 * rows * rows                    # averaging matrix
            + 2 * 4 * 8 * max(Hp, Op)            # BN params, sublane-padded
            + 2 * 2 * rows * Op                  # spk/mem output blocks
            + B * Hp + B * Op + rows * Hp + rows * Op)  # scratch

    VMEM_CAP = 24 * 2**20                        # headroom under v7x 32 MiB scoped
    while t_blk > 1 and vmem_need(t_blk) > VMEM_CAP:
        t_blk //= 2

    Tp = _round_up(T, t_blk)
    TB = t_blk * B
    unroll = True if t_blk <= 16 else 8

    mm1_dtype = jnp.bfloat16 if bf16_fc1 else jnp.float32
    mm2_dtype = jnp.bfloat16 if bf16_fc2 else jnp.float32

    # Flatten (T, B) -> rows so every kernel ref is 2-D (no in-kernel reshapes).
    xp = jnp.pad(x, ((0, Tp - T), (0, 0), (0, 0))).reshape(Tp * B, Din)
    w1 = jnp.pad(params["w1"], ((0, 0), (0, Hp - H))).astype(mm1_dtype)
    g1 = jnp.pad(params["g1"], ((0, 0), (0, Hp - H)))
    be1 = jnp.pad(params["beta_bn1"], ((0, 0), (0, Hp - H)))
    w2 = jnp.pad(params["w2"], ((0, Hp - H), (0, Op - O))).astype(mm2_dtype)
    g2 = jnp.pad(params["g2"], ((0, 0), (0, Op - O)))
    be2 = jnp.pad(params["beta_bn2"], ((0, 0), (0, Op - O)))
    # NOTE: Linear biases b1/b2 are intentionally NOT passed to the kernel:
    # under training-mode BatchNorm (batch statistics) they cancel exactly.

    # Block-diagonal averaging matrix: row i of (avg @ z) is the mean of z over
    # the B rows of timestep i // B -> per-timestep BN stats computed AND
    # broadcast back to all rows in one MXU pass (keeps XLU/EUP off the scan).
    gidx = jnp.arange(TB, dtype=jnp.int32) // B
    avg = (gidx[:, None] == gidx[None, :]).astype(jnp.float32) / B

    kernel = functools.partial(_smogo_kernel, beta1=float(beta1),
                               beta2=float(beta2), unroll=unroll)

    grid = (Tp // t_blk,)
    grid_spec = pltpu.PrefetchScalarGridSpec(
        num_scalar_prefetch=0,
        grid=grid,
        in_specs=[
            pl.BlockSpec((TB, Din), lambda tb: (tb, 0)),   # x rows for this block
            pl.BlockSpec((Din, Hp), lambda tb: (0, 0)),    # W1
            pl.BlockSpec((1, Hp), lambda tb: (0, 0)),      # bn1 gamma
            pl.BlockSpec((1, Hp), lambda tb: (0, 0)),      # bn1 beta
            pl.BlockSpec((Hp, Op), lambda tb: (0, 0)),     # W2
            pl.BlockSpec((1, Op), lambda tb: (0, 0)),      # bn2 gamma
            pl.BlockSpec((1, Op), lambda tb: (0, 0)),      # bn2 beta
            pl.BlockSpec((TB, TB), lambda tb: (0, 0)),     # block-avg matrix
        ],
        out_specs=[
            pl.BlockSpec((TB, Op), lambda tb: (tb, 0)),    # spk_rec rows
            pl.BlockSpec((TB, Op), lambda tb: (tb, 0)),    # mem_rec rows
        ],
        scratch_shapes=[
            pltpu.VMEM((B, Hp), jnp.float32),    # mem1 carried state
            pltpu.VMEM((B, Op), jnp.float32),    # mem2 carried state
            pltpu.VMEM((TB, Hp), jnp.float32),   # cur1 / spk1 block buffer
            pltpu.VMEM((TB, Op), jnp.float32),   # cur2 staging (keeps outputs
                                                 #  single-write)
        ],
    )

    vmem_limit = int(min(max(vmem_need(t_blk) + 8 * 2**20, 16 * 2**20),
                         32 * 2**20))

    nblk = Tp // t_blk
    cost = pl.CostEstimate(
        flops=nblk * (2 * TB * Din * Hp + 2 * TB * Hp * Op
                      + 4 * TB * TB * Hp + 4 * TB * TB * Op),  # fc + BN-stat mms
        transcendentals=nblk * (TB * Hp + TB * Op),            # rsqrt in BN1/BN2
        bytes_accessed=itemsize * (Tp * B * Din + Din * Hp + Hp * Op
                                   + TB * TB + 4 * (Hp + Op)
                                   + 2 * Tp * B * Op),
    )

    spk_flat, mem_flat = pl.pallas_call(
        kernel,
        out_shape=(
            jax.ShapeDtypeStruct((Tp * B, Op), jnp.float32),
            jax.ShapeDtypeStruct((Tp * B, Op), jnp.float32),
        ),
        grid_spec=grid_spec,
        compiler_params=pltpu.CompilerParams(
            # Time blocks are a true recurrence (mem1/mem2 carried in scratch),
            # so the single grid axis stays sequential.
            # TODO(synk): for large H/O on v7x, shard the feature (lane) dim
            # across the 2nd TensorCore (BN stats are per-feature, so only the
            # fc2 contraction needs an exchange); not worth it at Hp=Op=128.
            dimension_semantics=("arbitrary",),
            vmem_limit_bytes=vmem_limit,
        ),
        cost_estimate=cost,
    )(xp, w1, g1, be1, w2, g2, be2, avg)

    spk_rec = spk_flat.reshape(Tp, B, Op)[:T, :, :O]
    mem_rec = mem_flat.reshape(Tp, B, Op)[:T, :, :O]
    return spk_rec, mem_rec


def init_params(key, input_size, hidden_size, output_size):
    """Deterministic init mirroring the module: xavier_uniform_ on fc weights,
    default uniform bias, BatchNorm gamma=1 / beta=0.  Linear biases are kept
    for parity with the torch module but never read by the kernel (they cancel
    exactly under training-mode BatchNorm)."""
    k1, k2, k3, k4 = jax.random.split(key, 4)

    def xavier(k, fan_in, fan_out):
        bound = jnp.sqrt(6.0 / (fan_in + fan_out))
        # stored transposed relative to torch Linear: (fan_in, fan_out)
        return jax.random.uniform(k, (fan_in, fan_out), jnp.float32,
                                  minval=-bound, maxval=bound)

    def linear_bias(k, fan_in, fan_out):
        bound = 1.0 / jnp.sqrt(fan_in)
        return jax.random.uniform(k, (1, fan_out), jnp.float32,
                                  minval=-bound, maxval=bound)

    return {
        "w1": xavier(k1, input_size, hidden_size),
        "b1": linear_bias(k2, input_size, hidden_size),      # unused (cancels)
        "g1": jnp.ones((1, hidden_size), jnp.float32),
        "beta_bn1": jnp.zeros((1, hidden_size), jnp.float32),
        "w2": xavier(k3, hidden_size, output_size),
        "b2": linear_bias(k4, hidden_size, output_size),     # unused (cancels)
        "g2": jnp.ones((1, output_size), jnp.float32),
        "beta_bn2": jnp.zeros((1, output_size), jnp.float32),
    }


if __name__ == "__main__":
    T, B, INPUT, HIDDEN, OUTPUT = 16, 8, 16, 32, 8

    key = jax.random.PRNGKey(0)
    kx, kp = jax.random.split(key)
    x = jax.random.normal(kx, (T, B, INPUT), jnp.float32)
    params = init_params(kp, INPUT, HIDDEN, OUTPUT)

    spk_rec, mem_rec = smogo_gcn_forward(x, params, beta1=0.9, beta2=0.9)
    jax.block_until_ready((spk_rec, mem_rec))

    assert spk_rec.shape == (T, B, OUTPUT)
    assert mem_rec.shape == (T, B, OUTPUT)
    assert bool(jnp.all(jnp.isfinite(mem_rec)))
    assert bool(jnp.all((spk_rec == 0.0) | (spk_rec == 1.0)))
    print("KERNEL_OK")
</pallas_src>

<mosaic_0001>
module attributes {stable_mosaic.version = 11 : i64} {
  func.func @_smogo_kernel(%arg0: i32, %arg1: memref<128x16xf32, #tpu.memory_space<vmem>>, %arg2: memref<16x128xf32, #tpu.memory_space<vmem>>, %arg3: memref<1x128xf32, #tpu.memory_space<vmem>>, %arg4: memref<1x128xf32, #tpu.memory_space<vmem>>, %arg5: memref<128x128xbf16, #tpu.memory_space<vmem>>, %arg6: memref<1x128xf32, #tpu.memory_space<vmem>>, %arg7: memref<1x128xf32, #tpu.memory_space<vmem>>, %arg8: memref<128x128xf32, #tpu.memory_space<vmem>>, %arg9: memref<128x128xf32, #tpu.memory_space<vmem>>, %arg10: memref<128x128xf32, #tpu.memory_space<vmem>>, %arg11: memref<8x128xf32, #tpu.memory_space<vmem>>, %arg12: memref<8x128xf32, #tpu.memory_space<vmem>>, %arg13: memref<128x128xf32, #tpu.memory_space<vmem>>, %arg14: memref<128x128xf32, #tpu.memory_space<vmem>>) attributes {dimension_semantics = [#tpu.dimension_semantics<arbitrary>], iteration_bounds = array<i64: 1>, scalar_prefetch = 0 : i64, scratch_operands = 4 : i64, tpu.core_type = #tpu.core_type<tc>, window_params = [{transform_indices = @transform_0, window_bounds = array<i64: 128, 16>}, {pipeline_mode = #tpu.pipeline_mode<synchronous>, transform_indices = @transform_1, window_bounds = array<i64: 16, 128>}, {pipeline_mode = #tpu.pipeline_mode<synchronous>, transform_indices = @transform_2, window_bounds = array<i64: 1, 128>}, {pipeline_mode = #tpu.pipeline_mode<synchronous>, transform_indices = @transform_3, window_bounds = array<i64: 1, 128>}, {pipeline_mode = #tpu.pipeline_mode<synchronous>, transform_indices = @transform_4, window_bounds = array<i64: 128, 128>}, {pipeline_mode = #tpu.pipeline_mode<synchronous>, transform_indices = @transform_5, window_bounds = array<i64: 1, 128>}, {pipeline_mode = #tpu.pipeline_mode<synchronous>, transform_indices = @transform_6, window_bounds = array<i64: 1, 128>}, {pipeline_mode = #tpu.pipeline_mode<synchronous>, transform_indices = @transform_7, window_bounds = array<i64: 128, 128>}, {transform_indices = @transform_8, window_bounds = array<i64: 128, 128>}, {transform_indices = @transform_9, window_bounds = array<i64: 128, 128>}]} {
    %c0_i32 = arith.constant 0 : i32
    %0 = arith.cmpi eq, %arg0, %c0_i32 : i32
    %1 = arith.extui %0 : i1 to i32
    %c0_i32_0 = arith.constant 0 : i32
    %2 = arith.cmpi ne, %1, %c0_i32_0 : i32
    scf.if %2 {
      %cst_297 = arith.constant 0.000000e+00 : f32
      %725 = vector.broadcast %cst_297 : f32 to vector<8x128xf32>
      %c0_298 = arith.constant 0 : index
      %c0_299 = arith.constant 0 : index
      %726 = vector.load %arg11[%c0_298, %c0_299] : memref<8x128xf32, #tpu.memory_space<vmem>>, vector<8x128xf32>
      tpu.vector_store %arg11[%c0_298, %c0_299], %725 {strides = array<i32>} : memref<8x128xf32, #tpu.memory_space<vmem>>, vector<8x128xf32>,
      %cst_300 = arith.constant 0.000000e+00 : f32
      %727 = vector.broadcast %cst_300 : f32 to vector<8x128xf32>
      %c0_301 = arith.constant 0 : index
      %c0_302 = arith.constant 0 : index
      %728 = vector.load %arg12[%c0_301, %c0_302] : memref<8x128xf32, #tpu.memory_space<vmem>>, vector<8x128xf32>
      tpu.vector_store %arg12[%c0_301, %c0_302], %727 {strides = array<i32>} : memref<8x128xf32, #tpu.memory_space<vmem>>, vector<8x128xf32>,
    } else {
    }
    %c0 = arith.constant 0 : index
    %c0_1 = arith.constant 0 : index
    %3 = vector.load %arg8[%c0, %c0_1] : memref<128x128xf32, #tpu.memory_space<vmem>>, vector<128x128xf32>
    %c0_2 = arith.constant 0 : index
    %c0_3 = arith.constant 0 : index
    %4 = vector.load %arg2[%c0_2, %c0_3] : memref<16x128xf32, #tpu.memory_space<vmem>>, vector<16x128xf32>
    %c0_4 = arith.constant 0 : index
    %c0_5 = arith.constant 0 : index
    %5 = vector.load %arg1[%c0_4, %c0_5] : memref<128x16xf32, #tpu.memory_space<vmem>>, vector<128x16xf32>
    %cst = arith.constant dense<0.000000e+00> : vector<128x128xf32>
    %6 = tpu.matmul %5, %4, %cst {dimension_numbers = #tpu.dot_dimension_numbers<[1], [0], [0], [1], [0, 0, 1, 1], [], []>} : vector<128x16xf32>, vector<16x128xf32>, vector<128x128xf32> -> vector<128x128xf32>
    %cst_6 = arith.constant dense<0.000000e+00> : vector<128x128xf32>
    %7 = tpu.matmul %3, %6, %cst_6 {dimension_numbers = #tpu.dot_dimension_numbers<[1], [0], [0], [1], [0, 0, 1, 1], [], []>} : vector<128x128xf32>, vector<128x128xf32>, vector<128x128xf32> -> vector<128x128xf32>
    %8 = arith.mulf %6, %6 : vector<128x128xf32>
    %cst_7 = arith.constant dense<0.000000e+00> : vector<128x128xf32>
    %9 = tpu.matmul %3, %8, %cst_7 {dimension_numbers = #tpu.dot_dimension_numbers<[1], [0], [0], [1], [0, 0, 1, 1], [], []>} : vector<128x128xf32>, vector<128x128xf32>, vector<128x128xf32> -> vector<128x128xf32>
    %10 = arith.mulf %7, %7 : vector<128x128xf32>
    %11 = arith.subf %9, %10 : vector<128x128xf32>
    %cst_8 = arith.constant 0.000000e+00 : f32
    %12 = vector.broadcast %cst_8 : f32 to vector<128x128xf32>
    %13 = arith.maximumf %11, %12 : vector<128x128xf32>
    %14 = arith.subf %6, %7 : vector<128x128xf32>
    %cst_9 = arith.constant 9.99999974E-6 : f32
    %15 = vector.broadcast %cst_9 : f32 to vector<128x128xf32>
    %16 = arith.addf %13, %15 : vector<128x128xf32>
    %17 = math.rsqrt %16 : vector<128x128xf32>
    %18 = arith.mulf %14, %17 : vector<128x128xf32>
    %c0_10 = arith.constant 0 : index
    %c0_11 = arith.constant 0 : index
    %19 = vector.load %arg3[%c0_10, %c0_11] : memref<1x128xf32, #tpu.memory_space<vmem>>, vector<1x128xf32>
    %20 = vector.broadcast %19 : vector<1x128xf32> to vector<128x128xf32>
    %21 = arith.mulf %18, %20 : vector<128x128xf32>
    %c0_12 = arith.constant 0 : index
    %c0_13 = arith.constant 0 : index
    %22 = vector.load %arg4[%c0_12, %c0_13] : memref<1x128xf32, #tpu.memory_space<vmem>>, vector<1x128xf32>
    %23 = vector.broadcast %22 : vector<1x128xf32> to vector<128x128xf32>
    %24 = arith.addf %21, %23 : vector<128x128xf32>
    %c0_14 = arith.constant 0 : index
    %c0_15 = arith.constant 0 : index
    %25 = vector.load %arg13[%c0_14, %c0_15] : memref<128x128xf32, #tpu.memory_space<vmem>>, vector<128x128xf32>
    tpu.vector_store %arg13[%c0_14, %c0_15], %24 {strides = array<i32>} : memref<128x128xf32, #tpu.memory_space<vmem>>, vector<128x128xf32>,
    %c0_16 = arith.constant 0 : index
    %c0_17 = arith.constant 0 : index
    %26 = vector.load %arg11[%c0_16, %c0_17] : memref<8x128xf32, #tpu.memory_space<vmem>>, vector<8x128xf32>
    %c0_i32_18 = arith.constant 0 : i32
    %c8_i32 = arith.constant 8 : i32
    %27 = arith.muli %c0_i32_18, %c8_i32 : i32
    %28 = tpu.assume_multiple %27, 8 : i32
    %29 = arith.index_cast %28 : i32 to index
    %c0_19 = arith.constant 0 : index
    %30 = vector.load %arg13[%29, %c0_19] : memref<128x128xf32, #tpu.memory_space<vmem>>, vector<8x128xf32>
    %cst_20 = arith.constant 1.000000e+00 : f32
    %31 = vector.broadcast %cst_20 : f32 to vector<8x128xf32>
    %32 = arith.cmpf ogt, %26, %31 : vector<8x128xf32>
    %33 = arith.extui %32 : vector<8x128xi1> to vector<8x128xi32>
    %34 = arith.sitofp %33 : vector<8x128xi32> to vector<8x128xf32>
    %cst_21 = arith.constant 0.899999976 : f32
    %35 = vector.broadcast %cst_21 : f32 to vector<8x128xf32>
    %36 = arith.mulf %35, %26 : vector<8x128xf32>
    %37 = arith.addf %36, %30 : vector<8x128xf32>
    %cst_22 = arith.constant 1.000000e+00 : f32
    %38 = vector.broadcast %cst_22 : f32 to vector<8x128xf32>
    %39 = arith.mulf %34, %38 : vector<8x128xf32>
    %40 = arith.subf %37, %39 : vector<8x128xf32>
    %cst_23 = arith.constant 1.000000e+00 : f32
    %41 = vector.broadcast %cst_23 : f32 to vector<8x128xf32>
    %42 = arith.cmpf ogt, %40, %41 : vector<8x128xf32>
    %43 = arith.extui %42 : vector<8x128xi1> to vector<8x128xi32>
    %44 = arith.sitofp %43 : vector<8x128xi32> to vector<8x128xf32>
    %45 = arith.index_cast %28 : i32 to index
    %c0_24 = arith.constant 0 : index
    %46 = vector.load %arg13[%45, %c0_24] : memref<128x128xf32, #tpu.memory_space<vmem>>, vector<8x128xf32>
    tpu.vector_store %arg13[%45, %c0_24], %44 {strides = array<i32>} : memref<128x128xf32, #tpu.memory_space<vmem>>, vector<8x128xf32>,
    %c1_i32 = arith.constant 1 : i32
    %c8_i32_25 = arith.constant 8 : i32
    %47 = arith.muli %c1_i32, %c8_i32_25 : i32
    %48 = tpu.assume_multiple %47, 8 : i32
    %49 = arith.index_cast %48 : i32 to index
    %c0_26 = arith.constant 0 : index
    %50 = vector.load %arg13[%49, %c0_26] : memref<128x128xf32, #tpu.memory_space<vmem>>, vector<8x128xf32>
    %cst_27 = arith.constant 1.000000e+00 : f32
    %51 = vector.broadcast %cst_27 : f32 to vector<8x128xf32>
    %52 = arith.cmpf ogt, %40, %51 : vector<8x128xf32>
    %53 = arith.extui %52 : vector<8x128xi1> to vector<8x128xi32>
    %54 = arith.sitofp %53 : vector<8x128xi32> to vector<8x128xf32>
    %cst_28 = arith.constant 0.899999976 : f32
    %55 = vector.broadcast %cst_28 : f32 to vector<8x128xf32>
    %56 = arith.mulf %55, %40 : vector<8x128xf32>
    %57 = arith.addf %56, %50 : vector<8x128xf32>
    %cst_29 = arith.constant 1.000000e+00 : f32
    %58 = vector.broadcast %cst_29 : f32 to vector<8x128xf32>
    %59 = arith.mulf %54, %58 : vector<8x128xf32>
    %60 = arith.subf %57, %59 : vector<8x128xf32>
    %cst_30 = arith.constant 1.000000e+00 : f32
    %61 = vector.broadcast %cst_30 : f32 to vector<8x128xf32>
    %62 = arith.cmpf ogt, %60, %61 : vector<8x128xf32>
    %63 = arith.extui %62 : vector<8x128xi1> to vector<8x128xi32>
    %64 = arith.sitofp %63 : vector<8x128xi32> to vector<8x128xf32>
    %65 = arith.index_cast %48 : i32 to index
    %c0_31 = arith.constant 0 : index
    %66 = vector.load %arg13[%65, %c0_31] : memref<128x128xf32, #tpu.memory_space<vmem>>, vector<8x128xf32>
    tpu.vector_store %arg13[%65, %c0_31], %64 {strides = array<i32>} : memref<128x128xf32, #tpu.memory_space<vmem>>, vector<8x128xf32>,
    %c2_i32 = arith.constant 2 : i32
    %c8_i32_32 = arith.constant 8 : i32
    %67 = arith.muli %c2_i32, %c8_i32_32 : i32
    %68 = tpu.assume_multiple %67, 8 : i32
    %69 = arith.index_cast %68 : i32 to index
    %c0_33 = arith.constant 0 : index
    %70 = vector.load %arg13[%69, %c0_33] : memref<128x128xf32, #tpu.memory_space<vmem>>, vector<8x128xf32>
    %cst_34 = arith.constant 1.000000e+00 : f32
    %71 = vector.broadcast %cst_34 : f32 to vector<8x128xf32>
    %72 = arith.cmpf ogt, %60, %71 : vector<8x128xf32>
    %73 = arith.extui %72 : vector<8x128xi1> to vector<8x128xi32>
    %74 = arith.sitofp %73 : vector<8x128xi32> to vector<8x128xf32>
    %cst_35 = arith.constant 0.899999976 : f32
    %75 = vector.broadcast %cst_35 : f32 to vector<8x128xf32>
    %76 = arith.mulf %75, %60 : vector<8x128xf32>
    %77 = arith.addf %76, %70 : vector<8x128xf32>
    %cst_36 = arith.constant 1.000000e+00 : f32
    %78 = vector.broadcast %cst_36 : f32 to vector<8x128xf32>
    %79 = arith.mulf %74, %78 : vector<8x128xf32>
    %80 = arith.subf %77, %79 : vector<8x128xf32>
    %cst_37 = arith.constant 1.000000e+00 : f32
    %81 = vector.broadcast %cst_37 : f32 to vector<8x128xf32>
    %82 = arith.cmpf ogt, %80, %81 : vector<8x128xf32>
    %83 = arith.extui %82 : vector<8x128xi1> to vector<8x128xi32>
    %84 = arith.sitofp %83 : vector<8x128xi32> to vector<8x128xf32>
    %85 = arith.index_cast %68 : i32 to index
    %c0_38 = arith.constant 0 : index
    %86 = vector.load %arg13[%85, %c0_38] : memref<128x128xf32, #tpu.memory_space<vmem>>, vector<8x128xf32>
    tpu.vector_store %arg13[%85, %c0_38], %84 {strides = array<i32>} : memref<128x128xf32, #tpu.memory_space<vmem>>, vector<8x128xf32>,
    %c3_i32 = arith.constant 3 : i32
    %c8_i32_39 = arith.constant 8 : i32
    %87 = arith.muli %c3_i32, %c8_i32_39 : i32
    %88 = tpu.assume_multiple %87, 8 : i32
    %89 = arith.index_cast %88 : i32 to index
    %c0_40 = arith.constant 0 : index
    %90 = vector.load %arg13[%89, %c0_40] : memref<128x128xf32, #tpu.memory_space<vmem>>, vector<8x128xf32>
    %cst_41 = arith.constant 1.000000e+00 : f32
    %91 = vector.broadcast %cst_41 : f32 to vector<8x128xf32>
    %92 = arith.cmpf ogt, %80, %91 : vector<8x128xf32>
    %93 = arith.extui %92 : vector<8x128xi1> to vector<8x128xi32>
    %94 = arith.sitofp %93 : vector<8x128xi32> to vector<8x128xf32>
    %cst_42 = arith.constant 0.899999976 : f32
    %95 = vector.broadcast %cst_42 : f32 to vector<8x128xf32>
    %96 = arith.mulf %95, %80 : vector<8x128xf32>
    %97 = arith.addf %96, %90 : vector<8x128xf32>
    %cst_43 = arith.constant 1.000000e+00 : f32
    %98 = vector.broadcast %cst_43 : f32 to vector<8x128xf32>
    %99 = arith.mulf %94, %98 : vector<8x128xf32>
    %100 = arith.subf %97, %99 : vector<8x128xf32>
    %cst_44 = arith.constant 1.000000e+00 : f32
    %101 = vector.broadcast %cst_44 : f32 to vector<8x128xf32>
    %102 = arith.cmpf ogt, %100, %101 : vector<8x128xf32>
    %103 = arith.extui %102 : vector<8x128xi1> to vector<8x128xi32>
    %104 = arith.sitofp %103 : vector<8x128xi32> to vector<8x128xf32>
    %105 = arith.index_cast %88 : i32 to index
    %c0_45 = arith.constant 0 : index
    %106 = vector.load %arg13[%105, %c0_45] : memref<128x128xf32, #tpu.memory_space<vmem>>, vector<8x128xf32>
    tpu.vector_store %arg13[%105, %c0_45], %104 {strides = array<i32>} : memref<128x128xf32, #tpu.memory_space<vmem>>, vector<8x128xf32>,
    %c4_i32 = arith.constant 4 : i32
    %c8_i32_46 = arith.constant 8 : i32
    %107 = arith.muli %c4_i32, %c8_i32_46 : i32
    %108 = tpu.assume_multiple %107, 8 : i32
    %109 = arith.index_cast %108 : i32 to index
    %c0_47 = arith.constant 0 : index
    %110 = vector.load %arg13[%109, %c0_47] : memref<128x128xf32, #tpu.memory_space<vmem>>, vector<8x128xf32>
    %cst_48 = arith.constant 1.000000e+00 : f32
    %111 = vector.broadcast %cst_48 : f32 to vector<8x128xf32>
    %112 = arith.cmpf ogt, %100, %111 : vector<8x128xf32>
    %113 = arith.extui %112 : vector<8x128xi1> to vector<8x128xi32>
    %114 = arith.sitofp %113 : vector<8x128xi32> to vector<8x128xf32>
    %cst_49 = arith.constant 0.899999976 : f32
    %115 = vector.broadcast %cst_49 : f32 to vector<8x128xf32>
    %116 = arith.mulf %115, %100 : vector<8x128xf32>
    %117 = arith.addf %116, %110 : vector<8x128xf32>
    %cst_50 = arith.constant 1.000000e+00 : f32
    %118 = vector.broadcast %cst_50 : f32 to vector<8x128xf32>
    %119 = arith.mulf %114, %118 : vector<8x128xf32>
    %120 = arith.subf %117, %119 : vector<8x128xf32>
    %cst_51 = arith.constant 1.000000e+00 : f32
    %121 = vector.broadcast %cst_51 : f32 to vector<8x128xf32>
    %122 = arith.cmpf ogt, %120, %121 : vector<8x128xf32>
    %123 = arith.extui %122 : vector<8x128xi1> to vector<8x128xi32>
    %124 = arith.sitofp %123 : vector<8x128xi32> to vector<8x128xf32>
    %125 = arith.index_cast %108 : i32 to index
    %c0_52 = arith.constant 0 : index
    %126 = vector.load %arg13[%125, %c0_52] : memref<128x128xf32, #tpu.memory_space<vmem>>, vector<8x128xf32>
    tpu.vector_store %arg13[%125, %c0_52], %124 {strides = array<i32>} : memref<128x128xf32, #tpu.memory_space<vmem>>, vector<8x128xf32>,
    %c5_i32 = arith.constant 5 : i32
    %c8_i32_53 = arith.constant 8 : i32
    %127 = arith.muli %c5_i32, %c8_i32_53 : i32
    %128 = tpu.assume_multiple %127, 8 : i32
    %129 = arith.index_cast %128 : i32 to index
    %c0_54 = arith.constant 0 : index
    %130 = vector.load %arg13[%129, %c0_54] : memref<128x128xf32, #tpu.memory_space<vmem>>, vector<8x128xf32>
    %cst_55 = arith.constant 1.000000e+00 : f32
    %131 = vector.broadcast %cst_55 : f32 to vector<8x128xf32>
    %132 = arith.cmpf ogt, %120, %131 : vector<8x128xf32>
    %133 = arith.extui %132 : vector<8x128xi1> to vector<8x128xi32>
    %134 = arith.sitofp %133 : vector<8x128xi32> to vector<8x128xf32>
    %cst_56 = arith.constant 0.899999976 : f32
    %135 = vector.broadcast %cst_56 : f32 to vector<8x128xf32>
    %136 = arith.mulf %135, %120 : vector<8x128xf32>
    %137 = arith.addf %136, %130 : vector<8x128xf32>
    %cst_57 = arith.constant 1.000000e+00 : f32
    %138 = vector.broadcast %cst_57 : f32 to vector<8x128xf32>
    %139 = arith.mulf %134, %138 : vector<8x128xf32>
    %140 = arith.subf %137, %139 : vector<8x128xf32>
    %cst_58 = arith.constant 1.000000e+00 : f32
    %141 = vector.broadcast %cst_58 : f32 to vector<8x128xf32>
    %142 = arith.cmpf ogt, %140, %141 : vector<8x128xf32>
    %143 = arith.extui %142 : vector<8x128xi1> to vector<8x128xi32>
    %144 = arith.sitofp %143 : vector<8x128xi32> to vector<8x128xf32>
    %145 = arith.index_cast %128 : i32 to index
    %c0_59 = arith.constant 0 : index
    %146 = vector.load %arg13[%145, %c0_59] : memref<128x128xf32, #tpu.memory_space<vmem>>, vector<8x128xf32>
    tpu.vector_store %arg13[%145, %c0_59], %144 {strides = array<i32>} : memref<128x128xf32, #tpu.memory_space<vmem>>, vector<8x128xf32>,
    %c6_i32 = arith.constant 6 : i32
    %c8_i32_60 = arith.constant 8 : i32
    %147 = arith.muli %c6_i32, %c8_i32_60 : i32
    %148 = tpu.assume_multiple %147, 8 : i32
    %149 = arith.index_cast %148 : i32 to index
    %c0_61 = arith.constant 0 : index
    %150 = vector.load %arg13[%149, %c0_61] : memref<128x128xf32, #tpu.memory_space<vmem>>, vector<8x128xf32>
    %cst_62 = arith.constant 1.000000e+00 : f32
    %151 = vector.broadcast %cst_62 : f32 to vector<8x128xf32>
    %152 = arith.cmpf ogt, %140, %151 : vector<8x128xf32>
    %153 = arith.extui %152 : vector<8x128xi1> to vector<8x128xi32>
    %154 = arith.sitofp %153 : vector<8x128xi32> to vector<8x128xf32>
    %cst_63 = arith.constant 0.899999976 : f32
    %155 = vector.broadcast %cst_63 : f32 to vector<8x128xf32>
    %156 = arith.mulf %155, %140 : vector<8x128xf32>
    %157 = arith.addf %156, %150 : vector<8x128xf32>
    %cst_64 = arith.constant 1.000000e+00 : f32
    %158 = vector.broadcast %cst_64 : f32 to vector<8x128xf32>
    %159 = arith.mulf %154, %158 : vector<8x128xf32>
    %160 = arith.subf %157, %159 : vector<8x128xf32>
    %cst_65 = arith.constant 1.000000e+00 : f32
    %161 = vector.broadcast %cst_65 : f32 to vector<8x128xf32>
    %162 = arith.cmpf ogt, %160, %161 : vector<8x128xf32>
    %163 = arith.extui %162 : vector<8x128xi1> to vector<8x128xi32>
    %164 = arith.sitofp %163 : vector<8x128xi32> to vector<8x128xf32>
    %165 = arith.index_cast %148 : i32 to index
    %c0_66 = arith.constant 0 : index
    %166 = vector.load %arg13[%165, %c0_66] : memref<128x128xf32, #tpu.memory_space<vmem>>, vector<8x128xf32>
    tpu.vector_store %arg13[%165, %c0_66], %164 {strides = array<i32>} : memref<128x128xf32, #tpu.memory_space<vmem>>, vector<8x128xf32>,
    %c7_i32 = arith.constant 7 : i32
    %c8_i32_67 = arith.constant 8 : i32
    %167 = arith.muli %c7_i32, %c8_i32_67 : i32
    %168 = tpu.assume_multiple %167, 8 : i32
    %169 = arith.index_cast %168 : i32 to index
    %c0_68 = arith.constant 0 : index
    %170 = vector.load %arg13[%169, %c0_68] : memref<128x128xf32, #tpu.memory_space<vmem>>, vector<8x128xf32>
    %cst_69 = arith.constant 1.000000e+00 : f32
    %171 = vector.broadcast %cst_69 : f32 to vector<8x128xf32>
    %172 = arith.cmpf ogt, %160, %171 : vector<8x128xf32>
    %173 = arith.extui %172 : vector<8x128xi1> to vector<8x128xi32>
    %174 = arith.sitofp %173 : vector<8x128xi32> to vector<8x128xf32>
    %cst_70 = arith.constant 0.899999976 : f32
    %175 = vector.broadcast %cst_70 : f32 to vector<8x128xf32>
    %176 = arith.mulf %175, %160 : vector<8x128xf32>
    %177 = arith.addf %176, %170 : vector<8x128xf32>
    %cst_71 = arith.constant 1.000000e+00 : f32
    %178 = vector.broadcast %cst_71 : f32 to vector<8x128xf32>
    %179 = arith.mulf %174, %178 : vector<8x128xf32>
    %180 = arith.subf %177, %179 : vector<8x128xf32>
    %cst_72 = arith.constant 1.000000e+00 : f32
    %181 = vector.broadcast %cst_72 : f32 to vector<8x128xf32>
    %182 = arith.cmpf ogt, %180, %181 : vector<8x128xf32>
    %183 = arith.extui %182 : vector<8x128xi1> to vector<8x128xi32>
    %184 = arith.sitofp %183 : vector<8x128xi32> to vector<8x128xf32>
    %185 = arith.index_cast %168 : i32 to index
    %c0_73 = arith.constant 0 : index
    %186 = vector.load %arg13[%185, %c0_73] : memref<128x128xf32, #tpu.memory_space<vmem>>, vector<8x128xf32>
    tpu.vector_store %arg13[%185, %c0_73], %184 {strides = array<i32>} : memref<128x128xf32, #tpu.memory_space<vmem>>, vector<8x128xf32>,
    %c8_i32_74 = arith.constant 8 : i32
    %c8_i32_75 = arith.constant 8 : i32
    %187 = arith.muli %c8_i32_74, %c8_i32_75 : i32
    %188 = tpu.assume_multiple %187, 8 : i32
    %189 = arith.index_cast %188 : i32 to index
    %c0_76 = arith.constant 0 : index
    %190 = vector.load %arg13[%189, %c0_76] : memref<128x128xf32, #tpu.memory_space<vmem>>, vector<8x128xf32>
    %cst_77 = arith.constant 1.000000e+00 : f32
    %191 = vector.broadcast %cst_77 : f32 to vector<8x128xf32>
    %192 = arith.cmpf ogt, %180, %191 : vector<8x128xf32>
    %193 = arith.extui %192 : vector<8x128xi1> to vector<8x128xi32>
    %194 = arith.sitofp %193 : vector<8x128xi32> to vector<8x128xf32>
    %cst_78 = arith.constant 0.899999976 : f32
    %195 = vector.broadcast %cst_78 : f32 to vector<8x128xf32>
    %196 = arith.mulf %195, %180 : vector<8x128xf32>
    %197 = arith.addf %196, %190 : vector<8x128xf32>
    %cst_79 = arith.constant 1.000000e+00 : f32
    %198 = vector.broadcast %cst_79 : f32 to vector<8x128xf32>
    %199 = arith.mulf %194, %198 : vector<8x128xf32>
    %200 = arith.subf %197, %199 : vector<8x128xf32>
    %cst_80 = arith.constant 1.000000e+00 : f32
    %201 = vector.broadcast %cst_80 : f32 to vector<8x128xf32>
    %202 = arith.cmpf ogt, %200, %201 : vector<8x128xf32>
    %203 = arith.extui %202 : vector<8x128xi1> to vector<8x128xi32>
    %204 = arith.sitofp %203 : vector<8x128xi32> to vector<8x128xf32>
    %205 = arith.index_cast %188 : i32 to index
    %c0_81 = arith.constant 0 : index
    %206 = vector.load %arg13[%205, %c0_81] : memref<128x128xf32, #tpu.memory_space<vmem>>, vector<8x128xf32>
    tpu.vector_store %arg13[%205, %c0_81], %204 {strides = array<i32>} : memref<128x128xf32, #tpu.memory_space<vmem>>, vector<8x128xf32>,
    %c9_i32 = arith.constant 9 : i32
    %c8_i32_82 = arith.constant 8 : i32
    %207 = arith.muli %c9_i32, %c8_i32_82 : i32
    %208 = tpu.assume_multiple %207, 8 : i32
    %209 = arith.index_cast %208 : i32 to index
    %c0_83 = arith.constant 0 : index
    %210 = vector.load %arg13[%209, %c0_83] : memref<128x128xf32, #tpu.memory_space<vmem>>, vector<8x128xf32>
    %cst_84 = arith.constant 1.000000e+00 : f32
    %211 = vector.broadcast %cst_84 : f32 to vector<8x128xf32>
    %212 = arith.cmpf ogt, %200, %211 : vector<8x128xf32>
    %213 = arith.extui %212 : vector<8x128xi1> to vector<8x128xi32>
    %214 = arith.sitofp %213 : vector<8x128xi32> to vector<8x128xf32>
    %cst_85 = arith.constant 0.899999976 : f32
    %215 = vector.broadcast %cst_85 : f32 to vector<8x128xf32>
    %216 = arith.mulf %215, %200 : vector<8x128xf32>
    %217 = arith.addf %216, %210 : vector<8x128xf32>
    %cst_86 = arith.constant 1.000000e+00 : f32
    %218 = vector.broadcast %cst_86 : f32 to vector<8x128xf32>
    %219 = arith.mulf %214, %218 : vector<8x128xf32>
    %220 = arith.subf %217, %219 : vector<8x128xf32>
    %cst_87 = arith.constant 1.000000e+00 : f32
    %221 = vector.broadcast %cst_87 : f32 to vector<8x128xf32>
    %222 = arith.cmpf ogt, %220, %221 : vector<8x128xf32>
    %223 = arith.extui %222 : vector<8x128xi1> to vector<8x128xi32>
    %224 = arith.sitofp %223 : vector<8x128xi32> to vector<8x128xf32>
    %225 = arith.index_cast %208 : i32 to index
    %c0_88 = arith.constant 0 : index
    %226 = vector.load %arg13[%225, %c0_88] : memref<128x128xf32, #tpu.memory_space<vmem>>, vector<8x128xf32>
    tpu.vector_store %arg13[%225, %c0_88], %224 {strides = array<i32>} : memref<128x128xf32, #tpu.memory_space<vmem>>, vector<8x128xf32>,
    %c10_i32 = arith.constant 10 : i32
    %c8_i32_89 = arith.constant 8 : i32
    %227 = arith.muli %c10_i32, %c8_i32_89 : i32
    %228 = tpu.assume_multiple %227, 8 : i32
    %229 = arith.index_cast %228 : i32 to index
    %c0_90 = arith.constant 0 : index
    %230 = vector.load %arg13[%229, %c0_90] : memref<128x128xf32, #tpu.memory_space<vmem>>, vector<8x128xf32>
    %cst_91 = arith.constant 1.000000e+00 : f32
    %231 = vector.broadcast %cst_91 : f32 to vector<8x128xf32>
    %232 = arith.cmpf ogt, %220, %231 : vector<8x128xf32>
    %233 = arith.extui %232 : vector<8x128xi1> to vector<8x128xi32>
    %234 = arith.sitofp %233 : vector<8x128xi32> to vector<8x128xf32>
    %cst_92 = arith.constant 0.899999976 : f32
    %235 = vector.broadcast %cst_92 : f32 to vector<8x128xf32>
    %236 = arith.mulf %235, %220 : vector<8x128xf32>
    %237 = arith.addf %236, %230 : vector<8x128xf32>
    %cst_93 = arith.constant 1.000000e+00 : f32
    %238 = vector.broadcast %cst_93 : f32 to vector<8x128xf32>
    %239 = arith.mulf %234, %238 : vector<8x128xf32>
    %240 = arith.subf %237, %239 : vector<8x128xf32>
    %cst_94 = arith.constant 1.000000e+00 : f32
    %241 = vector.broadcast %cst_94 : f32 to vector<8x128xf32>
    %242 = arith.cmpf ogt, %240, %241 : vector<8x128xf32>
    %243 = arith.extui %242 : vector<8x128xi1> to vector<8x128xi32>
    %244 = arith.sitofp %243 : vector<8x128xi32> to vector<8x128xf32>
    %245 = arith.index_cast %228 : i32 to index
    %c0_95 = arith.constant 0 : index
    %246 = vector.load %arg13[%245, %c0_95] : memref<128x128xf32, #tpu.memory_space<vmem>>, vector<8x128xf32>
    tpu.vector_store %arg13[%245, %c0_95], %244 {strides = array<i32>} : memref<128x128xf32, #tpu.memory_space<vmem>>, vector<8x128xf32>,
    %c11_i32 = arith.constant 11 : i32
    %c8_i32_96 = arith.constant 8 : i32
    %247 = arith.muli %c11_i32, %c8_i32_96 : i32
    %248 = tpu.assume_multiple %247, 8 : i32
    %249 = arith.index_cast %248 : i32 to index
    %c0_97 = arith.constant 0 : index
    %250 = vector.load %arg13[%249, %c0_97] : memref<128x128xf32, #tpu.memory_space<vmem>>, vector<8x128xf32>
    %cst_98 = arith.constant 1.000000e+00 : f32
    %251 = vector.broadcast %cst_98 : f32 to vector<8x128xf32>
    %252 = arith.cmpf ogt, %240, %251 : vector<8x128xf32>
    %253 = arith.extui %252 : vector<8x128xi1> to vector<8x128xi32>
    %254 = arith.sitofp %253 : vector<8x128xi32> to vector<8x128xf32>
    %cst_99 = arith.constant 0.899999976 : f32
    %255 = vector.broadcast %cst_99 : f32 to vector<8x128xf32>
    %256 = arith.mulf %255, %240 : vector<8x128xf32>
    %257 = arith.addf %256, %250 : vector<8x128xf32>
    %cst_100 = arith.constant 1.000000e+00 : f32
    %258 = vector.broadcast %cst_100 : f32 to vector<8x128xf32>
    %259 = arith.mulf %254, %258 : vector<8x128xf32>
    %260 = arith.subf %257, %259 : vector<8x128xf32>
    %cst_101 = arith.constant 1.000000e+00 : f32
    %261 = vector.broadcast %cst_101 : f32 to vector<8x128xf32>
    %262 = arith.cmpf ogt, %260, %261 : vector<8x128xf32>
    %263 = arith.extui %262 : vector<8x128xi1> to vector<8x128xi32>
    %264 = arith.sitofp %263 : vector<8x128xi32> to vector<8x128xf32>
    %265 = arith.index_cast %248 : i32 to index
    %c0_102 = arith.constant 0 : index
    %266 = vector.load %arg13[%265, %c0_102] : memref<128x128xf32, #tpu.memory_space<vmem>>, vector<8x128xf32>
    tpu.vector_store %arg13[%265, %c0_102], %264 {strides = array<i32>} : memref<128x128xf32, #tpu.memory_space<vmem>>, vector<8x128xf32>,
    %c12_i32 = arith.constant 12 : i32
    %c8_i32_103 = arith.constant 8 : i32
    %267 = arith.muli %c12_i32, %c8_i32_103 : i32
    %268 = tpu.assume_multiple %267, 8 : i32
    %269 = arith.index_cast %268 : i32 to index
    %c0_104 = arith.constant 0 : index
    %270 = vector.load %arg13[%269, %c0_104] : memref<128x128xf32, #tpu.memory_space<vmem>>, vector<8x128xf32>
    %cst_105 = arith.constant 1.000000e+00 : f32
    %271 = vector.broadcast %cst_105 : f32 to vector<8x128xf32>
    %272 = arith.cmpf ogt, %260, %271 : vector<8x128xf32>
    %273 = arith.extui %272 : vector<8x128xi1> to vector<8x128xi32>
    %274 = arith.sitofp %273 : vector<8x128xi32> to vector<8x128xf32>
    %cst_106 = arith.constant 0.899999976 : f32
    %275 = vector.broadcast %cst_106 : f32 to vector<8x128xf32>
    %276 = arith.mulf %275, %260 : vector<8x128xf32>
    %277 = arith.addf %276, %270 : vector<8x128xf32>
    %cst_107 = arith.constant 1.000000e+00 : f32
    %278 = vector.broadcast %cst_107 : f32 to vector<8x128xf32>
    %279 = arith.mulf %274, %278 : vector<8x128xf32>
    %280 = arith.subf %277, %279 : vector<8x128xf32>
    %cst_108 = arith.constant 1.000000e+00 : f32
    %281 = vector.broadcast %cst_108 : f32 to vector<8x128xf32>
    %282 = arith.cmpf ogt, %280, %281 : vector<8x128xf32>
    %283 = arith.extui %282 : vector<8x128xi1> to vector<8x128xi32>
    %284 = arith.sitofp %283 : vector<8x128xi32> to vector<8x128xf32>
    %285 = arith.index_cast %268 : i32 to index
    %c0_109 = arith.constant 0 : index
    %286 = vector.load %arg13[%285, %c0_109] : memref<128x128xf32, #tpu.memory_space<vmem>>, vector<8x128xf32>
    tpu.vector_store %arg13[%285, %c0_109], %284 {strides = array<i32>} : memref<128x128xf32, #tpu.memory_space<vmem>>, vector<8x128xf32>,
    %c13_i32 = arith.constant 13 : i32
    %c8_i32_110 = arith.constant 8 : i32
    %287 = arith.muli %c13_i32, %c8_i32_110 : i32
    %288 = tpu.assume_multiple %287, 8 : i32
    %289 = arith.index_cast %288 : i32 to index
    %c0_111 = arith.constant 0 : index
    %290 = vector.load %arg13[%289, %c0_111] : memref<128x128xf32, #tpu.memory_space<vmem>>, vector<8x128xf32>
    %cst_112 = arith.constant 1.000000e+00 : f32
    %291 = vector.broadcast %cst_112 : f32 to vector<8x128xf32>
    %292 = arith.cmpf ogt, %280, %291 : vector<8x128xf32>
    %293 = arith.extui %292 : vector<8x128xi1> to vector<8x128xi32>
    %294 = arith.sitofp %293 : vector<8x128xi32> to vector<8x128xf32>
    %cst_113 = arith.constant 0.899999976 : f32
    %295 = vector.broadcast %cst_113 : f32 to vector<8x128xf32>
    %296 = arith.mulf %295, %280 : vector<8x128xf32>
    %297 = arith.addf %296, %290 : vector<8x128xf32>
    %cst_114 = arith.constant 1.000000e+00 : f32
    %298 = vector.broadcast %cst_114 : f32 to vector<8x128xf32>
    %299 = arith.mulf %294, %298 : vector<8x128xf32>
    %300 = arith.subf %297, %299 : vector<8x128xf32>
    %cst_115 = arith.constant 1.000000e+00 : f32
    %301 = vector.broadcast %cst_115 : f32 to vector<8x128xf32>
    %302 = arith.cmpf ogt, %300, %301 : vector<8x128xf32>
    %303 = arith.extui %302 : vector<8x128xi1> to vector<8x128xi32>
    %304 = arith.sitofp %303 : vector<8x128xi32> to vector<8x128xf32>
    %305 = arith.index_cast %288 : i32 to index
    %c0_116 = arith.constant 0 : index
    %306 = vector.load %arg13[%305, %c0_116] : memref<128x128xf32, #tpu.memory_space<vmem>>, vector<8x128xf32>
    tpu.vector_store %arg13[%305, %c0_116], %304 {strides = array<i32>} : memref<128x128xf32, #tpu.memory_space<vmem>>, vector<8x128xf32>,
    %c14_i32 = arith.constant 14 : i32
    %c8_i32_117 = arith.constant 8 : i32
    %307 = arith.muli %c14_i32, %c8_i32_117 : i32
    %308 = tpu.assume_multiple %307, 8 : i32
    %309 = arith.index_cast %308 : i32 to index
    %c0_118 = arith.constant 0 : index
    %310 = vector.load %arg13[%309, %c0_118] : memref<128x128xf32, #tpu.memory_space<vmem>>, vector<8x128xf32>
    %cst_119 = arith.constant 1.000000e+00 : f32
    %311 = vector.broadcast %cst_119 : f32 to vector<8x128xf32>
    %312 = arith.cmpf ogt, %300, %311 : vector<8x128xf32>
    %313 = arith.extui %312 : vector<8x128xi1> to vector<8x128xi32>
    %314 = arith.sitofp %313 : vector<8x128xi32> to vector<8x128xf32>
    %cst_120 = arith.constant 0.899999976 : f32
    %315 = vector.broadcast %cst_120 : f32 to vector<8x128xf32>
    %316 = arith.mulf %315, %300 : vector<8x128xf32>
    %317 = arith.addf %316, %310 : vector<8x128xf32>
    %cst_121 = arith.constant 1.000000e+00 : f32
    %318 = vector.broadcast %cst_121 : f32 to vector<8x128xf32>
    %319 = arith.mulf %314, %318 : vector<8x128xf32>
    %320 = arith.subf %317, %319 : vector<8x128xf32>
    %cst_122 = arith.constant 1.000000e+00 : f32
    %321 = vector.broadcast %cst_122 : f32 to vector<8x128xf32>
    %322 = arith.cmpf ogt, %320, %321 : vector<8x128xf32>
    %323 = arith.extui %322 : vector<8x128xi1> to vector<8x128xi32>
    %324 = arith.sitofp %323 : vector<8x128xi32> to vector<8x128xf32>
    %325 = arith.index_cast %308 : i32 to index
    %c0_123 = arith.constant 0 : index
    %326 = vector.load %arg13[%325, %c0_123] : memref<128x128xf32, #tpu.memory_space<vmem>>, vector<8x128xf32>
    tpu.vector_store %arg13[%325, %c0_123], %324 {strides = array<i32>} : memref<128x128xf32, #tpu.memory_space<vmem>>, vector<8x128xf32>,
    %c15_i32 = arith.constant 15 : i32
    %c8_i32_124 = arith.constant 8 : i32
    %327 = arith.muli %c15_i32, %c8_i32_124 : i32
    %328 = tpu.assume_multiple %327, 8 : i32
    %329 = arith.index_cast %328 : i32 to index
    %c0_125 = arith.constant 0 : index
    %330 = vector.load %arg13[%329, %c0_125] : memref<128x128xf32, #tpu.memory_space<vmem>>, vector<8x128xf32>
    %cst_126 = arith.constant 1.000000e+00 : f32
    %331 = vector.broadcast %cst_126 : f32 to vector<8x128xf32>
    %332 = arith.cmpf ogt, %320, %331 : vector<8x128xf32>
    %333 = arith.extui %332 : vector<8x128xi1> to vector<8x128xi32>
    %334 = arith.sitofp %333 : vector<8x128xi32> to vector<8x128xf32>
    %cst_127 = arith.constant 0.899999976 : f32
    %335 = vector.broadcast %cst_127 : f32 to vector<8x128xf32>
    %336 = arith.mulf %335, %320 : vector<8x128xf32>
    %337 = arith.addf %336, %330 : vector<8x128xf32>
    %cst_128 = arith.constant 1.000000e+00 : f32
    %338 = vector.broadcast %cst_128 : f32 to vector<8x128xf32>
    %339 = arith.mulf %334, %338 : vector<8x128xf32>
    %340 = arith.subf %337, %339 : vector<8x128xf32>
    %cst_129 = arith.constant 1.000000e+00 : f32
    %341 = vector.broadcast %cst_129 : f32 to vector<8x128xf32>
    %342 = arith.cmpf ogt, %340, %341 : vector<8x128xf32>
    %343 = arith.extui %342 : vector<8x128xi1> to vector<8x128xi32>
    %344 = arith.sitofp %343 : vector<8x128xi32> to vector<8x128xf32>
    %345 = arith.index_cast %328 : i32 to index
    %c0_130 = arith.constant 0 : index
    %346 = vector.load %arg13[%345, %c0_130] : memref<128x128xf32, #tpu.memory_space<vmem>>, vector<8x128xf32>
    tpu.vector_store %arg13[%345, %c0_130], %344 {strides = array<i32>} : memref<128x128xf32, #tpu.memory_space<vmem>>, vector<8x128xf32>,
    %c16_i32 = arith.constant 16 : i32
    %c0_131 = arith.constant 0 : index
    %c0_132 = arith.constant 0 : index
    %347 = vector.load %arg11[%c0_131, %c0_132] : memref<8x128xf32, #tpu.memory_space<vmem>>, vector<8x128xf32>
    tpu.vector_store %arg11[%c0_131, %c0_132], %340 {strides = array<i32>} : memref<8x128xf32, #tpu.memory_space<vmem>>, vector<8x128xf32>,
    %c0_133 = arith.constant 0 : index
    %c0_134 = arith.constant 0 : index
    %348 = vector.load %arg5[%c0_133, %c0_134] : memref<128x128xbf16, #tpu.memory_space<vmem>>, vector<128x128xbf16>
    %c0_135 = arith.constant 0 : index
    %c0_136 = arith.constant 0 : index
    %349 = vector.load %arg13[%c0_135, %c0_136] : memref<128x128xf32, #tpu.memory_space<vmem>>, vector<128x128xf32>
    %350 = arith.truncf %349 : vector<128x128xf32> to vector<128x128xbf16>
    %cst_137 = arith.constant dense<0.000000e+00> : vector<128x128xf32>
    %351 = tpu.matmul %350, %348, %cst_137 {dimension_numbers = #tpu.dot_dimension_numbers<[1], [0], [0], [1], [0, 0, 1, 1], [], []>} : vector<128x128xbf16>, vector<128x128xbf16>, vector<128x128xf32> -> vector<128x128xf32>
    %cst_138 = arith.constant dense<0.000000e+00> : vector<128x128xf32>
    %352 = tpu.matmul %3, %351, %cst_138 {dimension_numbers = #tpu.dot_dimension_numbers<[1], [0], [0], [1], [0, 0, 1, 1], [], []>} : vector<128x128xf32>, vector<128x128xf32>, vector<128x128xf32> -> vector<128x128xf32>
    %353 = arith.mulf %351, %351 : vector<128x128xf32>
    %cst_139 = arith.constant dense<0.000000e+00> : vector<128x128xf32>
    %354 = tpu.matmul %3, %353, %cst_139 {dimension_numbers = #tpu.dot_dimension_numbers<[1], [0], [0], [1], [0, 0, 1, 1], [], []>} : vector<128x128xf32>, vector<128x128xf32>, vector<128x128xf32> -> vector<128x128xf32>
    %355 = arith.mulf %352, %352 : vector<128x128xf32>
    %356 = arith.subf %354, %355 : vector<128x128xf32>
    %cst_140 = arith.constant 0.000000e+00 : f32
    %357 = vector.broadcast %cst_140 : f32 to vector<128x128xf32>
    %358 = arith.maximumf %356, %357 : vector<128x128xf32>
    %359 = arith.subf %351, %352 : vector<128x128xf32>
    %cst_141 = arith.constant 9.99999974E-6 : f32
    %360 = vector.broadcast %cst_141 : f32 to vector<128x128xf32>
    %361 = arith.addf %358, %360 : vector<128x128xf32>
    %362 = math.rsqrt %361 : vector<128x128xf32>
    %363 = arith.mulf %359, %362 : vector<128x128xf32>
    %c0_142 = arith.constant 0 : index
    %c0_143 = arith.constant 0 : index
    %364 = vector.load %arg6[%c0_142, %c0_143] : memref<1x128xf32, #tpu.memory_space<vmem>>, vector<1x128xf32>
    %365 = vector.broadcast %364 : vector<1x128xf32> to vector<128x128xf32>
    %366 = arith.mulf %363, %365 : vector<128x128xf32>
    %c0_144 = arith.constant 0 : index
    %c0_145 = arith.constant 0 : index
    %367 = vector.load %arg7[%c0_144, %c0_145] : memref<1x128xf32, #tpu.memory_space<vmem>>, vector<1x128xf32>
    %368 = vector.broadcast %367 : vector<1x128xf32> to vector<128x128xf32>
    %369 = arith.addf %366, %368 : vector<128x128xf32>
    %c0_146 = arith.constant 0 : index
    %c0_147 = arith.constant 0 : index
    %370 = vector.load %arg14[%c0_146, %c0_147] : memref<128x128xf32, #tpu.memory_space<vmem>>, vector<128x128xf32>
    tpu.vector_store %arg14[%c0_146, %c0_147], %369 {strides = array<i32>} : memref<128x128xf32, #tpu.memory_space<vmem>>, vector<128x128xf32>,
    %c0_148 = arith.constant 0 : index
    %c0_149 = arith.constant 0 : index
    %371 = vector.load %arg12[%c0_148, %c0_149] : memref<8x128xf32, #tpu.memory_space<vmem>>, vector<8x128xf32>
    %c0_i32_150 = arith.constant 0 : i32
    %c8_i32_151 = arith.constant 8 : i32
    %372 = arith.muli %c0_i32_150, %c8_i32_151 : i32
    %373 = tpu.assume_multiple %372, 8 : i32
    %374 = arith.index_cast %373 : i32 to index
    %c0_152 = arith.constant 0 : index
    %375 = vector.load %arg14[%374, %c0_152] : memref<128x128xf32, #tpu.memory_space<vmem>>, vector<8x128xf32>
    %cst_153 = arith.constant 1.000000e+00 : f32
    %376 = vector.broadcast %cst_153 : f32 to vector<8x128xf32>
    %377 = arith.cmpf ogt, %371, %376 : vector<8x128xf32>
    %378 = arith.extui %377 : vector<8x128xi1> to vector<8x128xi32>
    %379 = arith.sitofp %378 : vector<8x128xi32> to vector<8x128xf32>
    %cst_154 = arith.constant 0.899999976 : f32
    %380 = vector.broadcast %cst_154 : f32 to vector<8x128xf32>
    %381 = arith.mulf %380, %371 : vector<8x128xf32>
    %382 = arith.addf %381, %375 : vector<8x128xf32>
    %cst_155 = arith.constant 1.000000e+00 : f32
    %383 = vector.broadcast %cst_155 : f32 to vector<8x128xf32>
    %384 = arith.mulf %379, %383 : vector<8x128xf32>
    %385 = arith.subf %382, %384 : vector<8x128xf32>
    %cst_156 = arith.constant 1.000000e+00 : f32
    %386 = vector.broadcast %cst_156 : f32 to vector<8x128xf32>
    %387 = arith.cmpf ogt, %385, %386 : vector<8x128xf32>
    %388 = arith.extui %387 : vector<8x128xi1> to vector<8x128xi32>
    %389 = arith.sitofp %388 : vector<8x128xi32> to vector<8x128xf32>
    %390 = arith.index_cast %373 : i32 to index
    %c0_157 = arith.constant 0 : index
    %391 = vector.load %arg9[%390, %c0_157] : memref<128x128xf32, #tpu.memory_space<vmem>>, vector<8x128xf32>
    tpu.vector_store %arg9[%390, %c0_157], %389 {strides = array<i32>} : memref<128x128xf32, #tpu.memory_space<vmem>>, vector<8x128xf32>,
    %392 = arith.index_cast %373 : i32 to index
    %c0_158 = arith.constant 0 : index
    %393 = vector.load %arg10[%392, %c0_158] : memref<128x128xf32, #tpu.memory_space<vmem>>, vector<8x128xf32>
    tpu.vector_store %arg10[%392, %c0_158], %385 {strides = array<i32>} : memref<128x128xf32, #tpu.memory_space<vmem>>, vector<8x128xf32>,
    %c1_i32_159 = arith.constant 1 : i32
    %c8_i32_160 = arith.constant 8 : i32
    %394 = arith.muli %c1_i32_159, %c8_i32_160 : i32
    %395 = tpu.assume_multiple %394, 8 : i32
    %396 = arith.index_cast %395 : i32 to index
    %c0_161 = arith.constant 0 : index
    %397 = vector.load %arg14[%396, %c0_161] : memref<128x128xf32, #tpu.memory_space<vmem>>, vector<8x128xf32>
    %cst_162 = arith.constant 1.000000e+00 : f32
    %398 = vector.broadcast %cst_162 : f32 to vector<8x128xf32>
    %399 = arith.cmpf ogt, %385, %398 : vector<8x128xf32>
    %400 = arith.extui %399 : vector<8x128xi1> to vector<8x128xi32>
    %401 = arith.sitofp %400 : vector<8x128xi32> to vector<8x128xf32>
    %cst_163 = arith.constant 0.899999976 : f32
    %402 = vector.broadcast %cst_163 : f32 to vector<8x128xf32>
    %403 = arith.mulf %402, %385 : vector<8x128xf32>
    %404 = arith.addf %403, %397 : vector<8x128xf32>
    %cst_164 = arith.constant 1.000000e+00 : f32
    %405 = vector.broadcast %cst_164 : f32 to vector<8x128xf32>
    %406 = arith.mulf %401, %405 : vector<8x128xf32>
    %407 = arith.subf %404, %406 : vector<8x128xf32>
    %cst_165 = arith.constant 1.000000e+00 : f32
    %408 = vector.broadcast %cst_165 : f32 to vector<8x128xf32>
    %409 = arith.cmpf ogt, %407, %408 : vector<8x128xf32>
    %410 = arith.extui %409 : vector<8x128xi1> to vector<8x128xi32>
    %411 = arith.sitofp %410 : vector<8x128xi32> to vector<8x128xf32>
    %412 = arith.index_cast %395 : i32 to index
    %c0_166 = arith.constant 0 : index
    %413 = vector.load %arg9[%412, %c0_166] : memref<128x128xf32, #tpu.memory_space<vmem>>, vector<8x128xf32>
    tpu.vector_store %arg9[%412, %c0_166], %411 {strides = array<i32>} : memref<128x128xf32, #tpu.memory_space<vmem>>, vector<8x128xf32>,
    %414 = arith.index_cast %395 : i32 to index
    %c0_167 = arith.constant 0 : index
    %415 = vector.load %arg10[%414, %c0_167] : memref<128x128xf32, #tpu.memory_space<vmem>>, vector<8x128xf32>
    tpu.vector_store %arg10[%414, %c0_167], %407 {strides = array<i32>} : memref<128x128xf32, #tpu.memory_space<vmem>>, vector<8x128xf32>,
    %c2_i32_168 = arith.constant 2 : i32
    %c8_i32_169 = arith.constant 8 : i32
    %416 = arith.muli %c2_i32_168, %c8_i32_169 : i32
    %417 = tpu.assume_multiple %416, 8 : i32
    %418 = arith.index_cast %417 : i32 to index
    %c0_170 = arith.constant 0 : index
    %419 = vector.load %arg14[%418, %c0_170] : memref<128x128xf32, #tpu.memory_space<vmem>>, vector<8x128xf32>
    %cst_171 = arith.constant 1.000000e+00 : f32
    %420 = vector.broadcast %cst_171 : f32 to vector<8x128xf32>
    %421 = arith.cmpf ogt, %407, %420 : vector<8x128xf32>
    %422 = arith.extui %421 : vector<8x128xi1> to vector<8x128xi32>
    %423 = arith.sitofp %422 : vector<8x128xi32> to vector<8x128xf32>
    %cst_172 = arith.constant 0.899999976 : f32
    %424 = vector.broadcast %cst_172 : f32 to vector<8x128xf32>
    %425 = arith.mulf %424, %407 : vector<8x128xf32>
    %426 = arith.addf %425, %419 : vector<8x128xf32>
    %cst_173 = arith.constant 1.000000e+00 : f32
    %427 = vector.broadcast %cst_173 : f32 to vector<8x128xf32>
    %428 = arith.mulf %423, %427 : vector<8x128xf32>
    %429 = arith.subf %426, %428 : vector<8x128xf32>
    %cst_174 = arith.constant 1.000000e+00 : f32
    %430 = vector.broadcast %cst_174 : f32 to vector<8x128xf32>
    %431 = arith.cmpf ogt, %429, %430 : vector<8x128xf32>
    %432 = arith.extui %431 : vector<8x128xi1> to vector<8x128xi32>
    %433 = arith.sitofp %432 : vector<8x128xi32> to vector<8x128xf32>
    %434 = arith.index_cast %417 : i32 to index
    %c0_175 = arith.constant 0 : index
    %435 = vector.load %arg9[%434, %c0_175] : memref<128x128xf32, #tpu.memory_space<vmem>>, vector<8x128xf32>
    tpu.vector_store %arg9[%434, %c0_175], %433 {strides = array<i32>} : memref<128x128xf32, #tpu.memory_space<vmem>>, vector<8x128xf32>,
    %436 = arith.index_cast %417 : i32 to index
    %c0_176 = arith.constant 0 : index
    %437 = vector.load %arg10[%436, %c0_176] : memref<128x128xf32, #tpu.memory_space<vmem>>, vector<8x128xf32>
    tpu.vector_store %arg10[%436, %c0_176], %429 {strides = array<i32>} : memref<128x128xf32, #tpu.memory_space<vmem>>, vector<8x128xf32>,
    %c3_i32_177 = arith.constant 3 : i32
    %c8_i32_178 = arith.constant 8 : i32
    %438 = arith.muli %c3_i32_177, %c8_i32_178 : i32
    %439 = tpu.assume_multiple %438, 8 : i32
    %440 = arith.index_cast %439 : i32 to index
    %c0_179 = arith.constant 0 : index
    %441 = vector.load %arg14[%440, %c0_179] : memref<128x128xf32, #tpu.memory_space<vmem>>, vector<8x128xf32>
    %cst_180 = arith.constant 1.000000e+00 : f32
    %442 = vector.broadcast %cst_180 : f32 to vector<8x128xf32>
    %443 = arith.cmpf ogt, %429, %442 : vector<8x128xf32>
    %444 = arith.extui %443 : vector<8x128xi1> to vector<8x128xi32>
    %445 = arith.sitofp %444 : vector<8x128xi32> to vector<8x128xf32>
    %cst_181 = arith.constant 0.899999976 : f32
    %446 = vector.broadcast %cst_181 : f32 to vector<8x128xf32>
    %447 = arith.mulf %446, %429 : vector<8x128xf32>
    %448 = arith.addf %447, %441 : vector<8x128xf32>
    %cst_182 = arith.constant 1.000000e+00 : f32
    %449 = vector.broadcast %cst_182 : f32 to vector<8x128xf32>
    %450 = arith.mulf %445, %449 : vector<8x128xf32>
    %451 = arith.subf %448, %450 : vector<8x128xf32>
    %cst_183 = arith.constant 1.000000e+00 : f32
    %452 = vector.broadcast %cst_183 : f32 to vector<8x128xf32>
    %453 = arith.cmpf ogt, %451, %452 : vector<8x128xf32>
    %454 = arith.extui %453 : vector<8x128xi1> to vector<8x128xi32>
    %455 = arith.sitofp %454 : vector<8x128xi32> to vector<8x128xf32>
    %456 = arith.index_cast %439 : i32 to index
    %c0_184 = arith.constant 0 : index
    %457 = vector.load %arg9[%456, %c0_184] : memref<128x128xf32, #tpu.memory_space<vmem>>, vector<8x128xf32>
    tpu.vector_store %arg9[%456, %c0_184], %455 {strides = array<i32>} : memref<128x128xf32, #tpu.memory_space<vmem>>, vector<8x128xf32>,
    %458 = arith.index_cast %439 : i32 to index
    %c0_185 = arith.constant 0 : index
    %459 = vector.load %arg10[%458, %c0_185] : memref<128x128xf32, #tpu.memory_space<vmem>>, vector<8x128xf32>
    tpu.vector_store %arg10[%458, %c0_185], %451 {strides = array<i32>} : memref<128x128xf32, #tpu.memory_space<vmem>>, vector<8x128xf32>,
    %c4_i32_186 = arith.constant 4 : i32
    %c8_i32_187 = arith.constant 8 : i32
    %460 = arith.muli %c4_i32_186, %c8_i32_187 : i32
    %461 = tpu.assume_multiple %460, 8 : i32
    %462 = arith.index_cast %461 : i32 to index
    %c0_188 = arith.constant 0 : index
    %463 = vector.load %arg14[%462, %c0_188] : memref<128x128xf32, #tpu.memory_space<vmem>>, vector<8x128xf32>
    %cst_189 = arith.constant 1.000000e+00 : f32
    %464 = vector.broadcast %cst_189 : f32 to vector<8x128xf32>
    %465 = arith.cmpf ogt, %451, %464 : vector<8x128xf32>
    %466 = arith.extui %465 : vector<8x128xi1> to vector<8x128xi32>
    %467 = arith.sitofp %466 : vector<8x128xi32> to vector<8x128xf32>
    %cst_190 = arith.constant 0.899999976 : f32
    %468 = vector.broadcast %cst_190 : f32 to vector<8x128xf32>
    %469 = arith.mulf %468, %451 : vector<8x128xf32>
    %470 = arith.addf %469, %463 : vector<8x128xf32>
    %cst_191 = arith.constant 1.000000e+00 : f32
    %471 = vector.broadcast %cst_191 : f32 to vector<8x128xf32>
    %472 = arith.mulf %467, %471 : vector<8x128xf32>
    %473 = arith.subf %470, %472 : vector<8x128xf32>
    %cst_192 = arith.constant 1.000000e+00 : f32
    %474 = vector.broadcast %cst_192 : f32 to vector<8x128xf32>
    %475 = arith.cmpf ogt, %473, %474 : vector<8x128xf32>
    %476 = arith.extui %475 : vector<8x128xi1> to vector<8x128xi32>
    %477 = arith.sitofp %476 : vector<8x128xi32> to vector<8x128xf32>
    %478 = arith.index_cast %461 : i32 to index
    %c0_193 = arith.constant 0 : index
    %479 = vector.load %arg9[%478, %c0_193] : memref<128x128xf32, #tpu.memory_space<vmem>>, vector<8x128xf32>
    tpu.vector_store %arg9[%478, %c0_193], %477 {strides = array<i32>} : memref<128x128xf32, #tpu.memory_space<vmem>>, vector<8x128xf32>,
    %480 = arith.index_cast %461 : i32 to index
    %c0_194 = arith.constant 0 : index
    %481 = vector.load %arg10[%480, %c0_194] : memref<128x128xf32, #tpu.memory_space<vmem>>, vector<8x128xf32>
    tpu.vector_store %arg10[%480, %c0_194], %473 {strides = array<i32>} : memref<128x128xf32, #tpu.memory_space<vmem>>, vector<8x128xf32>,
    %c5_i32_195 = arith.constant 5 : i32
    %c8_i32_196 = arith.constant 8 : i32
    %482 = arith.muli %c5_i32_195, %c8_i32_196 : i32
    %483 = tpu.assume_multiple %482, 8 : i32
    %484 = arith.index_cast %483 : i32 to index
    %c0_197 = arith.constant 0 : index
    %485 = vector.load %arg14[%484, %c0_197] : memref<128x128xf32, #tpu.memory_space<vmem>>, vector<8x128xf32>
    %cst_198 = arith.constant 1.000000e+00 : f32
    %486 = vector.broadcast %cst_198 : f32 to vector<8x128xf32>
    %487 = arith.cmpf ogt, %473, %486 : vector<8x128xf32>
    %488 = arith.extui %487 : vector<8x128xi1> to vector<8x128xi32>
    %489 = arith.sitofp %488 : vector<8x128xi32> to vector<8x128xf32>
    %cst_199 = arith.constant 0.899999976 : f32
    %490 = vector.broadcast %cst_199 : f32 to vector<8x128xf32>
    %491 = arith.mulf %490, %473 : vector<8x128xf32>
    %492 = arith.addf %491, %485 : vector<8x128xf32>
    %cst_200 = arith.constant 1.000000e+00 : f32
    %493 = vector.broadcast %cst_200 : f32 to vector<8x128xf32>
    %494 = arith.mulf %489, %493 : vector<8x128xf32>
    %495 = arith.subf %492, %494 : vector<8x128xf32>
    %cst_201 = arith.constant 1.000000e+00 : f32
    %496 = vector.broadcast %cst_201 : f32 to vector<8x128xf32>
    %497 = arith.cmpf ogt, %495, %496 : vector<8x128xf32>
    %498 = arith.extui %497 : vector<8x128xi1> to vector<8x128xi32>
    %499 = arith.sitofp %498 : vector<8x128xi32> to vector<8x128xf32>
    %500 = arith.index_cast %483 : i32 to index
    %c0_202 = arith.constant 0 : index
    %501 = vector.load %arg9[%500, %c0_202] : memref<128x128xf32, #tpu.memory_space<vmem>>, vector<8x128xf32>
    tpu.vector_store %arg9[%500, %c0_202], %499 {strides = array<i32>} : memref<128x128xf32, #tpu.memory_space<vmem>>, vector<8x128xf32>,
    %502 = arith.index_cast %483 : i32 to index
    %c0_203 = arith.constant 0 : index
    %503 = vector.load %arg10[%502, %c0_203] : memref<128x128xf32, #tpu.memory_space<vmem>>, vector<8x128xf32>
    tpu.vector_store %arg10[%502, %c0_203], %495 {strides = array<i32>} : memref<128x128xf32, #tpu.memory_space<vmem>>, vector<8x128xf32>,
    %c6_i32_204 = arith.constant 6 : i32
    %c8_i32_205 = arith.constant 8 : i32
    %504 = arith.muli %c6_i32_204, %c8_i32_205 : i32
    %505 = tpu.assume_multiple %504, 8 : i32
    %506 = arith.index_cast %505 : i32 to index
    %c0_206 = arith.constant 0 : index
    %507 = vector.load %arg14[%506, %c0_206] : memref<128x128xf32, #tpu.memory_space<vmem>>, vector<8x128xf32>
    %cst_207 = arith.constant 1.000000e+00 : f32
    %508 = vector.broadcast %cst_207 : f32 to vector<8x128xf32>
    %509 = arith.cmpf ogt, %495, %508 : vector<8x128xf32>
    %510 = arith.extui %509 : vector<8x128xi1> to vector<8x128xi32>
    %511 = arith.sitofp %510 : vector<8x128xi32> to vector<8x128xf32>
    %cst_208 = arith.constant 0.899999976 : f32
    %512 = vector.broadcast %cst_208 : f32 to vector<8x128xf32>
    %513 = arith.mulf %512, %495 : vector<8x128xf32>
    %514 = arith.addf %513, %507 : vector<8x128xf32>
    %cst_209 = arith.constant 1.000000e+00 : f32
    %515 = vector.broadcast %cst_209 : f32 to vector<8x128xf32>
    %516 = arith.mulf %511, %515 : vector<8x128xf32>
    %517 = arith.subf %514, %516 : vector<8x128xf32>
    %cst_210 = arith.constant 1.000000e+00 : f32
    %518 = vector.broadcast %cst_210 : f32 to vector<8x128xf32>
    %519 = arith.cmpf ogt, %517, %518 : vector<8x128xf32>
    %520 = arith.extui %519 : vector<8x128xi1> to vector<8x128xi32>
    %521 = arith.sitofp %520 : vector<8x128xi32> to vector<8x128xf32>
    %522 = arith.index_cast %505 : i32 to index
    %c0_211 = arith.constant 0 : index
    %523 = vector.load %arg9[%522, %c0_211] : memref<128x128xf32, #tpu.memory_space<vmem>>, vector<8x128xf32>
    tpu.vector_store %arg9[%522, %c0_211], %521 {strides = array<i32>} : memref<128x128xf32, #tpu.memory_space<vmem>>, vector<8x128xf32>,
    %524 = arith.index_cast %505 : i32 to index
    %c0_212 = arith.constant 0 : index
    %525 = vector.load %arg10[%524, %c0_212] : memref<128x128xf32, #tpu.memory_space<vmem>>, vector<8x128xf32>
    tpu.vector_store %arg10[%524, %c0_212], %517 {strides = array<i32>} : memref<128x128xf32, #tpu.memory_space<vmem>>, vector<8x128xf32>,
    %c7_i32_213 = arith.constant 7 : i32
    %c8_i32_214 = arith.constant 8 : i32
    %526 = arith.muli %c7_i32_213, %c8_i32_214 : i32
    %527 = tpu.assume_multiple %526, 8 : i32
    %528 = arith.index_cast %527 : i32 to index
    %c0_215 = arith.constant 0 : index
    %529 = vector.load %arg14[%528, %c0_215] : memref<128x128xf32, #tpu.memory_space<vmem>>, vector<8x128xf32>
    %cst_216 = arith.constant 1.000000e+00 : f32
    %530 = vector.broadcast %cst_216 : f32 to vector<8x128xf32>
    %531 = arith.cmpf ogt, %517, %530 : vector<8x128xf32>
    %532 = arith.extui %531 : vector<8x128xi1> to vector<8x128xi32>
    %533 = arith.sitofp %532 : vector<8x128xi32> to vector<8x128xf32>
    %cst_217 = arith.constant 0.899999976 : f32
    %534 = vector.broadcast %cst_217 : f32 to vector<8x128xf32>
    %535 = arith.mulf %534, %517 : vector<8x128xf32>
    %536 = arith.addf %535, %529 : vector<8x128xf32>
    %cst_218 = arith.constant 1.000000e+00 : f32
    %537 = vector.broadcast %cst_218 : f32 to vector<8x128xf32>
    %538 = arith.mulf %533, %537 : vector<8x128xf32>
    %539 = arith.subf %536, %538 : vector<8x128xf32>
    %cst_219 = arith.constant 1.000000e+00 : f32
    %540 = vector.broadcast %cst_219 : f32 to vector<8x128xf32>
    %541 = arith.cmpf ogt, %539, %540 : vector<8x128xf32>
    %542 = arith.extui %541 : vector<8x128xi1> to vector<8x128xi32>
    %543 = arith.sitofp %542 : vector<8x128xi32> to vector<8x128xf32>
    %544 = arith.index_cast %527 : i32 to index
    %c0_220 = arith.constant 0 : index
    %545 = vector.load %arg9[%544, %c0_220] : memref<128x128xf32, #tpu.memory_space<vmem>>, vector<8x128xf32>
    tpu.vector_store %arg9[%544, %c0_220], %543 {strides = array<i32>} : memref<128x128xf32, #tpu.memory_space<vmem>>, vector<8x128xf32>,
    %546 = arith.index_cast %527 : i32 to index
    %c0_221 = arith.constant 0 : index
    %547 = vector.load %arg10[%546, %c0_221] : memref<128x128xf32, #tpu.memory_space<vmem>>, vector<8x128xf32>
    tpu.vector_store %arg10[%546, %c0_221], %539 {strides = array<i32>} : memref<128x128xf32, #tpu.memory_space<vmem>>, vector<8x128xf32>,
    %c8_i32_222 = arith.constant 8 : i32
    %c8_i32_223 = arith.constant 8 : i32
    %548 = arith.muli %c8_i32_222, %c8_i32_223 : i32
    %549 = tpu.assume_multiple %548, 8 : i32
    %550 = arith.index_cast %549 : i32 to index
    %c0_224 = arith.constant 0 : index
    %551 = vector.load %arg14[%550, %c0_224] : memref<128x128xf32, #tpu.memory_space<vmem>>, vector<8x128xf32>
    %cst_225 = arith.constant 1.000000e+00 : f32
    %552 = vector.broadcast %cst_225 : f32 to vector<8x128xf32>
    %553 = arith.cmpf ogt, %539, %552 : vector<8x128xf32>
    %554 = arith.extui %553 : vector<8x128xi1> to vector<8x128xi32>
    %555 = arith.sitofp %554 : vector<8x128xi32> to vector<8x128xf32>
    %cst_226 = arith.constant 0.899999976 : f32
    %556 = vector.broadcast %cst_226 : f32 to vector<8x128xf32>
    %557 = arith.mulf %556, %539 : vector<8x128xf32>
    %558 = arith.addf %557, %551 : vector<8x128xf32>
    %cst_227 = arith.constant 1.000000e+00 : f32
    %559 = vector.broadcast %cst_227 : f32 to vector<8x128xf32>
    %560 = arith.mulf %555, %559 : vector<8x128xf32>
    %561 = arith.subf %558, %560 : vector<8x128xf32>
    %cst_228 = arith.constant 1.000000e+00 : f32
    %562 = vector.broadcast %cst_228 : f32 to vector<8x128xf32>
    %563 = arith.cmpf ogt, %561, %562 : vector<8x128xf32>
    %564 = arith.extui %563 : vector<8x128xi1> to vector<8x128xi32>
    %565 = arith.sitofp %564 : vector<8x128xi32> to vector<8x128xf32>
    %566 = arith.index_cast %549 : i32 to index
    %c0_229 = arith.constant 0 : index
    %567 = vector.load %arg9[%566, %c0_229] : memref<128x128xf32, #tpu.memory_space<vmem>>, vector<8x128xf32>
    tpu.vector_store %arg9[%566, %c0_229], %565 {strides = array<i32>} : memref<128x128xf32, #tpu.memory_space<vmem>>, vector<8x128xf32>,
    %568 = arith.index_cast %549 : i32 to index
    %c0_230 = arith.constant 0 : index
    %569 = vector.load %arg10[%568, %c0_230] : memref<128x128xf32, #tpu.memory_space<vmem>>, vector<8x128xf32>
    tpu.vector_store %arg10[%568, %c0_230], %561 {strides = array<i32>} : memref<128x128xf32, #tpu.memory_space<vmem>>, vector<8x128xf32>,
    %c9_i32_231 = arith.constant 9 : i32
    %c8_i32_232 = arith.constant 8 : i32
    %570 = arith.muli %c9_i32_231, %c8_i32_232 : i32
    %571 = tpu.assume_multiple %570, 8 : i32
    %572 = arith.index_cast %571 : i32 to index
    %c0_233 = arith.constant 0 : index
    %573 = vector.load %arg14[%572, %c0_233] : memref<128x128xf32, #tpu.memory_space<vmem>>, vector<8x128xf32>
    %cst_234 = arith.constant 1.000000e+00 : f32
    %574 = vector.broadcast %cst_234 : f32 to vector<8x128xf32>
    %575 = arith.cmpf ogt, %561, %574 : vector<8x128xf32>
    %576 = arith.extui %575 : vector<8x128xi1> to vector<8x128xi32>
    %577 = arith.sitofp %576 : vector<8x128xi32> to vector<8x128xf32>
    %cst_235 = arith.constant 0.899999976 : f32
    %578 = vector.broadcast %cst_235 : f32 to vector<8x128xf32>
    %579 = arith.mulf %578, %561 : vector<8x128xf32>
    %580 = arith.addf %579, %573 : vector<8x128xf32>
    %cst_236 = arith.constant 1.000000e+00 : f32
    %581 = vector.broadcast %cst_236 : f32 to vector<8x128xf32>
    %582 = arith.mulf %577, %581 : vector<8x128xf32>
    %583 = arith.subf %580, %582 : vector<8x128xf32>
    %cst_237 = arith.constant 1.000000e+00 : f32
    %584 = vector.broadcast %cst_237 : f32 to vector<8x128xf32>
    %585 = arith.cmpf ogt, %583, %584 : vector<8x128xf32>
    %586 = arith.extui %585 : vector<8x128xi1> to vector<8x128xi32>
    %587 = arith.sitofp %586 : vector<8x128xi32> to vector<8x128xf32>
    %588 = arith.index_cast %571 : i32 to index
    %c0_238 = arith.constant 0 : index
    %589 = vector.load %arg9[%588, %c0_238] : memref<128x128xf32, #tpu.memory_space<vmem>>, vector<8x128xf32>
    tpu.vector_store %arg9[%588, %c0_238], %587 {strides = array<i32>} : memref<128x128xf32, #tpu.memory_space<vmem>>, vector<8x128xf32>,
    %590 = arith.index_cast %571 : i32 to index
    %c0_239 = arith.constant 0 : index
    %591 = vector.load %arg10[%590, %c0_239] : memref<128x128xf32, #tpu.memory_space<vmem>>, vector<8x128xf32>
    tpu.vector_store %arg10[%590, %c0_239], %583 {strides = array<i32>} : memref<128x128xf32, #tpu.memory_space<vmem>>, vector<8x128xf32>,
    %c10_i32_240 = arith.constant 10 : i32
    %c8_i32_241 = arith.constant 8 : i32
    %592 = arith.muli %c10_i32_240, %c8_i32_241 : i32
    %593 = tpu.assume_multiple %592, 8 : i32
    %594 = arith.index_cast %593 : i32 to index
    %c0_242 = arith.constant 0 : index
    %595 = vector.load %arg14[%594, %c0_242] : memref<128x128xf32, #tpu.memory_space<vmem>>, vector<8x128xf32>
    %cst_243 = arith.constant 1.000000e+00 : f32
    %596 = vector.broadcast %cst_243 : f32 to vector<8x128xf32>
    %597 = arith.cmpf ogt, %583, %596 : vector<8x128xf32>
    %598 = arith.extui %597 : vector<8x128xi1> to vector<8x128xi32>
    %599 = arith.sitofp %598 : vector<8x128xi32> to vector<8x128xf32>
    %cst_244 = arith.constant 0.899999976 : f32
    %600 = vector.broadcast %cst_244 : f32 to vector<8x128xf32>
    %601 = arith.mulf %600, %583 : vector<8x128xf32>
    %602 = arith.addf %601, %595 : vector<8x128xf32>
    %cst_245 = arith.constant 1.000000e+00 : f32
    %603 = vector.broadcast %cst_245 : f32 to vector<8x128xf32>
    %604 = arith.mulf %599, %603 : vector<8x128xf32>
    %605 = arith.subf %602, %604 : vector<8x128xf32>
    %cst_246 = arith.constant 1.000000e+00 : f32
    %606 = vector.broadcast %cst_246 : f32 to vector<8x128xf32>
    %607 = arith.cmpf ogt, %605, %606 : vector<8x128xf32>
    %608 = arith.extui %607 : vector<8x128xi1> to vector<8x128xi32>
    %609 = arith.sitofp %608 : vector<8x128xi32> to vector<8x128xf32>
    %610 = arith.index_cast %593 : i32 to index
    %c0_247 = arith.constant 0 : index
    %611 = vector.load %arg9[%610, %c0_247] : memref<128x128xf32, #tpu.memory_space<vmem>>, vector<8x128xf32>
    tpu.vector_store %arg9[%610, %c0_247], %609 {strides = array<i32>} : memref<128x128xf32, #tpu.memory_space<vmem>>, vector<8x128xf32>,
    %612 = arith.index_cast %593 : i32 to index
    %c0_248 = arith.constant 0 : index
    %613 = vector.load %arg10[%612, %c0_248] : memref<128x128xf32, #tpu.memory_space<vmem>>, vector<8x128xf32>
    tpu.vector_store %arg10[%612, %c0_248], %605 {strides = array<i32>} : memref<128x128xf32, #tpu.memory_space<vmem>>, vector<8x128xf32>,
    %c11_i32_249 = arith.constant 11 : i32
    %c8_i32_250 = arith.constant 8 : i32
    %614 = arith.muli %c11_i32_249, %c8_i32_250 : i32
    %615 = tpu.assume_multiple %614, 8 : i32
    %616 = arith.index_cast %615 : i32 to index
    %c0_251 = arith.constant 0 : index
    %617 = vector.load %arg14[%616, %c0_251] : memref<128x128xf32, #tpu.memory_space<vmem>>, vector<8x128xf32>
    %cst_252 = arith.constant 1.000000e+00 : f32
    %618 = vector.broadcast %cst_252 : f32 to vector<8x128xf32>
    %619 = arith.cmpf ogt, %605, %618 : vector<8x128xf32>
    %620 = arith.extui %619 : vector<8x128xi1> to vector<8x128xi32>
    %621 = arith.sitofp %620 : vector<8x128xi32> to vector<8x128xf32>
    %cst_253 = arith.constant 0.899999976 : f32
    %622 = vector.broadcast %cst_253 : f32 to vector<8x128xf32>
    %623 = arith.mulf %622, %605 : vector<8x128xf32>
    %624 = arith.addf %623, %617 : vector<8x128xf32>
    %cst_254 = arith.constant 1.000000e+00 : f32
    %625 = vector.broadcast %cst_254 : f32 to vector<8x128xf32>
    %626 = arith.mulf %621, %625 : vector<8x128xf32>
    %627 = arith.subf %624, %626 : vector<8x128xf32>
    %cst_255 = arith.constant 1.000000e+00 : f32
    %628 = vector.broadcast %cst_255 : f32 to vector<8x128xf32>
    %629 = arith.cmpf ogt, %627, %628 : vector<8x128xf32>
    %630 = arith.extui %629 : vector<8x128xi1> to vector<8x128xi32>
    %631 = arith.sitofp %630 : vector<8x128xi32> to vector<8x128xf32>
    %632 = arith.index_cast %615 : i32 to index
    %c0_256 = arith.constant 0 : index
    %633 = vector.load %arg9[%632, %c0_256] : memref<128x128xf32, #tpu.memory_space<vmem>>, vector<8x128xf32>
    tpu.vector_store %arg9[%632, %c0_256], %631 {strides = array<i32>} : memref<128x128xf32, #tpu.memory_space<vmem>>, vector<8x128xf32>,
    %634 = arith.index_cast %615 : i32 to index
    %c0_257 = arith.constant 0 : index
    %635 = vector.load %arg10[%634, %c0_257] : memref<128x128xf32, #tpu.memory_space<vmem>>, vector<8x128xf32>
    tpu.vector_store %arg10[%634, %c0_257], %627 {strides = array<i32>} : memref<128x128xf32, #tpu.memory_space<vmem>>, vector<8x128xf32>,
    %c12_i32_258 = arith.constant 12 : i32
    %c8_i32_259 = arith.constant 8 : i32
    %636 = arith.muli %c12_i32_258, %c8_i32_259 : i32
    %637 = tpu.assume_multiple %636, 8 : i32
    %638 = arith.index_cast %637 : i32 to index
    %c0_260 = arith.constant 0 : index
    %639 = vector.load %arg14[%638, %c0_260] : memref<128x128xf32, #tpu.memory_space<vmem>>, vector<8x128xf32>
    %cst_261 = arith.constant 1.000000e+00 : f32
    %640 = vector.broadcast %cst_261 : f32 to vector<8x128xf32>
    %641 = arith.cmpf ogt, %627, %640 : vector<8x128xf32>
    %642 = arith.extui %641 : vector<8x128xi1> to vector<8x128xi32>
    %643 = arith.sitofp %642 : vector<8x128xi32> to vector<8x128xf32>
    %cst_262 = arith.constant 0.899999976 : f32
    %644 = vector.broadcast %cst_262 : f32 to vector<8x128xf32>
    %645 = arith.mulf %644, %627 : vector<8x128xf32>
    %646 = arith.addf %645, %639 : vector<8x128xf32>
    %cst_263 = arith.constant 1.000000e+00 : f32
    %647 = vector.broadcast %cst_263 : f32 to vector<8x128xf32>
    %648 = arith.mulf %643, %647 : vector<8x128xf32>
    %649 = arith.subf %646, %648 : vector<8x128xf32>
    %cst_264 = arith.constant 1.000000e+00 : f32
    %650 = vector.broadcast %cst_264 : f32 to vector<8x128xf32>
    %651 = arith.cmpf ogt, %649, %650 : vector<8x128xf32>
    %652 = arith.extui %651 : vector<8x128xi1> to vector<8x128xi32>
    %653 = arith.sitofp %652 : vector<8x128xi32> to vector<8x128xf32>
    %654 = arith.index_cast %637 : i32 to index
    %c0_265 = arith.constant 0 : index
    %655 = vector.load %arg9[%654, %c0_265] : memref<128x128xf32, #tpu.memory_space<vmem>>, vector<8x128xf32>
    tpu.vector_store %arg9[%654, %c0_265], %653 {strides = array<i32>} : memref<128x128xf32, #tpu.memory_space<vmem>>, vector<8x128xf32>,
    %656 = arith.index_cast %637 : i32 to index
    %c0_266 = arith.constant 0 : index
    %657 = vector.load %arg10[%656, %c0_266] : memref<128x128xf32, #tpu.memory_space<vmem>>, vector<8x128xf32>
    tpu.vector_store %arg10[%656, %c0_266], %649 {strides = array<i32>} : memref<128x128xf32, #tpu.memory_space<vmem>>, vector<8x128xf32>,
    %c13_i32_267 = arith.constant 13 : i32
    %c8_i32_268 = arith.constant 8 : i32
    %658 = arith.muli %c13_i32_267, %c8_i32_268 : i32
    %659 = tpu.assume_multiple %658, 8 : i32
    %660 = arith.index_cast %659 : i32 to index
    %c0_269 = arith.constant 0 : index
    %661 = vector.load %arg14[%660, %c0_269] : memref<128x128xf32, #tpu.memory_space<vmem>>, vector<8x128xf32>
    %cst_270 = arith.constant 1.000000e+00 : f32
    %662 = vector.broadcast %cst_270 : f32 to vector<8x128xf32>
    %663 = arith.cmpf ogt, %649, %662 : vector<8x128xf32>
    %664 = arith.extui %663 : vector<8x128xi1> to vector<8x128xi32>
    %665 = arith.sitofp %664 : vector<8x128xi32> to vector<8x128xf32>
    %cst_271 = arith.constant 0.899999976 : f32
    %666 = vector.broadcast %cst_271 : f32 to vector<8x128xf32>
    %667 = arith.mulf %666, %649 : vector<8x128xf32>
    %668 = arith.addf %667, %661 : vector<8x128xf32>
    %cst_272 = arith.constant 1.000000e+00 : f32
    %669 = vector.broadcast %cst_272 : f32 to vector<8x128xf32>
    %670 = arith.mulf %665, %669 : vector<8x128xf32>
    %671 = arith.subf %668, %670 : vector<8x128xf32>
    %cst_273 = arith.constant 1.000000e+00 : f32
    %672 = vector.broadcast %cst_273 : f32 to vector<8x128xf32>
    %673 = arith.cmpf ogt, %671, %672 : vector<8x128xf32>
    %674 = arith.extui %673 : vector<8x128xi1> to vector<8x128xi32>
    %675 = arith.sitofp %674 : vector<8x128xi32> to vector<8x128xf32>
    %676 = arith.index_cast %659 : i32 to index
    %c0_274 = arith.constant 0 : index
    %677 = vector.load %arg9[%676, %c0_274] : memref<128x128xf32, #tpu.memory_space<vmem>>, vector<8x128xf32>
    tpu.vector_store %arg9[%676, %c0_274], %675 {strides = array<i32>} : memref<128x128xf32, #tpu.memory_space<vmem>>, vector<8x128xf32>,
    %678 = arith.index_cast %659 : i32 to index
    %c0_275 = arith.constant 0 : index
    %679 = vector.load %arg10[%678, %c0_275] : memref<128x128xf32, #tpu.memory_space<vmem>>, vector<8x128xf32>
    tpu.vector_store %arg10[%678, %c0_275], %671 {strides = array<i32>} : memref<128x128xf32, #tpu.memory_space<vmem>>, vector<8x128xf32>,
    %c14_i32_276 = arith.constant 14 : i32
    %c8_i32_277 = arith.constant 8 : i32
    %680 = arith.muli %c14_i32_276, %c8_i32_277 : i32
    %681 = tpu.assume_multiple %680, 8 : i32
    %682 = arith.index_cast %681 : i32 to index
    %c0_278 = arith.constant 0 : index
    %683 = vector.load %arg14[%682, %c0_278] : memref<128x128xf32, #tpu.memory_space<vmem>>, vector<8x128xf32>
    %cst_279 = arith.constant 1.000000e+00 : f32
    %684 = vector.broadcast %cst_279 : f32 to vector<8x128xf32>
    %685 = arith.cmpf ogt, %671, %684 : vector<8x128xf32>
    %686 = arith.extui %685 : vector<8x128xi1> to vector<8x128xi32>
    %687 = arith.sitofp %686 : vector<8x128xi32> to vector<8x128xf32>
    %cst_280 = arith.constant 0.899999976 : f32
    %688 = vector.broadcast %cst_280 : f32 to vector<8x128xf32>
    %689 = arith.mulf %688, %671 : vector<8x128xf32>
    %690 = arith.addf %689, %683 : vector<8x128xf32>
    %cst_281 = arith.constant 1.000000e+00 : f32
    %691 = vector.broadcast %cst_281 : f32 to vector<8x128xf32>
    %692 = arith.mulf %687, %691 : vector<8x128xf32>
    %693 = arith.subf %690, %692 : vector<8x128xf32>
    %cst_282 = arith.constant 1.000000e+00 : f32
    %694 = vector.broadcast %cst_282 : f32 to vector<8x128xf32>
    %695 = arith.cmpf ogt, %693, %694 : vector<8x128xf32>
    %696 = arith.extui %695 : vector<8x128xi1> to vector<8x128xi32>
    %697 = arith.sitofp %696 : vector<8x128xi32> to vector<8x128xf32>
    %698 = arith.index_cast %681 : i32 to index
    %c0_283 = arith.constant 0 : index
    %699 = vector.load %arg9[%698, %c0_283] : memref<128x128xf32, #tpu.memory_space<vmem>>, vector<8x128xf32>
    tpu.vector_store %arg9[%698, %c0_283], %697 {strides = array<i32>} : memref<128x128xf32, #tpu.memory_space<vmem>>, vector<8x128xf32>,
    %700 = arith.index_cast %681 : i32 to index
    %c0_284 = arith.constant 0 : index
    %701 = vector.load %arg10[%700, %c0_284] : memref<128x128xf32, #tpu.memory_space<vmem>>, vector<8x128xf32>
    tpu.vector_store %arg10[%700, %c0_284], %693 {strides = array<i32>} : memref<128x128xf32, #tpu.memory_space<vmem>>, vector<8x128xf32>,
    %c15_i32_285 = arith.constant 15 : i32
    %c8_i32_286 = arith.constant 8 : i32
    %702 = arith.muli %c15_i32_285, %c8_i32_286 : i32
    %703 = tpu.assume_multiple %702, 8 : i32
    %704 = arith.index_cast %703 : i32 to index
    %c0_287 = arith.constant 0 : index
    %705 = vector.load %arg14[%704, %c0_287] : memref<128x128xf32, #tpu.memory_space<vmem>>, vector<8x128xf32>
    %cst_288 = arith.constant 1.000000e+00 : f32
    %706 = vector.broadcast %cst_288 : f32 to vector<8x128xf32>
    %707 = arith.cmpf ogt, %693, %706 : vector<8x128xf32>
    %708 = arith.extui %707 : vector<8x128xi1> to vector<8x128xi32>
    %709 = arith.sitofp %708 : vector<8x128xi32> to vector<8x128xf32>
    %cst_289 = arith.constant 0.899999976 : f32
    %710 = vector.broadcast %cst_289 : f32 to vector<8x128xf32>
    %711 = arith.mulf %710, %693 : vector<8x128xf32>
    %712 = arith.addf %711, %705 : vector<8x128xf32>
    %cst_290 = arith.constant 1.000000e+00 : f32
    %713 = vector.broadcast %cst_290 : f32 to vector<8x128xf32>
    %714 = arith.mulf %709, %713 : vector<8x128xf32>
    %715 = arith.subf %712, %714 : vector<8x128xf32>
    %cst_291 = arith.constant 1.000000e+00 : f32
    %716 = vector.broadcast %cst_291 : f32 to vector<8x128xf32>
    %717 = arith.cmpf ogt, %715, %716 : vector<8x128xf32>
    %718 = arith.extui %717 : vector<8x128xi1> to vector<8x128xi32>
    %719 = arith.sitofp %718 : vector<8x128xi32> to vector<8x128xf32>
    %720 = arith.index_cast %703 : i32 to index
    %c0_292 = arith.constant 0 : index
    %721 = vector.load %arg9[%720, %c0_292] : memref<128x128xf32, #tpu.memory_space<vmem>>, vector<8x128xf32>
    tpu.vector_store %arg9[%720, %c0_292], %719 {strides = array<i32>} : memref<128x128xf32, #tpu.memory_space<vmem>>, vector<8x128xf32>,
    %722 = arith.index_cast %703 : i32 to index
    %c0_293 = arith.constant 0 : index
    %723 = vector.load %arg10[%722, %c0_293] : memref<128x128xf32, #tpu.memory_space<vmem>>, vector<8x128xf32>
    tpu.vector_store %arg10[%722, %c0_293], %715 {strides = array<i32>} : memref<128x128xf32, #tpu.memory_space<vmem>>, vector<8x128xf32>,
    %c16_i32_294 = arith.constant 16 : i32
    %c0_295 = arith.constant 0 : index
    %c0_296 = arith.constant 0 : index
    %724 = vector.load %arg12[%c0_295, %c0_296] : memref<8x128xf32, #tpu.memory_space<vmem>>, vector<8x128xf32>
    tpu.vector_store %arg12[%c0_295, %c0_296], %715 {strides = array<i32>} : memref<8x128xf32, #tpu.memory_space<vmem>>, vector<8x128xf32>,
    return
  }
  func.func @transform_0(%arg0: i32) -> (i32, i32) {
    %c0_i32 = arith.constant 0 : i32
    %c0_i32_0 = arith.constant 0 : i32
    return %arg0, %c0_i32 : i32, i32
  }
  func.func @transform_1(%arg0: i32) -> (i32, i32) {
    %c0_i32 = arith.constant 0 : i32
    %c0_i32_0 = arith.constant 0 : i32
    %c0_i32_1 = arith.constant 0 : i32
    return %c0_i32, %c0_i32_0 : i32, i32
  }
  func.func @transform_2(%arg0: i32) -> (i32, i32) {
    %c0_i32 = arith.constant 0 : i32
    %c0_i32_0 = arith.constant 0 : i32
    %c0_i32_1 = arith.constant 0 : i32
    return %c0_i32, %c0_i32_0 : i32, i32
  }
  func.func @transform_3(%arg0: i32) -> (i32, i32) {
    %c0_i32 = arith.constant 0 : i32
    %c0_i32_0 = arith.constant 0 : i32
    %c0_i32_1 = arith.constant 0 : i32
    return %c0_i32, %c0_i32_0 : i32, i32
  }
  func.func @transform_4(%arg0: i32) -> (i32, i32) {
    %c0_i32 = arith.constant 0 : i32
    %c0_i32_0 = arith.constant 0 : i32
    %c0_i32_1 = arith.constant 0 : i32
    return %c0_i32, %c0_i32_0 : i32, i32
  }
  func.func @transform_5(%arg0: i32) -> (i32, i32) {
    %c0_i32 = arith.constant 0 : i32
    %c0_i32_0 = arith.constant 0 : i32
    %c0_i32_1 = arith.constant 0 : i32
    return %c0_i32, %c0_i32_0 : i32, i32
  }
  func.func @transform_6(%arg0: i32) -> (i32, i32) {
    %c0_i32 = arith.constant 0 : i32
    %c0_i32_0 = arith.constant 0 : i32
    %c0_i32_1 = arith.constant 0 : i32
    return %c0_i32, %c0_i32_0 : i32, i32
  }
  func.func @transform_7(%arg0: i32) -> (i32, i32) {
    %c0_i32 = arith.constant 0 : i32
    %c0_i32_0 = arith.constant 0 : i32
    %c0_i32_1 = arith.constant 0 : i32
    return %c0_i32, %c0_i32_0 : i32, i32
  }
  func.func @transform_8(%arg0: i32) -> (i32, i32) {
    %c0_i32 = arith.constant 0 : i32
    %c0_i32_0 = arith.constant 0 : i32
    return %arg0, %c0_i32 : i32, i32
  }
  func.func @transform_9(%arg0: i32) -> (i32, i32) {
    %c0_i32 = arith.constant 0 : i32
    %c0_i32_0 = arith.constant 0 : i32
    return %arg0, %c0_i32 : i32, i32
  }
}

</mosaic_0001>

<llo_original>
// kernel: tpu_custom_call.1
$region0: #{tpu_custom_call.1}
  #allocation0 [shape = 'u32[]', space=smem, size = 0x4, offset = 0x4, fixed_abs, tag = 'smem constant byte address 0x4 - core index']
  #allocation1 [shape = 'u32[144,128]{1,0:T(1,128)}', space=vmem, size = 0x12000, scoped, tag = 'internal scratch']
  #allocation2 [shape = 'f32[8,128]{1,0:T(8,128)}', space=vmem, size = 0x1000, scoped, tag = 'scratch operand']
  #allocation3 [shape = 'f32[8,128]{1,0:T(8,128)}', space=vmem, size = 0x1000, scoped, tag = 'scratch operand']
  #allocation4 [shape = 'f32[128,128]{1,0:T(8,128)}', space=vmem, size = 0x10000, scoped, tag = 'scratch operand']
  #allocation5 [shape = 'f32[128,128]{1,0:T(8,128)}', space=vmem, size = 0x10000, scoped, tag = 'scratch operand']
  %s0 = inlined_call_operand.vmem [shape: f32[128,16], index: 0, kind: input, shape index: {}]
  %s1 = inlined_call_operand.vmem [shape: f32[16,128], index: 1, kind: input, shape index: {}]
  %s2 = inlined_call_operand.vmem [shape: f32[1,128], index: 2, kind: input, shape index: {}]
  %s3 = inlined_call_operand.vmem [shape: f32[1,128], index: 3, kind: input, shape index: {}]
  %s4 = inlined_call_operand.hbm [shape: bf16[128,128], index: 4, kind: input, shape index: {}]
  %s5 = inlined_call_operand.vmem [shape: f32[1,128], index: 5, kind: input, shape index: {}]
  %s6 = inlined_call_operand.vmem [shape: f32[1,128], index: 6, kind: input, shape index: {}]
  %s7 = inlined_call_operand.vmem [shape: f32[128,128], index: 7, kind: input, shape index: {}]
  %s8 = inlined_call_operand.hbm [shape: f32[128,128], index: 8, kind: output, shape index: {0}]
  %s9 = inlined_call_operand.hbm [shape: f32[128,128], index: 9, kind: output, shape index: {1}]
  %10 = xla_tuple %s8, %s9
  %s11 = sld [smem:[#allocation0]]
  $region58: #{tpu_custom_call.1} parent=0
    _
  %s13 = ssub.s32 1, %s11
  %s14 = scalar_select 0, %s13, %s11
  $region1: #{tpu_custom_call.1} parent=0
    #allocation6 [shape = 'u8[32768]{0}', space=vmem, size = 0x8000, scoped, tag = 'input window, operand 4, single buffered']
    #allocation7 [shape = 's32[1]{0}', space=sflag, size = 0x4, scoped, tag = 'scoped memory for tpu_custom_call.1']
    #allocation8 [shape = 's32[1]{0}', space=sflag, size = 0x4, scoped, tag = 'scoped memory for tpu_custom_call.1']
    #allocation9 [shape = 'u8[65536]{0}', space=vmem, size = 0x10000, scoped, tag = 'output window, operand 0, single buffered']
    #allocation10 [shape = 'u8[65536]{0}', space=vmem, size = 0x10000, scoped, tag = 'output window, operand 1, single buffered']
    #allocation11 [shape = 's32[1]{0}', space=sflag, size = 0x4, scoped, tag = 'scoped memory for tpu_custom_call.1']
    %15 = vsyncpa [#allocation7], 0
    %16 = vsyncpa [#allocation8], 0
    %17 = vsyncpa [#allocation11], 0
    // Predicated region
    $region2: #{tpu_custom_call.1} parent=1 // pred_check
      _
    $region3: #{tpu_custom_call.1} parent=1 // pred_check_branch
      %19 = sbr.rel (0) target = $region5
    $region4: #{tpu_custom_call.1} parent=1 // pred_region
      _
    $region5: #{tpu_custom_call.1} parent=1 // pred_fallthru
      _
    // Predicated region
    $region6: #{tpu_custom_call.1} parent=1 // pred_check
      _
    $region7: #{tpu_custom_call.1} parent=1 // pred_check_branch
      %21 = sbr.rel (0) target = $region9
    $region8: #{tpu_custom_call.1} parent=1 // pred_region
      _
    $region9: #{tpu_custom_call.1} parent=1 // pred_fallthru
      _
    // Predicated region
    $region10: #{tpu_custom_call.1} parent=1 // pred_check
      _
    $region11: #{tpu_custom_call.1} parent=1 // pred_check_branch
      %23 = sbr.rel (0) target = $region13
    $region12: #{tpu_custom_call.1} parent=1 // pred_region
      _
    $region13: #{tpu_custom_call.1} parent=1 // pred_fallthru
      _
    // Predicated region
    $region14: #{tpu_custom_call.1} parent=1 // pred_check
      _
    $region15: #{tpu_custom_call.1} parent=1 // pred_check_branch
      %25 = sbr.rel (0) target = $region17
    $region16: #{tpu_custom_call.1} parent=1 // pred_region
      _
    $region17: #{tpu_custom_call.1} parent=1 // pred_fallthru
      _
    // Predicated region
    $region18: #{tpu_custom_call.1} parent=1 // pred_check
      _
    $region19: #{tpu_custom_call.1} parent=1 // pred_check_branch
      %27 = sbr.rel (0) target = $region21
    $region20: #{tpu_custom_call.1} parent=1 // pred_region
      %s29 = ssub.s32 1024, 1024
      %30 = vsyncadd [#allocation7], %s29
      %s31 = sshll.u32 [#allocation6], 4
      %s32 = int_to_ptr.vmem [resolvable:$true] %s31
      %37 = dma.hbm_to_vmem [thread:$0]  %s4, 1024, %s32, [#allocation7], 64, 64, 4
    $region21: #{tpu_custom_call.1} parent=1 // pred_fallthru
      _
    // Predicated region
    $region22: #{tpu_custom_call.1} parent=1 // pred_check
      _
    $region23: #{tpu_custom_call.1} parent=1 // pred_check_branch
      %39 = sbr.rel (0) target = $region25
    $region24: #{tpu_custom_call.1} parent=1 // pred_region
      _
    $region25: #{tpu_custom_call.1} parent=1 // pred_fallthru
      _
    // Predicated region
    $region26: #{tpu_custom_call.1} parent=1 // pred_check
      _
    $region27: #{tpu_custom_call.1} parent=1 // pred_check_branch
      %41 = sbr.rel (0) target = $region29
    $region28: #{tpu_custom_call.1} parent=1 // pred_region
      _
    $region29: #{tpu_custom_call.1} parent=1 // pred_fallthru
      _
    // Predicated region
    $region30: #{tpu_custom_call.1} parent=1 // pred_check
      _
    $region31: #{tpu_custom_call.1} parent=1 // pred_check_branch
      %43 = sbr.rel (0) target = $region33
    $region32: #{tpu_custom_call.1} parent=1 // pred_region
      _
    $region33: #{tpu_custom_call.1} parent=1 // pred_fallthru
      _
    // Predicated region
    $region34: #{tpu_custom_call.1} parent=1 // pred_check
      _
    $region35: #{tpu_custom_call.1} parent=1 // pred_check_branch
      %45 = sbr.rel (0) target = $region37
    $region36: #{tpu_custom_call.1} parent=1 // pred_region
      %46 = dma.done [#allocation7], 1024
    $region37: #{tpu_custom_call.1} parent=1 // pred_fallthru
      _
    %p48 = scmp.eq.s32.totalorder 0, 0
    // Predicated region
    $region38: #{tpu_custom_call.1} parent=1 // pred_check
      %p49 = pneg %p48
    $region39: #{tpu_custom_call.1} parent=1 // pred_check_branch
      %51 = sbr.rel (%p49) target = $region41
    $region40: #{tpu_custom_call.1} parent=1 // pred_region
      %52 = vst [vmem:[#allocation2] sm:$0xff] 0.0
      %53 = vst [vmem:[#allocation3] sm:$0xff] 0.0
    $region41: #{tpu_custom_call.1} parent=1 // pred_fallthru
      _
    %v54 = vld [vmem:[%s7] sm:$0xff]
    %v55 = vld [vmem:[%s7 + $0x8] sm:$0xff]
    %v56 = vld [vmem:[%s7 + $0x10] sm:$0xff]
    %v57 = vld [vmem:[%s7 + $0x18] sm:$0xff]
    %v58 = vld [vmem:[%s7 + $0x20] sm:$0xff]
    %v59 = vld [vmem:[%s7 + $0x28] sm:$0xff]
    %v60 = vld [vmem:[%s7 + $0x30] sm:$0xff]
    %v61 = vld [vmem:[%s7 + $0x38] sm:$0xff]
    %v62 = vld [vmem:[%s7 + $0x40] sm:$0xff]
    %v63 = vld [vmem:[%s7 + $0x48] sm:$0xff]
    %v64 = vld [vmem:[%s7 + $0x50] sm:$0xff]
    %v65 = vld [vmem:[%s7 + $0x58] sm:$0xff]
    %v66 = vld [vmem:[%s7 + $0x60] sm:$0xff]
    %v67 = vld [vmem:[%s7 + $0x68] sm:$0xff]
    %v68 = vld [vmem:[%s7 + $0x70] sm:$0xff]
    %v69 = vld [vmem:[%s7 + $0x78] sm:$0xff]
    %v70 = vld [vmem:[%s1] sm:$0xff]
    %v71 = vld [vmem:[%s1 + $0x8] sm:$0xff]
    %v72 = vld [vmem:[%s0] sm:$0xff]
    %v73 = vld [vmem:[%s0 + $0x8] sm:$0xff]
    %v74 = vld [vmem:[%s0 + $0x10] sm:$0xff]
    %v75 = vld [vmem:[%s0 + $0x18] sm:$0xff]
    %v76 = vld [vmem:[%s0 + $0x20] sm:$0xff]
    %v77 = vld [vmem:[%s0 + $0x28] sm:$0xff]
    %v78 = vld [vmem:[%s0 + $0x30] sm:$0xff]
    %v79 = vld [vmem:[%s0 + $0x38] sm:$0xff]
    %v80 = vld [vmem:[%s0 + $0x40] sm:$0xff]
    %v81 = vld [vmem:[%s0 + $0x48] sm:$0xff]
    %v82 = vld [vmem:[%s0 + $0x50] sm:$0xff]
    %v83 = vld [vmem:[%s0 + $0x58] sm:$0xff]
    %v84 = vld [vmem:[%s0 + $0x60] sm:$0xff]
    %v85 = vld [vmem:[%s0 + $0x68] sm:$0xff]
    %v86 = vld [vmem:[%s0 + $0x70] sm:$0xff]
    %v87 = vld [vmem:[%s0 + $0x78] sm:$0xff]
    %vm88 = vcmask 130048
    %v90 = vsel %vm88, %v72, 0
    %v93 = vsel %vm88, %v73, 0
    %v96 = vsel %vm88, %v74, 0
    %v99 = vsel %vm88, %v75, 0
    %v102 = vsel %vm88, %v76, 0
    %v105 = vsel %vm88, %v77, 0
    %v108 = vsel %vm88, %v78, 0
    %v111 = vsel %vm88, %v79, 0
    %v114 = vsel %vm88, %v80, 0
    %v117 = vsel %vm88, %v81, 0
    %v120 = vsel %vm88, %v82, 0
    %v123 = vsel %vm88, %v83, 0
    %v126 = vsel %vm88, %v84, 0
    %v129 = vsel %vm88, %v85, 0
    %v132 = vsel %vm88, %v86, 0
    %v135 = vsel %vm88, %v87, 0
    %137 = vmatprep.subr.mxu0 0.0
    %138 = vmatpush1.msra.mxu0 %v70
    %139 = vmatprep.subr.mxu0 0.0
    %140 = vmatpush1.msra.mxu0 %v71
    %141 = vmatprep.subr.mxu0 0.0
    %142 = vmatpush1.msra.mxu0 0.0
    %143 = vmatprep.subr.mxu0 0.0
    %144 = vmatpush1.msra.mxu0 0.0
    %145 = vmatprep.subr.mxu0 0.0
    %146 = vmatpush1.msra.mxu0 0.0
    %147 = vmatprep.subr.mxu0 0.0
    %148 = vmatpush1.msra.mxu0 0.0
    %149 = vmatprep.subr.mxu0 0.0
    %150 = vmatpush1.msra.mxu0 0.0
    %151 = vmatprep.subr.mxu0 0.0
    %152 = vmatpush1.msra.mxu0 0.0
    %153 = vmatprep.subr.mxu0 0.0
    %154 = vmatpush1.msra.mxu0 0.0
    %155 = vmatprep.subr.mxu0 0.0
    %156 = vmatpush1.msra.mxu0 0.0
    %157 = vmatprep.subr.mxu0 0.0
    %158 = vmatpush1.msra.mxu0 0.0
    %159 = vmatprep.subr.mxu0 0.0
    %160 = vmatpush1.msra.mxu0 0.0
    %161 = vmatprep.subr.mxu0 0.0
    %162 = vmatpush1.msra.mxu0 0.0
    %163 = vmatprep.subr.mxu0 0.0
    %164 = vmatpush1.msra.mxu0 0.0
    %165 = vmatprep.subr.mxu0 0.0
    %166 = vmatpush1.msra.mxu0 0.0
    %167 = vmatprep.subr.mxu0 0.0
    %168 = vmatpush1.msra.mxu0 0.0
    %169 = vmatprep.subr.mxu0 0.0
    %170 = vmatpush1.msra.mxu0 0.0
    %171 = vmatprep.subr.mxu0 0.0
    %172 = vmatpush1.msra.mxu0 0.0
    %173 = vmatprep.subr.mxu0 0.0
    %174 = vmatpush1.msra.mxu0 0.0
    %175 = vmatprep.subr.mxu0 0.0
    %176 = vmatpush1.msra.mxu0 0.0
    %177 = vmatprep.subr.mxu0 0.0
    %178 = vmatpush1.msra.mxu0 0.0
    %179 = vmatprep.subr.mxu0 0.0
    %180 = vmatpush1.msra.mxu0 0.0
    %181 = vmatprep.subr.mxu0 0.0
    %182 = vmatpush1.msra.mxu0 0.0
    %183 = vmatprep.subr.mxu0 0.0
    %184 = vmatpush1.msra.mxu0 0.0
    %185 = vmatprep.subr.mxu0 0.0
    %186 = vmatpush1.msra.mxu0 0.0
    %187 = vmatprep.subr.mxu0 0.0
    %188 = vmatpush1.msra.mxu0 0.0
    %189 = vmatprep.subr.mxu0 0.0
    %190 = vmatpush1.msra.mxu0 0.0
    %191 = vmatprep.subr.mxu0 0.0
    %192 = vmatpush1.msra.mxu0 0.0
    %193 = vmatprep.subr.mxu0 0.0
    %194 = vmatpush1.msra.mxu0 0.0
    %195 = vmatprep.subr.mxu0 0.0
    %196 = vmatpush1.msra.mxu0 0.0
    %197 = vmatprep.subr.mxu0 0.0
    %198 = vmatpush1.msra.mxu0 0.0
    %199 = vmatprep.subr.mxu0 0.0
    %200 = vmatpush1.msra.mxu0 0.0
    %201 = vmatprep.mubr.f32.mxu0 0.0
    %202 = vmatmul.mubr.f32.gmra.mrb[0].mxu0 %v90
    %v203 = vpop.f32.mrb[0].mxu0
    %v204 = vadd.f32 0.0, %v203
    %v205 = vpop.f32.mrb[0].mxu0
    %206 = vmatprep.mubr.f32.mxu0 0.0
    %207 = vmatmul.mubr.f32.gmra.mrb[0].mxu0 %v93
    %v208 = vpop.f32.mrb[0].mxu0
    %v209 = vadd.f32 0.0, %v208
    %v210 = vpop.f32.mrb[0].mxu0
    %211 = vmatprep.mubr.f32.mxu0 0.0
    %212 = vmatmul.mubr.f32.gmra.mrb[0].mxu0 %v96
    %v213 = vpop.f32.mrb[0].mxu0
    %v214 = vadd.f32 0.0, %v213
    %v215 = vpop.f32.mrb[0].mxu0
    %216 = vmatprep.mubr.f32.mxu0 0.0
    %217 = vmatmul.mubr.f32.gmra.mrb[0].mxu0 %v99
    %v218 = vpop.f32.mrb[0].mxu0
    %v219 = vadd.f32 0.0, %v218
    %v220 = vpop.f32.mrb[0].mxu0
    %221 = vmatprep.mubr.f32.mxu0 0.0
    %222 = vmatmul.mubr.f32.gmra.mrb[0].mxu0 %v102
    %v223 = vpop.f32.mrb[0].mxu0
    %v224 = vadd.f32 0.0, %v223
    %v225 = vpop.f32.mrb[0].mxu0
    %226 = vmatprep.mubr.f32.mxu0 0.0
    %227 = vmatmul.mubr.f32.gmra.mrb[0].mxu0 %v105
    %v228 = vpop.f32.mrb[0].mxu0
    %v229 = vadd.f32 0.0, %v228
    %v230 = vpop.f32.mrb[0].mxu0
    %231 = vmatprep.mubr.f32.mxu0 0.0
    %232 = vmatmul.mubr.f32.gmra.mrb[0].mxu0 %v108
    %v233 = vpop.f32.mrb[0].mxu0
    %v234 = vadd.f32 0.0, %v233
    %v235 = vpop.f32.mrb[0].mxu0
    %236 = vmatprep.mubr.f32.mxu0 0.0
    %237 = vmatmul.mubr.f32.gmra.mrb[0].mxu0 %v111
    %v238 = vpop.f32.mrb[0].mxu0
    %v239 = vadd.f32 0.0, %v238
    %v240 = vpop.f32.mrb[0].mxu0
    %241 = vmatprep.mubr.f32.mxu0 0.0
    %242 = vmatmul.mubr.f32.gmra.mrb[0].mxu0 %v114
    %v243 = vpop.f32.mrb[0].mxu0
    %v244 = vadd.f32 0.0, %v243
    %v245 = vpop.f32.mrb[0].mxu0
    %246 = vmatprep.mubr.f32.mxu0 0.0
    %247 = vmatmul.mubr.f32.gmra.mrb[0].mxu0 %v117
    %v248 = vpop.f32.mrb[0].mxu0
    %v249 = vadd.f32 0.0, %v248
    %v250 = vpop.f32.mrb[0].mxu0
    %251 = vmatprep.mubr.f32.mxu0 0.0
    %252 = vmatmul.mubr.f32.gmra.mrb[0].mxu0 %v120
    %v253 = vpop.f32.mrb[0].mxu0
    %v254 = vadd.f32 0.0, %v253
    %v255 = vpop.f32.mrb[0].mxu0
    %256 = vmatprep.mubr.f32.mxu0 0.0
    %257 = vmatmul.mubr.f32.gmra.mrb[0].mxu0 %v123
    %v258 = vpop.f32.mrb[0].mxu0
    %v259 = vadd.f32 0.0, %v258
    %v260 = vpop.f32.mrb[0].mxu0
    %261 = vmatprep.mubr.f32.mxu0 0.0
    %262 = vmatmul.mubr.f32.gmra.mrb[0].mxu0 %v126
    %v263 = vpop.f32.mrb[0].mxu0
    %v264 = vadd.f32 0.0, %v263
    %v265 = vpop.f32.mrb[0].mxu0
    %266 = vmatprep.mubr.f32.mxu0 0.0
    %267 = vmatmul.mubr.f32.gmra.mrb[0].mxu0 %v129
    %v268 = vpop.f32.mrb[0].mxu0
    %v269 = vadd.f32 0.0, %v268
    %v270 = vpop.f32.mrb[0].mxu0
    %271 = vmatprep.mubr.f32.mxu0 0.0
    %272 = vmatmul.mubr.f32.gmra.mrb[0].mxu0 %v132
    %v273 = vpop.f32.mrb[0].mxu0
    %v274 = vadd.f32 0.0, %v273
    %v275 = vpop.f32.mrb[0].mxu0
    %276 = vmatprep.mubr.f32.mxu0 0.0
    %277 = vmatmul.mubr.f32.gmra.mrb[0].mxu0 %v135
    %v278 = vpop.f32.mrb[0].mxu0
    %v279 = vadd.f32 0.0, %v278
    %v280 = vpop.f32.mrb[0].mxu0
    %281 = vdwg.mxu0
    %282 = vmatprep.subr.mxu0 0.0
    %283 = vmatpush1.msra.mxu0 %v204
    %284 = vmatprep.subr.mxu0 0.0
    %285 = vmatpush1.msra.mxu0 %v209
    %286 = vmatprep.subr.mxu0 0.0
    %287 = vmatpush1.msra.mxu0 %v214
    %288 = vmatprep.subr.mxu0 0.0
    %289 = vmatpush1.msra.mxu0 %v219
    %290 = vmatprep.subr.mxu0 0.0
    %291 = vmatpush1.msra.mxu0 %v224
    %292 = vmatprep.subr.mxu0 0.0
    %293 = vmatpush1.msra.mxu0 %v229
    %294 = vmatprep.subr.mxu0 0.0
    %295 = vmatpush1.msra.mxu0 %v234
    %296 = vmatprep.subr.mxu0 0.0
    %297 = vmatpush1.msra.mxu0 %v239
    %298 = vmatprep.subr.mxu0 0.0
    %299 = vmatpush1.msra.mxu0 %v244
    %300 = vmatprep.subr.mxu0 0.0
    %301 = vmatpush1.msra.mxu0 %v249
    %302 = vmatprep.subr.mxu0 0.0
    %303 = vmatpush1.msra.mxu0 %v254
    %304 = vmatprep.subr.mxu0 0.0
    %305 = vmatpush1.msra.mxu0 %v259
    %306 = vmatprep.subr.mxu0 0.0
    %307 = vmatpush1.msra.mxu0 %v264
    %308 = vmatprep.subr.mxu0 0.0
    %309 = vmatpush1.msra.mxu0 %v269
    %310 = vmatprep.subr.mxu0 0.0
    %311 = vmatpush1.msra.mxu0 %v274
    %312 = vmatprep.subr.mxu0 0.0
    %313 = vmatpush1.msra.mxu0 %v279
    %314 = vmatprep.subr.mxu0 0.0
    %315 = vmatpush1.msra.mxu0 0.0
    %316 = vmatprep.subr.mxu0 0.0
    %317 = vmatpush1.msra.mxu0 0.0
    %318 = vmatprep.subr.mxu0 0.0
    %319 = vmatpush1.msra.mxu0 0.0
    %320 = vmatprep.subr.mxu0 0.0
    %321 = vmatpush1.msra.mxu0 0.0
    %322 = vmatprep.subr.mxu0 0.0
    %323 = vmatpush1.msra.mxu0 0.0
    %324 = vmatprep.subr.mxu0 0.0
    %325 = vmatpush1.msra.mxu0 0.0
    %326 = vmatprep.subr.mxu0 0.0
    %327 = vmatpush1.msra.mxu0 0.0
    %328 = vmatprep.subr.mxu0 0.0
    %329 = vmatpush1.msra.mxu0 0.0
    %330 = vmatprep.subr.mxu0 0.0
    %331 = vmatpush1.msra.mxu0 0.0
    %332 = vmatprep.subr.mxu0 0.0
    %333 = vmatpush1.msra.mxu0 0.0
    %334 = vmatprep.subr.mxu0 0.0
    %335 = vmatpush1.msra.mxu0 0.0
    %336 = vmatprep.subr.mxu0 0.0
    %337 = vmatpush1.msra.mxu0 0.0
    %338 = vmatprep.subr.mxu0 0.0
    %339 = vmatpush1.msra.mxu0 0.0
    %340 = vmatprep.subr.mxu0 0.0
    %341 = vmatpush1.msra.mxu0 0.0
    %342 = vmatprep.subr.mxu0 0.0
    %343 = vmatpush1.msra.mxu0 0.0
    %344 = vmatprep.subr.mxu0 0.0
    %345 = vmatpush1.msra.mxu0 0.0
    %346 = vmatprep.mubr.f32.mxu0 0.0
    %347 = vmatmul.mubr.f32.gmra.mrb[0].mxu0 %v54
    %v348 = vpop.f32.mrb[0].mxu0
    %v349 = vadd.f32 0.0, %v348
    %v350 = vpop.f32.mrb[0].mxu0
    %351 = vmatprep.mubr.f32.mxu0 0.0
    %352 = vmatmul.mubr.f32.gmra.mrb[0].mxu0 %v55
    %v353 = vpop.f32.mrb[0].mxu0
    %v354 = vadd.f32 0.0, %v353
    %v355 = vpop.f32.mrb[0].mxu0
    %356 = vmatprep.mubr.f32.mxu0 0.0
    %357 = vmatmul.mubr.f32.gmra.mrb[0].mxu0 %v56
    %v358 = vpop.f32.mrb[0].mxu0
    %v359 = vadd.f32 0.0, %v358
    %v360 = vpop.f32.mrb[0].mxu0
    %361 = vmatprep.mubr.f32.mxu0 0.0
    %362 = vmatmul.mubr.f32.gmra.mrb[0].mxu0 %v57
    %v363 = vpop.f32.mrb[0].mxu0
    %v364 = vadd.f32 0.0, %v363
    %v365 = vpop.f32.mrb[0].mxu0
    %366 = vmatprep.mubr.f32.mxu0 0.0
    %367 = vmatmul.mubr.f32.gmra.mrb[0].mxu0 %v58
    %v368 = vpop.f32.mrb[0].mxu0
    %v369 = vadd.f32 0.0, %v368
    %v370 = vpop.f32.mrb[0].mxu0
    %371 = vmatprep.mubr.f32.mxu0 0.0
    %372 = vmatmul.mubr.f32.gmra.mrb[0].mxu0 %v59
    %v373 = vpop.f32.mrb[0].mxu0
    %v374 = vadd.f32 0.0, %v373
    %v375 = vpop.f32.mrb[0].mxu0
    %376 = vmatprep.mubr.f32.mxu0 0.0
    %377 = vmatmul.mubr.f32.gmra.mrb[0].mxu0 %v60
    %v378 = vpop.f32.mrb[0].mxu0
    %v379 = vadd.f32 0.0, %v378
    %v380 = vpop.f32.mrb[0].mxu0
    %381 = vmatprep.mubr.f32.mxu0 0.0
    %382 = vmatmul.mubr.f32.gmra.mrb[0].mxu0 %v61
    %v383 = vpop.f32.mrb[0].mxu0
    %v384 = vadd.f32 0.0, %v383
    %v385 = vpop.f32.mrb[0].mxu0
    %386 = vmatprep.mubr.f32.mxu0 0.0
    %387 = vmatmul.mubr.f32.gmra.mrb[0].mxu0 %v62
    %v388 = vpop.f32.mrb[0].mxu0
    %v389 = vadd.f32 0.0, %v388
    %v390 = vpop.f32.mrb[0].mxu0
    %391 = vmatprep.mubr.f32.mxu0 0.0
    %392 = vmatmul.mubr.f32.gmra.mrb[0].mxu0 %v63
    %v393 = vpop.f32.mrb[0].mxu0
    %v394 = vadd.f32 0.0, %v393
    %v395 = vpop.f32.mrb[0].mxu0
    %396 = vmatprep.mubr.f32.mxu0 0.0
    %397 = vmatmul.mubr.f32.gmra.mrb[0].mxu0 %v64
    %v398 = vpop.f32.mrb[0].mxu0
    %v399 = vadd.f32 0.0, %v398
    %v400 = vpop.f32.mrb[0].mxu0
    %401 = vmatprep.mubr.f32.mxu0 0.0
    %402 = vmatmul.mubr.f32.gmra.mrb[0].mxu0 %v65
    %v403 = vpop.f32.mrb[0].mxu0
    %v404 = vadd.f32 0.0, %v403
    %v405 = vpop.f32.mrb[0].mxu0
    %406 = vmatprep.mubr.f32.mxu0 0.0
    %407 = vmatmul.mubr.f32.gmra.mrb[0].mxu0 %v66
    %v408 = vpop.f32.mrb[0].mxu0
    %v409 = vadd.f32 0.0, %v408
    %v410 = vpop.f32.mrb[0].mxu0
    %411 = vmatprep.mubr.f32.mxu0 0.0
    %412 = vmatmul.mubr.f32.gmra.mrb[0].mxu0 %v67
    %v413 = vpop.f32.mrb[0].mxu0
    %v414 = vadd.f32 0.0, %v413
    %v415 = vpop.f32.mrb[0].mxu0
    %416 = vmatprep.mubr.f32.mxu0 0.0
    %417 = vmatmul.mubr.f32.gmra.mrb[0].mxu0 %v68
    %v418 = vpop.f32.mrb[0].mxu0
    %v419 = vadd.f32 0.0, %v418
    %v420 = vpop.f32.mrb[0].mxu0
    %421 = vmatprep.mubr.f32.mxu0 0.0
    %422 = vmatmul.mubr.f32.gmra.mrb[0].mxu0 %v69
    %v423 = vpop.f32.mrb[0].mxu0
    %v424 = vadd.f32 0.0, %v423
    %v425 = vpop.f32.mrb[0].mxu0
    %426 = vdwg.mxu0
    %v427 = vmul.f32 %v204, %v204
    %v428 = vmul.f32 %v209, %v209
    %v429 = vmul.f32 %v214, %v214
    %v430 = vmul.f32 %v219, %v219
    %v431 = vmul.f32 %v224, %v224
    %v432 = vmul.f32 %v229, %v229
    %v433 = vmul.f32 %v234, %v234
    %v434 = vmul.f32 %v239, %v239
    %v435 = vmul.f32 %v244, %v244
    %v436 = vmul.f32 %v249, %v249
    %v437 = vmul.f32 %v254, %v254
    %v438 = vmul.f32 %v259, %v259
    %v439 = vmul.f32 %v264, %v264
    %v440 = vmul.f32 %v269, %v269
    %v441 = vmul.f32 %v274, %v274
    %v442 = vmul.f32 %v279, %v279
    %443 = vmatprep.subr.mxu0 0.0
    %444 = vmatpush1.msra.mxu0 %v427
    %445 = vmatprep.subr.mxu0 0.0
    %446 = vmatpush1.msra.mxu0 %v428
    %447 = vmatprep.subr.mxu0 0.0
    %448 = vmatpush1.msra.mxu0 %v429
    %449 = vmatprep.subr.mxu0 0.0
    %450 = vmatpush1.msra.mxu0 %v430
    %451 = vmatprep.subr.mxu0 0.0
    %452 = vmatpush1.msra.mxu0 %v431
    %453 = vmatprep.subr.mxu0 0.0
    %454 = vmatpush1.msra.mxu0 %v432
    %455 = vmatprep.subr.mxu0 0.0
    %456 = vmatpush1.msra.mxu0 %v433
    %457 = vmatprep.subr.mxu0 0.0
    %458 = vmatpush1.msra.mxu0 %v434
    %459 = vmatprep.subr.mxu0 0.0
    %460 = vmatpush1.msra.mxu0 %v435
    %461 = vmatprep.subr.mxu0 0.0
    %462 = vmatpush1.msra.mxu0 %v436
    %463 = vmatprep.subr.mxu0 0.0
    %464 = vmatpush1.msra.mxu0 %v437
    %465 = vmatprep.subr.mxu0 0.0
    %466 = vmatpush1.msra.mxu0 %v438
    %467 = vmatprep.subr.mxu0 0.0
    %468 = vmatpush1.msra.mxu0 %v439
    %469 = vmatprep.subr.mxu0 0.0
    %470 = vmatpush1.msra.mxu0 %v440
    %471 = vmatprep.subr.mxu0 0.0
    %472 = vmatpush1.msra.mxu0 %v441
    %473 = vmatprep.subr.mxu0 0.0
    %474 = vmatpush1.msra.mxu0 %v442
    %475 = vmatprep.subr.mxu0 0.0
    %476 = vmatpush1.msra.mxu0 0.0
    %477 = vmatprep.subr.mxu0 0.0
    %478 = vmatpush1.msra.mxu0 0.0
    %479 = vmatprep.subr.mxu0 0.0
    %480 = vmatpush1.msra.mxu0 0.0
    %481 = vmatprep.subr.mxu0 0.0
    %482 = vmatpush1.msra.mxu0 0.0
    %483 = vmatprep.subr.mxu0 0.0
    %484 = vmatpush1.msra.mxu0 0.0
    %485 = vmatprep.subr.mxu0 0.0
    %486 = vmatpush1.msra.mxu0 0.0
    %487 = vmatprep.subr.mxu0 0.0
    %488 = vmatpush1.msra.mxu0 0.0
    %489 = vmatprep.subr.mxu0 0.0
    %490 = vmatpush1.msra.mxu0 0.0
    %491 = vmatprep.subr.mxu0 0.0
    %492 = vmatpush1.msra.mxu0 0.0
    %493 = vmatprep.subr.mxu0 0.0
    %494 = vmatpush1.msra.mxu0 0.0
    %495 = vmatprep.subr.mxu0 0.0
    %496 = vmatpush1.msra.mxu0 0.0
    %497 = vmatprep.subr.mxu0 0.0
    %498 = vmatpush1.msra.mxu0 0.0
    %499 = vmatprep.subr.mxu0 0.0
    %500 = vmatpush1.msra.mxu0 0.0
    %501 = vmatprep.subr.mxu0 0.0
    %502 = vmatpush1.msra.mxu0 0.0
    %503 = vmatprep.subr.mxu0 0.0
    %504 = vmatpush1.msra.mxu0 0.0
    %505 = vmatprep.subr.mxu0 0.0
    %506 = vmatpush1.msra.mxu0 0.0
    %507 = vmatprep.mubr.f32.mxu0 0.0
    %508 = vmatmul.mubr.f32.gmra.mrb[0].mxu0 %v54
    %v509 = vpop.f32.mrb[0].mxu0
    %v510 = vadd.f32 0.0, %v509
    %v511 = vpop.f32.mrb[0].mxu0
    %512 = vmatprep.mubr.f32.mxu0 0.0
    %513 = vmatmul.mubr.f32.gmra.mrb[0].mxu0 %v55
    %v514 = vpop.f32.mrb[0].mxu0
    %v515 = vadd.f32 0.0, %v514
    %v516 = vpop.f32.mrb[0].mxu0
    %517 = vmatprep.mubr.f32.mxu0 0.0
    %518 = vmatmul.mubr.f32.gmra.mrb[0].mxu0 %v56
    %v519 = vpop.f32.mrb[0].mxu0
    %v520 = vadd.f32 0.0, %v519
    %v521 = vpop.f32.mrb[0].mxu0
    %522 = vmatprep.mubr.f32.mxu0 0.0
    %523 = vmatmul.mubr.f32.gmra.mrb[0].mxu0 %v57
    %v524 = vpop.f32.mrb[0].mxu0
    %v525 = vadd.f32 0.0, %v524
    %v526 = vpop.f32.mrb[0].mxu0
    %527 = vmatprep.mubr.f32.mxu0 0.0
    %528 = vmatmul.mubr.f32.gmra.mrb[0].mxu0 %v58
    %v529 = vpop.f32.mrb[0].mxu0
    %v530 = vadd.f32 0.0, %v529
    %v531 = vpop.f32.mrb[0].mxu0
    %532 = vmatprep.mubr.f32.mxu0 0.0
    %533 = vmatmul.mubr.f32.gmra.mrb[0].mxu0 %v59
    %v534 = vpop.f32.mrb[0].mxu0
    %v535 = vadd.f32 0.0, %v534
    %v536 = vpop.f32.mrb[0].mxu0
    %537 = vmatprep.mubr.f32.mxu0 0.0
    %538 = vmatmul.mubr.f32.gmra.mrb[0].mxu0 %v60
    %v539 = vpop.f32.mrb[0].mxu0
    %v540 = vadd.f32 0.0, %v539
    %v541 = vpop.f32.mrb[0].mxu0
    %542 = vmatprep.mubr.f32.mxu0 0.0
    %543 = vmatmul.mubr.f32.gmra.mrb[0].mxu0 %v61
    %v544 = vpop.f32.mrb[0].mxu0
    %v545 = vadd.f32 0.0, %v544
    %v546 = vpop.f32.mrb[0].mxu0
    %547 = vmatprep.mubr.f32.mxu0 0.0
    %548 = vmatmul.mubr.f32.gmra.mrb[0].mxu0 %v62
    %v549 = vpop.f32.mrb[0].mxu0
    %v550 = vadd.f32 0.0, %v549
    %v551 = vpop.f32.mrb[0].mxu0
    %552 = vmatprep.mubr.f32.mxu0 0.0
    %553 = vmatmul.mubr.f32.gmra.mrb[0].mxu0 %v63
    %v554 = vpop.f32.mrb[0].mxu0
    %v555 = vadd.f32 0.0, %v554
    %v556 = vpop.f32.mrb[0].mxu0
    %557 = vmatprep.mubr.f32.mxu0 0.0
    %558 = vmatmul.mubr.f32.gmra.mrb[0].mxu0 %v64
    %v559 = vpop.f32.mrb[0].mxu0
    %v560 = vadd.f32 0.0, %v559
    %v561 = vpop.f32.mrb[0].mxu0
    %562 = vmatprep.mubr.f32.mxu0 0.0
    %563 = vmatmul.mubr.f32.gmra.mrb[0].mxu0 %v65
    %v564 = vpop.f32.mrb[0].mxu0
    %v565 = vadd.f32 0.0, %v564
    %v566 = vpop.f32.mrb[0].mxu0
    %567 = vmatprep.mubr.f32.mxu0 0.0
    %568 = vmatmul.mubr.f32.gmra.mrb[0].mxu0 %v66
    %v569 = vpop.f32.mrb[0].mxu0
    %v570 = vadd.f32 0.0, %v569
    %v571 = vpop.f32.mrb[0].mxu0
    %572 = vmatprep.mubr.f32.mxu0 0.0
    %573 = vmatmul.mubr.f32.gmra.mrb[0].mxu0 %v67
    %v574 = vpop.f32.mrb[0].mxu0
    %v575 = vadd.f32 0.0, %v574
    %v576 = vpop.f32.mrb[0].mxu0
    %577 = vmatprep.mubr.f32.mxu0 0.0
    %578 = vmatmul.mubr.f32.gmra.mrb[0].mxu0 %v68
    %v579 = vpop.f32.mrb[0].mxu0
    %v580 = vadd.f32 0.0, %v579
    %v581 = vpop.f32.mrb[0].mxu0
    %582 = vmatprep.mubr.f32.mxu0 0.0
    %583 = vmatmul.mubr.f32.gmra.mrb[0].mxu0 %v69
    %v584 = vpop.f32.mrb[0].mxu0
    %v585 = vadd.f32 0.0, %v584
    %v586 = vpop.f32.mrb[0].mxu0
    %587 = vdwg.mxu0
    %v588 = vmul.f32 %v349, %v349
    %v589 = vmul.f32 %v354, %v354
    %v590 = vmul.f32 %v359, %v359
    %v591 = vmul.f32 %v364, %v364
    %v592 = vmul.f32 %v369, %v369
    %v593 = vmul.f32 %v374, %v374
    %v594 = vmul.f32 %v379, %v379
    %v595 = vmul.f32 %v384, %v384
    %v596 = vmul.f32 %v389, %v389
    %v597 = vmul.f32 %v394, %v394
    %v598 = vmul.f32 %v399, %v399
    %v599 = vmul.f32 %v404, %v404
    %v600 = vmul.f32 %v409, %v409
    %v601 = vmul.f32 %v414, %v414
    %v602 = vmul.f32 %v419, %v419
    %v603 = vmul.f32 %v424, %v424
    %v604 = vsub.f32 %v510, %v588
    %v605 = vsub.f32 %v515, %v589
    %v606 = vsub.f32 %v520, %v590
    %v607 = vsub.f32 %v525, %v591
    %v608 = vsub.f32 %v530, %v592
    %v609 = vsub.f32 %v535, %v593
    %v610 = vsub.f32 %v540, %v594
    %v611 = vsub.f32 %v545, %v595
    %v612 = vsub.f32 %v550, %v596
    %v613 = vsub.f32 %v555, %v597
    %v614 = vsub.f32 %v560, %v598
    %v615 = vsub.f32 %v565, %v599
    %v616 = vsub.f32 %v570, %v600
    %v617 = vsub.f32 %v575, %v601
    %v618 = vsub.f32 %v580, %v602
    %v619 = vsub.f32 %v585, %v603
    %v620 = vmax.f32 %v604, 0.0
    %v621 = vmax.f32 %v605, 0.0
    %v622 = vmax.f32 %v606, 0.0
    %v623 = vmax.f32 %v607, 0.0
    %v624 = vmax.f32 %v608, 0.0
    %v625 = vmax.f32 %v609, 0.0
    %v626 = vmax.f32 %v610, 0.0
    %v627 = vmax.f32 %v611, 0.0
    %v628 = vmax.f32 %v612, 0.0
    %v629 = vmax.f32 %v613, 0.0
    %v630 = vmax.f32 %v614, 0.0
    %v631 = vmax.f32 %v615, 0.0
    %v632 = vmax.f32 %v616, 0.0
    %v633 = vmax.f32 %v617, 0.0
    %v634 = vmax.f32 %v618, 0.0
    %v635 = vmax.f32 %v619, 0.0
    %v636 = vsub.f32 %v204, %v349
    %v637 = vsub.f32 %v209, %v354
    %v638 = vsub.f32 %v214, %v359
    %v639 = vsub.f32 %v219, %v364
    %v640 = vsub.f32 %v224, %v369
    %v641 = vsub.f32 %v229, %v374
    %v642 = vsub.f32 %v234, %v379
    %v643 = vsub.f32 %v239, %v384
    %v644 = vsub.f32 %v244, %v389
    %v645 = vsub.f32 %v249, %v394
    %v646 = vsub.f32 %v254, %v399
    %v647 = vsub.f32 %v259, %v404
    %v648 = vsub.f32 %v264, %v409
    %v649 = vsub.f32 %v269, %v414
    %v650 = vsub.f32 %v274, %v419
    %v651 = vsub.f32 %v279, %v424
    %v652 = vadd.f32 %v620, 1e-05
    %v653 = vadd.f32 %v621, 1e-05
    %v654 = vadd.f32 %v622, 1e-05
    %v655 = vadd.f32 %v623, 1e-05
    %v656 = vadd.f32 %v624, 1e-05
    %v657 = vadd.f32 %v625, 1e-05
    %v658 = vadd.f32 %v626, 1e-05
    %v659 = vadd.f32 %v627, 1e-05
    %v660 = vadd.f32 %v628, 1e-05
    %v661 = vadd.f32 %v629, 1e-05
    %v662 = vadd.f32 %v630, 1e-05
    %v663 = vadd.f32 %v631, 1e-05
    %v664 = vadd.f32 %v632, 1e-05
    %v665 = vadd.f32 %v633, 1e-05
    %v666 = vadd.f32 %v634, 1e-05
    %v667 = vadd.f32 %v635, 1e-05
    %v668 = vrsqrt.pop %v652
    %v669 = vrsqrt.pop %v653
    %v670 = vrsqrt.pop %v654
    %v671 = vrsqrt.pop %v655
    %v672 = vrsqrt.pop %v656
    %v673 = vrsqrt.pop %v657
    %v674 = vrsqrt.pop %v658
    %v675 = vrsqrt.pop %v659
    %v676 = vrsqrt.pop %v660
    %v677 = vrsqrt.pop %v661
    %v678 = vrsqrt.pop %v662
    %v679 = vrsqrt.pop %v663
    %v680 = vrsqrt.pop %v664
    %v681 = vrsqrt.pop %v665
    %v682 = vrsqrt.pop %v666
    %v683 = vrsqrt.pop %v667
    %v684 = vmul.f32 %v636, %v668
    %v685 = vmul.f32 %v637, %v669
    %v686 = vmul.f32 %v638, %v670
    %v687 = vmul.f32 %v639, %v671
    %v688 = vmul.f32 %v640, %v672
    %v689 = vmul.f32 %v641, %v673
    %v690 = vmul.f32 %v642, %v674
    %v691 = vmul.f32 %v643, %v675
    %v692 = vmul.f32 %v644, %v676
    %v693 = vmul.f32 %v645, %v677
    %v694 = vmul.f32 %v646, %v678
    %v695 = vmul.f32 %v647, %v679
    %v696 = vmul.f32 %v648, %v680
    %v697 = vmul.f32 %v649, %v681
    %v698 = vmul.f32 %v650, %v682
    %v699 = vmul.f32 %v651, %v683
    %v700 = vld [vmem:[%s2] sm:$0x1]
    %v702 = vlaneseq
    %v703 = vshrl.u32 %v702, 7
    %v704 = vsub.s32 0, %v703
    %v705 = vrot.slane %v700, %v704
    %v707 = vmul.f32 %v684, %v705
    %v708 = vmul.f32 %v685, %v705
    %v709 = vmul.f32 %v686, %v705
    %v710 = vmul.f32 %v687, %v705
    %v711 = vmul.f32 %v688, %v705
    %v712 = vmul.f32 %v689, %v705
    %v713 = vmul.f32 %v690, %v705
    %v714 = vmul.f32 %v691, %v705
    %v715 = vmul.f32 %v692, %v705
    %v716 = vmul.f32 %v693, %v705
    %v717 = vmul.f32 %v694, %v705
    %v718 = vmul.f32 %v695, %v705
    %v719 = vmul.f32 %v696, %v705
    %v720 = vmul.f32 %v697, %v705
    %v721 = vmul.f32 %v698, %v705
    %v722 = vmul.f32 %v699, %v705
    %v723 = vld [vmem:[%s3] sm:$0x1]
    %v725 = vlaneseq
    %v726 = vshrl.u32 %v725, 7
    %v727 = vsub.s32 0, %v726
    %v728 = vrot.slane %v723, %v727
    %v730 = vadd.f32 %v707, %v728
    %v731 = vadd.f32 %v708, %v728
    %v732 = vadd.f32 %v709, %v728
    %v733 = vadd.f32 %v710, %v728
    %v734 = vadd.f32 %v711, %v728
    %v735 = vadd.f32 %v712, %v728
    %v736 = vadd.f32 %v713, %v728
    %v737 = vadd.f32 %v714, %v728
    %v738 = vadd.f32 %v715, %v728
    %v739 = vadd.f32 %v716, %v728
    %v740 = vadd.f32 %v717, %v728
    %v741 = vadd.f32 %v718, %v728
    %v742 = vadd.f32 %v719, %v728
    %v743 = vadd.f32 %v720, %v728
    %v744 = vadd.f32 %v721, %v728
    %v745 = vadd.f32 %v722, %v728
    %746 = vst [vmem:[#allocation4] sm:$0xff] %v730
    %747 = vst [vmem:[#allocation4 + $0x8] sm:$0xff] %v731
    %748 = vst [vmem:[#allocation4 + $0x10] sm:$0xff] %v732
    %749 = vst [vmem:[#allocation4 + $0x18] sm:$0xff] %v733
    %750 = vst [vmem:[#allocation4 + $0x20] sm:$0xff] %v734
    %751 = vst [vmem:[#allocation4 + $0x28] sm:$0xff] %v735
    %752 = vst [vmem:[#allocation4 + $0x30] sm:$0xff] %v736
    %753 = vst [vmem:[#allocation4 + $0x38] sm:$0xff] %v737
    %754 = vst [vmem:[#allocation4 + $0x40] sm:$0xff] %v738
    %755 = vst [vmem:[#allocation4 + $0x48] sm:$0xff] %v739
    %756 = vst [vmem:[#allocation4 + $0x50] sm:$0xff] %v740
    %757 = vst [vmem:[#allocation4 + $0x58] sm:$0xff] %v741
    %758 = vst [vmem:[#allocation4 + $0x60] sm:$0xff] %v742
    %759 = vst [vmem:[#allocation4 + $0x68] sm:$0xff] %v743
    %760 = vst [vmem:[#allocation4 + $0x70] sm:$0xff] %v744
    %761 = vst [vmem:[#allocation4 + $0x78] sm:$0xff] %v745
    %v762 = vld [vmem:[#allocation2] sm:$0xff]
    %v763 = vld [vmem:[#allocation4] sm:$0xff]
    %vm764 = vcmp.gt.f32.partialorder %v762, 1.0
    %v765 = vsel %vm764, 1, 0
    %v766 = vcvt.s32.f32 %v765
    %v767 = vmul.f32 %v762, 0.9
    %v768 = vadd.f32 %v767, %v763
    %v769 = vsub.f32 %v768, %v766
    %vm770 = vcmp.gt.f32.partialorder %v769, 1.0
    %v771 = vsel %vm770, 1, 0
    %v772 = vcvt.s32.f32 %v771
    %773 = vst [vmem:[#allocation4] sm:$0xff] %v772
    %s774 = scalar_lea.vmem [#allocation4], 8
    %v775 = vld [vmem:[%s774] sm:$0xff]
    %v776 = vmul.f32 %v769, 0.9
    %v777 = vadd.f32 %v776, %v775
    %v778 = vsub.f32 %v777, %v772
    %vm779 = vcmp.gt.f32.partialorder %v778, 1.0
    %v780 = vsel %vm779, 1, 0
    %v781 = vcvt.s32.f32 %v780
    %782 = vst [vmem:[%s774] sm:$0xff] %v781
    %s783 = scalar_lea.vmem [#allocation4], 16
    %v784 = vld [vmem:[%s783] sm:$0xff]
    %v785 = vmul.f32 %v778, 0.9
    %v786 = vadd.f32 %v785, %v784
    %v787 = vsub.f32 %v786, %v781
    %vm788 = vcmp.gt.f32.partialorder %v787, 1.0
    %v789 = vsel %vm788, 1, 0
    %v790 = vcvt.s32.f32 %v789
    %791 = vst [vmem:[%s783] sm:$0xff] %v790
    %s792 = scalar_lea.vmem [#allocation4], 24
    %v793 = vld [vmem:[%s792] sm:$0xff]
    %v794 = vmul.f32 %v787, 0.9
    %v795 = vadd.f32 %v794, %v793
    %v796 = vsub.f32 %v795, %v790
    %vm797 = vcmp.gt.f32.partialorder %v796, 1.0
    %v798 = vsel %vm797, 1, 0
    %v799 = vcvt.s32.f32 %v798
    %800 = vst [vmem:[%s792] sm:$0xff] %v799
    %s801 = scalar_lea.vmem [#allocation4], 32
    %v802 = vld [vmem:[%s801] sm:$0xff]
    %v803 = vmul.f32 %v796, 0.9
    %v804 = vadd.f32 %v803, %v802
    %v805 = vsub.f32 %v804, %v799
    %vm806 = vcmp.gt.f32.partialorder %v805, 1.0
    %v807 = vsel %vm806, 1, 0
    %v808 = vcvt.s32.f32 %v807
    %809 = vst [vmem:[%s801] sm:$0xff] %v808
    %s810 = scalar_lea.vmem [#allocation4], 40
    %v811 = vld [vmem:[%s810] sm:$0xff]
    %v812 = vmul.f32 %v805, 0.9
    %v813 = vadd.f32 %v812, %v811
    %v814 = vsub.f32 %v813, %v808
    %vm815 = vcmp.gt.f32.partialorder %v814, 1.0
    %v816 = vsel %vm815, 1, 0
    %v817 = vcvt.s32.f32 %v816
    %818 = vst [vmem:[%s810] sm:$0xff] %v817
    %s819 = scalar_lea.vmem [#allocation4], 48
    %v820 = vld [vmem:[%s819] sm:$0xff]
    %v821 = vmul.f32 %v814, 0.9
    %v822 = vadd.f32 %v821, %v820
    %v823 = vsub.f32 %v822, %v817
    %vm824 = vcmp.gt.f32.partialorder %v823, 1.0
    %v825 = vsel %vm824, 1, 0
    %v826 = vcvt.s32.f32 %v825
    %827 = vst [vmem:[%s819] sm:$0xff] %v826
    %s828 = scalar_lea.vmem [#allocation4], 56
    %v829 = vld [vmem:[%s828] sm:$0xff]
    %v830 = vmul.f32 %v823, 0.9
    %v831 = vadd.f32 %v830, %v829
    %v832 = vsub.f32 %v831, %v826
    %vm833 = vcmp.gt.f32.partialorder %v832, 1.0
    %v834 = vsel %vm833, 1, 0
    %v835 = vcvt.s32.f32 %v834
    %836 = vst [vmem:[%s828] sm:$0xff] %v835
    %s837 = scalar_lea.vmem [#allocation4], 64
    %v838 = vld [vmem:[%s837] sm:$0xff]
    %v839 = vmul.f32 %v832, 0.9
    %v840 = vadd.f32 %v839, %v838
    %v841 = vsub.f32 %v840, %v835
    %vm842 = vcmp.gt.f32.partialorder %v841, 1.0
    %v843 = vsel %vm842, 1, 0
    %v844 = vcvt.s32.f32 %v843
    %845 = vst [vmem:[%s837] sm:$0xff] %v844
    %s846 = scalar_lea.vmem [#allocation4], 72
    %v847 = vld [vmem:[%s846] sm:$0xff]
    %v848 = vmul.f32 %v841, 0.9
    %v849 = vadd.f32 %v848, %v847
    %v850 = vsub.f32 %v849, %v844
    %vm851 = vcmp.gt.f32.partialorder %v850, 1.0
    %v852 = vsel %vm851, 1, 0
    %v853 = vcvt.s32.f32 %v852
    %854 = vst [vmem:[%s846] sm:$0xff] %v853
    %s855 = scalar_lea.vmem [#allocation4], 80
    %v856 = vld [vmem:[%s855] sm:$0xff]
    %v857 = vmul.f32 %v850, 0.9
    %v858 = vadd.f32 %v857, %v856
    %v859 = vsub.f32 %v858, %v853
    %vm860 = vcmp.gt.f32.partialorder %v859, 1.0
    %v861 = vsel %vm860, 1, 0
    %v862 = vcvt.s32.f32 %v861
    %863 = vst [vmem:[%s855] sm:$0xff] %v862
    %s864 = scalar_lea.vmem [#allocation4], 88
    %v865 = vld [vmem:[%s864] sm:$0xff]
    %v866 = vmul.f32 %v859, 0.9
    %v867 = vadd.f32 %v866, %v865
    %v868 = vsub.f32 %v867, %v862
    %vm869 = vcmp.gt.f32.partialorder %v868, 1.0
    %v870 = vsel %vm869, 1, 0
    %v871 = vcvt.s32.f32 %v870
    %872 = vst [vmem:[%s864] sm:$0xff] %v871
    %s873 = scalar_lea.vmem [#allocation4], 96
    %v874 = vld [vmem:[%s873] sm:$0xff]
    %v875 = vmul.f32 %v868, 0.9
    %v876 = vadd.f32 %v875, %v874
    %v877 = vsub.f32 %v876, %v871
    %vm878 = vcmp.gt.f32.partialorder %v877, 1.0
    %v879 = vsel %vm878, 1, 0
    %v880 = vcvt.s32.f32 %v879
    %881 = vst [vmem:[%s873] sm:$0xff] %v880
    %s882 = scalar_lea.vmem [#allocation4], 104
    %v883 = vld [vmem:[%s882] sm:$0xff]
    %v884 = vmul.f32 %v877, 0.9
    %v885 = vadd.f32 %v884, %v883
    %v886 = vsub.f32 %v885, %v880
    %vm887 = vcmp.gt.f32.partialorder %v886, 1.0
    %v888 = vsel %vm887, 1, 0
    %v889 = vcvt.s32.f32 %v888
    %890 = vst [vmem:[%s882] sm:$0xff] %v889
    %s891 = scalar_lea.vmem [#allocation4], 112
    %v892 = vld [vmem:[%s891] sm:$0xff]
    %v893 = vmul.f32 %v886, 0.9
    %v894 = vadd.f32 %v893, %v892
    %v895 = vsub.f32 %v894, %v889
    %vm896 = vcmp.gt.f32.partialorder %v895, 1.0
    %v897 = vsel %vm896, 1, 0
    %v898 = vcvt.s32.f32 %v897
    %899 = vst [vmem:[%s891] sm:$0xff] %v898
    %s900 = scalar_lea.vmem [#allocation4], 120
    %v901 = vld [vmem:[%s900] sm:$0xff]
    %v902 = vmul.f32 %v895, 0.9
    %v903 = vadd.f32 %v902, %v901
    %v904 = vsub.f32 %v903, %v898
    %vm905 = vcmp.gt.f32.partialorder %v904, 1.0
    %v906 = vsel %vm905, 1, 0
    %v907 = vcvt.s32.f32 %v906
    %908 = vst [vmem:[%s900] sm:$0xff] %v907
    %909 = vst [vmem:[#allocation2] sm:$0xff] %v904
    %v910 = vld [vmem:[#allocation6] sm:$0xf]
    %v911 = vld [vmem:[#allocation6 + $0x4] sm:$0xf]
    %v912 = vld [vmem:[#allocation6 + $0x8] sm:$0xf]
    %v913 = vld [vmem:[#allocation6 + $0xc] sm:$0xf]
    %v914 = vld [vmem:[#allocation6 + $0x10] sm:$0xf]
    %v915 = vld [vmem:[#allocation6 + $0x14] sm:$0xf]
    %v916 = vld [vmem:[#allocation6 + $0x18] sm:$0xf]
    %v917 = vld [vmem:[#allocation6 + $0x1c] sm:$0xf]
    %v918 = vld [vmem:[#allocation6 + $0x20] sm:$0xf]
    %v919 = vld [vmem:[#allocation6 + $0x24] sm:$0xf]
    %v920 = vld [vmem:[#allocation6 + $0x28] sm:$0xf]
    %v921 = vld [vmem:[#allocation6 + $0x2c] sm:$0xf]
    %v922 = vld [vmem:[#allocation6 + $0x30] sm:$0xf]
    %v923 = vld [vmem:[#allocation6 + $0x34] sm:$0xf]
    %v924 = vld [vmem:[#allocation6 + $0x38] sm:$0xf]
    %v925 = vld [vmem:[#allocation6 + $0x3c] sm:$0xf]
    %v926 = vld [vmem:[#allocation4] sm:$0xff]
    %v927 = vld [vmem:[#allocation4 + $0x8] sm:$0xff]
    %v928 = vld [vmem:[#allocation4 + $0x10] sm:$0xff]
    %v929 = vld [vmem:[#allocation4 + $0x18] sm:$0xff]
    %v930 = vld [vmem:[#allocation4 + $0x20] sm:$0xff]
    %v931 = vld [vmem:[#allocation4 + $0x28] sm:$0xff]
    %v932 = vld [vmem:[#allocation4 + $0x30] sm:$0xff]
    %v933 = vld [vmem:[#allocation4 + $0x38] sm:$0xff]
    %v934 = vld [vmem:[#allocation4 + $0x40] sm:$0xff]
    %v935 = vld [vmem:[#allocation4 + $0x48] sm:$0xff]
    %v936 = vld [vmem:[#allocation4 + $0x50] sm:$0xff]
    %v937 = vld [vmem:[#allocation4 + $0x58] sm:$0xff]
    %v938 = vld [vmem:[#allocation4 + $0x60] sm:$0xff]
    %v939 = vld [vmem:[#allocation4 + $0x68] sm:$0xff]
    %v940 = vld [vmem:[#allocation4 + $0x70] sm:$0xff]
    %v941 = vld [vmem:[#allocation4 + $0x78] sm:$0xff]
    %v942 = vpack.c.bf16 %v927, %v926
    %v943 = vpack.c.bf16 %v929, %v928
    %v944 = vpack.c.bf16 %v931, %v930
    %v945 = vpack.c.bf16 %v933, %v932
    %v946 = vpack.c.bf16 %v935, %v934
    %v947 = vpack.c.bf16 %v937, %v936
    %v948 = vpack.c.bf16 %v939, %v938
    %v949 = vpack.c.bf16 %v941, %v940
    %v966 = vunpack.c.l.b16 %v910
    %v967 = vunpack.c.l.b16 %v911
    %v968 = vunpack.c.l.b16 %v912
    %v969 = vunpack.c.l.b16 %v913
    %v970 = vunpack.c.l.b16 %v914
    %v971 = vunpack.c.l.b16 %v915
    %v972 = vunpack.c.l.b16 %v916
    %v973 = vunpack.c.l.b16 %v917
    %v974 = vunpack.c.l.b16 %v918
    %v975 = vunpack.c.l.b16 %v919
    %v976 = vunpack.c.l.b16 %v920
    %v977 = vunpack.c.l.b16 %v921
    %v978 = vunpack.c.l.b16 %v922
    %v979 = vunpack.c.l.b16 %v923
    %v980 = vunpack.c.l.b16 %v924
    %v981 = vunpack.c.l.b16 %v925
    %v982 = vpack.c.b16 %v967, %v966
    %v983 = vpack.c.b16 %v969, %v968
    %v984 = vpack.c.b16 %v971, %v970
    %v985 = vpack.c.b16 %v973, %v972
    %v986 = vpack.c.b16 %v975, %v974
    %v987 = vpack.c.b16 %v977, %v976
    %v988 = vpack.c.b16 %v979, %v978
    %v989 = vpack.c.b16 %v981, %v980
    %998 = vmatprep.subr.bf16.mxu0 0
    %999 = vmatpush1.bf16.msra.mxu0 %v982
    %1000 = vmatprep.subr.bf16.mxu0 0
    %1001 = vmatpush1.bf16.msra.mxu0 %v983
    %1002 = vmatprep.subr.bf16.mxu0 0
    %1003 = vmatpush1.bf16.msra.mxu0 %v984
    %1004 = vmatprep.subr.bf16.mxu0 0
    %1005 = vmatpush1.bf16.msra.mxu0 %v985
    %1006 = vmatprep.subr.bf16.mxu0 0
    %1007 = vmatpush1.bf16.msra.mxu0 %v986
    %1008 = vmatprep.subr.bf16.mxu0 0
    %1009 = vmatpush1.bf16.msra.mxu0 %v987
    %1010 = vmatprep.subr.bf16.mxu0 0
    %1011 = vmatpush1.bf16.msra.mxu0 %v988
    %1012 = vmatprep.subr.bf16.mxu0 0
    %1013 = vmatpush1.bf16.msra.mxu0 %v989
    %1014 = vmatprep.subr.bf16.mxu0 0
    %1015 = vmatpush1.bf16.msra.mxu0 0
    %1016 = vmatprep.subr.bf16.mxu0 0
    %1017 = vmatpush1.bf16.msra.mxu0 0
    %1018 = vmatprep.subr.bf16.mxu0 0
    %1019 = vmatpush1.bf16.msra.mxu0 0
    %1020 = vmatprep.subr.bf16.mxu0 0
    %1021 = vmatpush1.bf16.msra.mxu0 0
    %1022 = vmatprep.subr.bf16.mxu0 0
    %1023 = vmatpush1.bf16.msra.mxu0 0
    %1024 = vmatprep.subr.bf16.mxu0 0
    %1025 = vmatpush1.bf16.msra.mxu0 0
    %1026 = vmatprep.subr.bf16.mxu0 0
    %1027 = vmatpush1.bf16.msra.mxu0 0
    %1028 = vmatprep.subr.bf16.mxu0 0
    %1029 = vmatpush1.bf16.msra.mxu0 0
    %1030 = vmatprep.mubr.bf16.mxu0 0
    %1031 = vmatmul.mubr.bf16.gmra.mrb[0].mxu0 %v942
    %v1032 = vpop.f32.mrb[0].mxu0
    %v1033 = vadd.f32 0.0, %v1032
    %v1034 = vpop.f32.mrb[0].mxu0
    %v1035 = vpop.f32.mrb[0].mxu0
    %v1036 = vadd.f32 0.0, %v1035
    %v1037 = vpop.f32.mrb[0].mxu0
    %1038 = vmatprep.mubr.bf16.mxu0 0
    %1039 = vmatmul.mubr.bf16.gmra.mrb[0].mxu0 %v943
    %v1040 = vpop.f32.mrb[0].mxu0
    %v1041 = vadd.f32 0.0, %v1040
    %v1042 = vpop.f32.mrb[0].mxu0
    %v1043 = vpop.f32.mrb[0].mxu0
    %v1044 = vadd.f32 0.0, %v1043
    %v1045 = vpop.f32.mrb[0].mxu0
    %1046 = vmatprep.mubr.bf16.mxu0 0
    %1047 = vmatmul.mubr.bf16.gmra.mrb[0].mxu0 %v944
    %v1048 = vpop.f32.mrb[0].mxu0
    %v1049 = vadd.f32 0.0, %v1048
    %v1050 = vpop.f32.mrb[0].mxu0
    %v1051 = vpop.f32.mrb[0].mxu0
    %v1052 = vadd.f32 0.0, %v1051
    %v1053 = vpop.f32.mrb[0].mxu0
    %1054 = vmatprep.mubr.bf16.mxu0 0
    %1055 = vmatmul.mubr.bf16.gmra.mrb[0].mxu0 %v945
    %v1056 = vpop.f32.mrb[0].mxu0
    %v1057 = vadd.f32 0.0, %v1056
    %v1058 = vpop.f32.mrb[0].mxu0
    %v1059 = vpop.f32.mrb[0].mxu0
    %v1060 = vadd.f32 0.0, %v1059
    %v1061 = vpop.f32.mrb[0].mxu0
    %1062 = vmatprep.mubr.bf16.mxu0 0
    %1063 = vmatmul.mubr.bf16.gmra.mrb[0].mxu0 %v946
    %v1064 = vpop.f32.mrb[0].mxu0
    %v1065 = vadd.f32 0.0, %v1064
    %v1066 = vpop.f32.mrb[0].mxu0
    %v1067 = vpop.f32.mrb[0].mxu0
    %v1068 = vadd.f32 0.0, %v1067
    %v1069 = vpop.f32.mrb[0].mxu0
    %1070 = vmatprep.mubr.bf16.mxu0 0
    %1071 = vmatmul.mubr.bf16.gmra.mrb[0].mxu0 %v947
    %v1072 = vpop.f32.mrb[0].mxu0
    %v1073 = vadd.f32 0.0, %v1072
    %v1074 = vpop.f32.mrb[0].mxu0
    %v1075 = vpop.f32.mrb[0].mxu0
    %v1076 = vadd.f32 0.0, %v1075
    %v1077 = vpop.f32.mrb[0].mxu0
    %1078 = vmatprep.mubr.bf16.mxu0 0
    %1079 = vmatmul.mubr.bf16.gmra.mrb[0].mxu0 %v948
    %v1080 = vpop.f32.mrb[0].mxu0
    %v1081 = vadd.f32 0.0, %v1080
    %v1082 = vpop.f32.mrb[0].mxu0
    %v1083 = vpop.f32.mrb[0].mxu0
    %v1084 = vadd.f32 0.0, %v1083
    %v1085 = vpop.f32.mrb[0].mxu0
    %1086 = vmatprep.mubr.bf16.mxu0 0
    %1087 = vmatmul.mubr.bf16.gmra.mrb[0].mxu0 %v949
    %v1088 = vpop.f32.mrb[0].mxu0
    %v1089 = vadd.f32 0.0, %v1088
    %v1090 = vpop.f32.mrb[0].mxu0
    %v1091 = vpop.f32.mrb[0].mxu0
    %v1092 = vadd.f32 0.0, %v1091
    %v1093 = vpop.f32.mrb[0].mxu0
    %1094 = vdwg.mxu0
    %1095 = vmatprep.subr.mxu0 0.0
    %1096 = vmatpush1.msra.mxu0 %v1033
    %1097 = vmatprep.subr.mxu0 0.0
    %1098 = vmatpush1.msra.mxu0 %v1036
    %1099 = vmatprep.subr.mxu0 0.0
    %1100 = vmatpush1.msra.mxu0 %v1041
    %1101 = vmatprep.subr.mxu0 0.0
    %1102 = vmatpush1.msra.mxu0 %v1044
    %1103 = vmatprep.subr.mxu0 0.0
    %1104 = vmatpush1.msra.mxu0 %v1049
    %1105 = vmatprep.subr.mxu0 0.0
    %1106 = vmatpush1.msra.mxu0 %v1052
    %1107 = vmatprep.subr.mxu0 0.0
    %1108 = vmatpush1.msra.mxu0 %v1057
    %1109 = vmatprep.subr.mxu0 0.0
    %1110 = vmatpush1.msra.mxu0 %v1060
    %1111 = vmatprep.subr.mxu0 0.0
    %1112 = vmatpush1.msra.mxu0 %v1065
    %1113 = vmatprep.subr.mxu0 0.0
    %1114 = vmatpush1.msra.mxu0 %v1068
    %1115 = vmatprep.subr.mxu0 0.0
    %1116 = vmatpush1.msra.mxu0 %v1073
    %1117 = vmatprep.subr.mxu0 0.0
    %1118 = vmatpush1.msra.mxu0 %v1076
    %1119 = vmatprep.subr.mxu0 0.0
    %1120 = vmatpush1.msra.mxu0 %v1081
    %1121 = vmatprep.subr.mxu0 0.0
    %1122 = vmatpush1.msra.mxu0 %v1084
    %1123 = vmatprep.subr.mxu0 0.0
    %1124 = vmatpush1.msra.mxu0 %v1089
    %1125 = vmatprep.subr.mxu0 0.0
    %1126 = vmatpush1.msra.mxu0 %v1092
    %1127 = vmatprep.subr.mxu0 0.0
    %1128 = vmatpush1.msra.mxu0 0.0
    %1129 = vmatprep.subr.mxu0 0.0
    %1130 = vmatpush1.msra.mxu0 0.0
    %1131 = vmatprep.subr.mxu0 0.0
    %1132 = vmatpush1.msra.mxu0 0.0
    %1133 = vmatprep.subr.mxu0 0.0
    %1134 = vmatpush1.msra.mxu0 0.0
    %1135 = vmatprep.subr.mxu0 0.0
    %1136 = vmatpush1.msra.mxu0 0.0
    %1137 = vmatprep.subr.mxu0 0.0
    %1138 = vmatpush1.msra.mxu0 0.0
    %1139 = vmatprep.subr.mxu0 0.0
    %1140 = vmatpush1.msra.mxu0 0.0
    %1141 = vmatprep.subr.mxu0 0.0
    %1142 = vmatpush1.msra.mxu0 0.0
    %1143 = vmatprep.subr.mxu0 0.0
    %1144 = vmatpush1.msra.mxu0 0.0
    %1145 = vmatprep.subr.mxu0 0.0
    %1146 = vmatpush1.msra.mxu0 0.0
    %1147 = vmatprep.subr.mxu0 0.0
    %1148 = vmatpush1.msra.mxu0 0.0
    %1149 = vmatprep.subr.mxu0 0.0
    %1150 = vmatpush1.msra.mxu0 0.0
    %1151 = vmatprep.subr.mxu0 0.0
    %1152 = vmatpush1.msra.mxu0 0.0
    %1153 = vmatprep.subr.mxu0 0.0
    %1154 = vmatpush1.msra.mxu0 0.0
    %1155 = vmatprep.subr.mxu0 0.0
    %1156 = vmatpush1.msra.mxu0 0.0
    %1157 = vmatprep.subr.mxu0 0.0
    %1158 = vmatpush1.msra.mxu0 0.0
    %1159 = vmatprep.mubr.f32.mxu0 0.0
    %1160 = vmatmul.mubr.f32.gmra.mrb[0].mxu0 %v54
    %v1161 = vpop.f32.mrb[0].mxu0
    %v1162 = vadd.f32 0.0, %v1161
    %v1163 = vpop.f32.mrb[0].mxu0
    %1164 = vmatprep.mubr.f32.mxu0 0.0
    %1165 = vmatmul.mubr.f32.gmra.mrb[0].mxu0 %v55
    %v1166 = vpop.f32.mrb[0].mxu0
    %v1167 = vadd.f32 0.0, %v1166
    %v1168 = vpop.f32.mrb[0].mxu0
    %1169 = vmatprep.mubr.f32.mxu0 0.0
    %1170 = vmatmul.mubr.f32.gmra.mrb[0].mxu0 %v56
    %v1171 = vpop.f32.mrb[0].mxu0
    %v1172 = vadd.f32 0.0, %v1171
    %v1173 = vpop.f32.mrb[0].mxu0
    %1174 = vmatprep.mubr.f32.mxu0 0.0
    %1175 = vmatmul.mubr.f32.gmra.mrb[0].mxu0 %v57
    %v1176 = vpop.f32.mrb[0].mxu0
    %v1177 = vadd.f32 0.0, %v1176
    %v1178 = vpop.f32.mrb[0].mxu0
    %1179 = vmatprep.mubr.f32.mxu0 0.0
    %1180 = vmatmul.mubr.f32.gmra.mrb[0].mxu0 %v58
    %v1181 = vpop.f32.mrb[0].mxu0
    %v1182 = vadd.f32 0.0, %v1181
    %v1183 = vpop.f32.mrb[0].mxu0
    %1184 = vmatprep.mubr.f32.mxu0 0.0
    %1185 = vmatmul.mubr.f32.gmra.mrb[0].mxu0 %v59
    %v1186 = vpop.f32.mrb[0].mxu0
    %v1187 = vadd.f32 0.0, %v1186
    %v1188 = vpop.f32.mrb[0].mxu0
    %1189 = vmatprep.mubr.f32.mxu0 0.0
    %1190 = vmatmul.mubr.f32.gmra.mrb[0].mxu0 %v60
    %v1191 = vpop.f32.mrb[0].mxu0
    %v1192 = vadd.f32 0.0, %v1191
    %v1193 = vpop.f32.mrb[0].mxu0
    %1194 = vmatprep.mubr.f32.mxu0 0.0
    %1195 = vmatmul.mubr.f32.gmra.mrb[0].mxu0 %v61
    %v1196 = vpop.f32.mrb[0].mxu0
    %v1197 = vadd.f32 0.0, %v1196
    %v1198 = vpop.f32.mrb[0].mxu0
    %1199 = vmatprep.mubr.f32.mxu0 0.0
    %1200 = vmatmul.mubr.f32.gmra.mrb[0].mxu0 %v62
    %v1201 = vpop.f32.mrb[0].mxu0
    %v1202 = vadd.f32 0.0, %v1201
    %v1203 = vpop.f32.mrb[0].mxu0
    %1204 = vmatprep.mubr.f32.mxu0 0.0
    %1205 = vmatmul.mubr.f32.gmra.mrb[0].mxu0 %v63
    %v1206 = vpop.f32.mrb[0].mxu0
    %v1207 = vadd.f32 0.0, %v1206
    %v1208 = vpop.f32.mrb[0].mxu0
    %1209 = vmatprep.mubr.f32.mxu0 0.0
    %1210 = vmatmul.mubr.f32.gmra.mrb[0].mxu0 %v64
    %v1211 = vpop.f32.mrb[0].mxu0
    %v1212 = vadd.f32 0.0, %v1211
    %v1213 = vpop.f32.mrb[0].mxu0
    %1214 = vmatprep.mubr.f32.mxu0 0.0
    %1215 = vmatmul.mubr.f32.gmra.mrb[0].mxu0 %v65
    %v1216 = vpop.f32.mrb[0].mxu0
    %v1217 = vadd.f32 0.0, %v1216
    %v1218 = vpop.f32.mrb[0].mxu0
    %1219 = vmatprep.mubr.f32.mxu0 0.0
    %1220 = vmatmul.mubr.f32.gmra.mrb[0].mxu0 %v66
    %v1221 = vpop.f32.mrb[0].mxu0
    %v1222 = vadd.f32 0.0, %v1221
    %v1223 = vpop.f32.mrb[0].mxu0
    %1224 = vmatprep.mubr.f32.mxu0 0.0
    %1225 = vmatmul.mubr.f32.gmra.mrb[0].mxu0 %v67
    %v1226 = vpop.f32.mrb[0].mxu0
    %v1227 = vadd.f32 0.0, %v1226
    %v1228 = vpop.f32.mrb[0].mxu0
    %1229 = vmatprep.mubr.f32.mxu0 0.0
    %1230 = vmatmul.mubr.f32.gmra.mrb[0].mxu0 %v68
    %v1231 = vpop.f32.mrb[0].mxu0
    %v1232 = vadd.f32 0.0, %v1231
    %v1233 = vpop.f32.mrb[0].mxu0
    %1234 = vmatprep.mubr.f32.mxu0 0.0
    %1235 = vmatmul.mubr.f32.gmra.mrb[0].mxu0 %v69
    %v1236 = vpop.f32.mrb[0].mxu0
    %v1237 = vadd.f32 0.0, %v1236
    %v1238 = vpop.f32.mrb[0].mxu0
    %1239 = vdwg.mxu0
    %v1240 = vmul.f32 %v1033, %v1033
    %v1241 = vmul.f32 %v1036, %v1036
    %v1242 = vmul.f32 %v1041, %v1041
    %v1243 = vmul.f32 %v1044, %v1044
    %v1244 = vmul.f32 %v1049, %v1049
    %v1245 = vmul.f32 %v1052, %v1052
    %v1246 = vmul.f32 %v1057, %v1057
    %v1247 = vmul.f32 %v1060, %v1060
    %v1248 = vmul.f32 %v1065, %v1065
    %v1249 = vmul.f32 %v1068, %v1068
    %v1250 = vmul.f32 %v1073, %v1073
    %v1251 = vmul.f32 %v1076, %v1076
    %v1252 = vmul.f32 %v1081, %v1081
    %v1253 = vmul.f32 %v1084, %v1084
    %v1254 = vmul.f32 %v1089, %v1089
    %v1255 = vmul.f32 %v1092, %v1092
    %1256 = vmatprep.subr.mxu0 0.0
    %1257 = vmatpush1.msra.mxu0 %v1240
    %1258 = vmatprep.subr.mxu0 0.0
    %1259 = vmatpush1.msra.mxu0 %v1241
    %1260 = vmatprep.subr.mxu0 0.0
    %1261 = vmatpush1.msra.mxu0 %v1242
    %1262 = vmatprep.subr.mxu0 0.0
    %1263 = vmatpush1.msra.mxu0 %v1243
    %1264 = vmatprep.subr.mxu0 0.0
    %1265 = vmatpush1.msra.mxu0 %v1244
    %1266 = vmatprep.subr.mxu0 0.0
    %1267 = vmatpush1.msra.mxu0 %v1245
    %1268 = vmatprep.subr.mxu0 0.0
    %1269 = vmatpush1.msra.mxu0 %v1246
    %1270 = vmatprep.subr.mxu0 0.0
    %1271 = vmatpush1.msra.mxu0 %v1247
    %1272 = vmatprep.subr.mxu0 0.0
    %1273 = vmatpush1.msra.mxu0 %v1248
    %1274 = vmatprep.subr.mxu0 0.0
    %1275 = vmatpush1.msra.mxu0 %v1249
    %1276 = vmatprep.subr.mxu0 0.0
    %1277 = vmatpush1.msra.mxu0 %v1250
    %1278 = vmatprep.subr.mxu0 0.0
    %1279 = vmatpush1.msra.mxu0 %v1251
    %1280 = vmatprep.subr.mxu0 0.0
    %1281 = vmatpush1.msra.mxu0 %v1252
    %1282 = vmatprep.subr.mxu0 0.0
    %1283 = vmatpush1.msra.mxu0 %v1253
    %1284 = vmatprep.subr.mxu0 0.0
    %1285 = vmatpush1.msra.mxu0 %v1254
    %1286 = vmatprep.subr.mxu0 0.0
    %1287 = vmatpush1.msra.mxu0 %v1255
    %1288 = vmatprep.subr.mxu0 0.0
    %1289 = vmatpush1.msra.mxu0 0.0
    %1290 = vmatprep.subr.mxu0 0.0
    %1291 = vmatpush1.msra.mxu0 0.0
    %1292 = vmatprep.subr.mxu0 0.0
    %1293 = vmatpush1.msra.mxu0 0.0
    %1294 = vmatprep.subr.mxu0 0.0
    %1295 = vmatpush1.msra.mxu0 0.0
    %1296 = vmatprep.subr.mxu0 0.0
    %1297 = vmatpush1.msra.mxu0 0.0
    %1298 = vmatprep.subr.mxu0 0.0
    %1299 = vmatpush1.msra.mxu0 0.0
    %1300 = vmatprep.subr.mxu0 0.0
    %1301 = vmatpush1.msra.mxu0 0.0
    %1302 = vmatprep.subr.mxu0 0.0
    %1303 = vmatpush1.msra.mxu0 0.0
    %1304 = vmatprep.subr.mxu0 0.0
    %1305 = vmatpush1.msra.mxu0 0.0
    %1306 = vmatprep.subr.mxu0 0.0
    %1307 = vmatpush1.msra.mxu0 0.0
    %1308 = vmatprep.subr.mxu0 0.0
    %1309 = vmatpush1.msra.mxu0 0.0
    %1310 = vmatprep.subr.mxu0 0.0
    %1311 = vmatpush1.msra.mxu0 0.0
    %1312 = vmatprep.subr.mxu0 0.0
    %1313 = vmatpush1.msra.mxu0 0.0
    %1314 = vmatprep.subr.mxu0 0.0
    %1315 = vmatpush1.msra.mxu0 0.0
    %1316 = vmatprep.subr.mxu0 0.0
    %1317 = vmatpush1.msra.mxu0 0.0
    %1318 = vmatprep.subr.mxu0 0.0
    %1319 = vmatpush1.msra.mxu0 0.0
    %1320 = vmatprep.mubr.f32.mxu0 0.0
    %1321 = vmatmul.mubr.f32.gmra.mrb[0].mxu0 %v54
    %v1322 = vpop.f32.mrb[0].mxu0
    %v1323 = vadd.f32 0.0, %v1322
    %v1324 = vpop.f32.mrb[0].mxu0
    %1325 = vmatprep.mubr.f32.mxu0 0.0
    %1326 = vmatmul.mubr.f32.gmra.mrb[0].mxu0 %v55
    %v1327 = vpop.f32.mrb[0].mxu0
    %v1328 = vadd.f32 0.0, %v1327
    %v1329 = vpop.f32.mrb[0].mxu0
    %1330 = vmatprep.mubr.f32.mxu0 0.0
    %1331 = vmatmul.mubr.f32.gmra.mrb[0].mxu0 %v56
    %v1332 = vpop.f32.mrb[0].mxu0
    %v1333 = vadd.f32 0.0, %v1332
    %v1334 = vpop.f32.mrb[0].mxu0
    %1335 = vmatprep.mubr.f32.mxu0 0.0
    %1336 = vmatmul.mubr.f32.gmra.mrb[0].mxu0 %v57
    %v1337 = vpop.f32.mrb[0].mxu0
    %v1338 = vadd.f32 0.0, %v1337
    %v1339 = vpop.f32.mrb[0].mxu0
    %1340 = vmatprep.mubr.f32.mxu0 0.0
    %1341 = vmatmul.mubr.f32.gmra.mrb[0].mxu0 %v58
    %v1342 = vpop.f32.mrb[0].mxu0
    %v1343 = vadd.f32 0.0, %v1342
    %v1344 = vpop.f32.mrb[0].mxu0
    %1345 = vmatprep.mubr.f32.mxu0 0.0
    %1346 = vmatmul.mubr.f32.gmra.mrb[0].mxu0 %v59
    %v1347 = vpop.f32.mrb[0].mxu0
    %v1348 = vadd.f32 0.0, %v1347
    %v1349 = vpop.f32.mrb[0].mxu0
    %1350 = vmatprep.mubr.f32.mxu0 0.0
    %1351 = vmatmul.mubr.f32.gmra.mrb[0].mxu0 %v60
    %v1352 = vpop.f32.mrb[0].mxu0
    %v1353 = vadd.f32 0.0, %v1352
    %v1354 = vpop.f32.mrb[0].mxu0
    %1355 = vmatprep.mubr.f32.mxu0 0.0
    %1356 = vmatmul.mubr.f32.gmra.mrb[0].mxu0 %v61
    %v1357 = vpop.f32.mrb[0].mxu0
    %v1358 = vadd.f32 0.0, %v1357
    %v1359 = vpop.f32.mrb[0].mxu0
    %1360 = vmatprep.mubr.f32.mxu0 0.0
    %1361 = vmatmul.mubr.f32.gmra.mrb[0].mxu0 %v62
    %v1362 = vpop.f32.mrb[0].mxu0
    %v1363 = vadd.f32 0.0, %v1362
    %v1364 = vpop.f32.mrb[0].mxu0
    %1365 = vmatprep.mubr.f32.mxu0 0.0
    %1366 = vmatmul.mubr.f32.gmra.mrb[0].mxu0 %v63
    %v1367 = vpop.f32.mrb[0].mxu0
    %v1368 = vadd.f32 0.0, %v1367
    %v1369 = vpop.f32.mrb[0].mxu0
    %1370 = vmatprep.mubr.f32.mxu0 0.0
    %1371 = vmatmul.mubr.f32.gmra.mrb[0].mxu0 %v64
    %v1372 = vpop.f32.mrb[0].mxu0
    %v1373 = vadd.f32 0.0, %v1372
    %v1374 = vpop.f32.mrb[0].mxu0
    %1375 = vmatprep.mubr.f32.mxu0 0.0
    %1376 = vmatmul.mubr.f32.gmra.mrb[0].mxu0 %v65
    %v1377 = vpop.f32.mrb[0].mxu0
    %v1378 = vadd.f32 0.0, %v1377
    %v1379 = vpop.f32.mrb[0].mxu0
    %1380 = vmatprep.mubr.f32.mxu0 0.0
    %1381 = vmatmul.mubr.f32.gmra.mrb[0].mxu0 %v66
    %v1382 = vpop.f32.mrb[0].mxu0
    %v1383 = vadd.f32 0.0, %v1382
    %v1384 = vpop.f32.mrb[0].mxu0
    %1385 = vmatprep.mubr.f32.mxu0 0.0
    %1386 = vmatmul.mubr.f32.gmra.mrb[0].mxu0 %v67
    %v1387 = vpop.f32.mrb[0].mxu0
    %v1388 = vadd.f32 0.0, %v1387
    %v1389 = vpop.f32.mrb[0].mxu0
    %1390 = vmatprep.mubr.f32.mxu0 0.0
    %1391 = vmatmul.mubr.f32.gmra.mrb[0].mxu0 %v68
    %v1392 = vpop.f32.mrb[0].mxu0
    %v1393 = vadd.f32 0.0, %v1392
    %v1394 = vpop.f32.mrb[0].mxu0
    %1395 = vmatprep.mubr.f32.mxu0 0.0
    %1396 = vmatmul.mubr.f32.gmra.mrb[0].mxu0 %v69
    %v1397 = vpop.f32.mrb[0].mxu0
    %v1398 = vadd.f32 0.0, %v1397
    %v1399 = vpop.f32.mrb[0].mxu0
    %1400 = vdwg.mxu0
    %v1401 = vmul.f32 %v1162, %v1162
    %v1402 = vmul.f32 %v1167, %v1167
    %v1403 = vmul.f32 %v1172, %v1172
    %v1404 = vmul.f32 %v1177, %v1177
    %v1405 = vmul.f32 %v1182, %v1182
    %v1406 = vmul.f32 %v1187, %v1187
    %v1407 = vmul.f32 %v1192, %v1192
    %v1408 = vmul.f32 %v1197, %v1197
    %v1409 = vmul.f32 %v1202, %v1202
    %v1410 = vmul.f32 %v1207, %v1207
    %v1411 = vmul.f32 %v1212, %v1212
    %v1412 = vmul.f32 %v1217, %v1217
    %v1413 = vmul.f32 %v1222, %v1222
    %v1414 = vmul.f32 %v1227, %v1227
    %v1415 = vmul.f32 %v1232, %v1232
    %v1416 = vmul.f32 %v1237, %v1237
    %v1417 = vsub.f32 %v1323, %v1401
    %v1418 = vsub.f32 %v1328, %v1402
    %v1419 = vsub.f32 %v1333, %v1403
    %v1420 = vsub.f32 %v1338, %v1404
    %v1421 = vsub.f32 %v1343, %v1405
    %v1422 = vsub.f32 %v1348, %v1406
    %v1423 = vsub.f32 %v1353, %v1407
    %v1424 = vsub.f32 %v1358, %v1408
    %v1425 = vsub.f32 %v1363, %v1409
    %v1426 = vsub.f32 %v1368, %v1410
    %v1427 = vsub.f32 %v1373, %v1411
    %v1428 = vsub.f32 %v1378, %v1412
    %v1429 = vsub.f32 %v1383, %v1413
    %v1430 = vsub.f32 %v1388, %v1414
    %v1431 = vsub.f32 %v1393, %v1415
    %v1432 = vsub.f32 %v1398, %v1416
    %v1433 = vmax.f32 %v1417, 0.0
    %v1434 = vmax.f32 %v1418, 0.0
    %v1435 = vmax.f32 %v1419, 0.0
    %v1436 = vmax.f32 %v1420, 0.0
    %v1437 = vmax.f32 %v1421, 0.0
    %v1438 = vmax.f32 %v1422, 0.0
    %v1439 = vmax.f32 %v1423, 0.0
    %v1440 = vmax.f32 %v1424, 0.0
    %v1441 = vmax.f32 %v1425, 0.0
    %v1442 = vmax.f32 %v1426, 0.0
    %v1443 = vmax.f32 %v1427, 0.0
    %v1444 = vmax.f32 %v1428, 0.0
    %v1445 = vmax.f32 %v1429, 0.0
    %v1446 = vmax.f32 %v1430, 0.0
    %v1447 = vmax.f32 %v1431, 0.0
    %v1448 = vmax.f32 %v1432, 0.0
    %v1449 = vsub.f32 %v1033, %v1162
    %v1450 = vsub.f32 %v1036, %v1167
    %v1451 = vsub.f32 %v1041, %v1172
    %v1452 = vsub.f32 %v1044, %v1177
    %v1453 = vsub.f32 %v1049, %v1182
    %v1454 = vsub.f32 %v1052, %v1187
    %v1455 = vsub.f32 %v1057, %v1192
    %v1456 = vsub.f32 %v1060, %v1197
    %v1457 = vsub.f32 %v1065, %v1202
    %v1458 = vsub.f32 %v1068, %v1207
    %v1459 = vsub.f32 %v1073, %v1212
    %v1460 = vsub.f32 %v1076, %v1217
    %v1461 = vsub.f32 %v1081, %v1222
    %v1462 = vsub.f32 %v1084, %v1227
    %v1463 = vsub.f32 %v1089, %v1232
    %v1464 = vsub.f32 %v1092, %v1237
    %v1465 = vadd.f32 %v1433, 1e-05
    %v1466 = vadd.f32 %v1434, 1e-05
    %v1467 = vadd.f32 %v1435, 1e-05
    %v1468 = vadd.f32 %v1436, 1e-05
    %v1469 = vadd.f32 %v1437, 1e-05
    %v1470 = vadd.f32 %v1438, 1e-05
    %v1471 = vadd.f32 %v1439, 1e-05
    %v1472 = vadd.f32 %v1440, 1e-05
    %v1473 = vadd.f32 %v1441, 1e-05
    %v1474 = vadd.f32 %v1442, 1e-05
    %v1475 = vadd.f32 %v1443, 1e-05
    %v1476 = vadd.f32 %v1444, 1e-05
    %v1477 = vadd.f32 %v1445, 1e-05
    %v1478 = vadd.f32 %v1446, 1e-05
    %v1479 = vadd.f32 %v1447, 1e-05
    %v1480 = vadd.f32 %v1448, 1e-05
    %v1481 = vrsqrt.pop %v1465
    %v1482 = vrsqrt.pop %v1466
    %v1483 = vrsqrt.pop %v1467
    %v1484 = vrsqrt.pop %v1468
    %v1485 = vrsqrt.pop %v1469
    %v1486 = vrsqrt.pop %v1470
    %v1487 = vrsqrt.pop %v1471
    %v1488 = vrsqrt.pop %v1472
    %v1489 = vrsqrt.pop %v1473
    %v1490 = vrsqrt.pop %v1474
    %v1491 = vrsqrt.pop %v1475
    %v1492 = vrsqrt.pop %v1476
    %v1493 = vrsqrt.pop %v1477
    %v1494 = vrsqrt.pop %v1478
    %v1495 = vrsqrt.pop %v1479
    %v1496 = vrsqrt.pop %v1480
    %v1497 = vmul.f32 %v1449, %v1481
    %v1498 = vmul.f32 %v1450, %v1482
    %v1499 = vmul.f32 %v1451, %v1483
    %v1500 = vmul.f32 %v1452, %v1484
    %v1501 = vmul.f32 %v1453, %v1485
    %v1502 = vmul.f32 %v1454, %v1486
    %v1503 = vmul.f32 %v1455, %v1487
    %v1504 = vmul.f32 %v1456, %v1488
    %v1505 = vmul.f32 %v1457, %v1489
    %v1506 = vmul.f32 %v1458, %v1490
    %v1507 = vmul.f32 %v1459, %v1491
    %v1508 = vmul.f32 %v1460, %v1492
    %v1509 = vmul.f32 %v1461, %v1493
    %v1510 = vmul.f32 %v1462, %v1494
    %v1511 = vmul.f32 %v1463, %v1495
    %v1512 = vmul.f32 %v1464, %v1496
    %v1513 = vld [vmem:[%s5] sm:$0x1]
    %v1515 = vlaneseq
    %v1516 = vshrl.u32 %v1515, 7
    %v1517 = vsub.s32 0, %v1516
    %v1518 = vrot.slane %v1513, %v1517
    %v1520 = vmul.f32 %v1497, %v1518
    %v1521 = vmul.f32 %v1498, %v1518
    %v1522 = vmul.f32 %v1499, %v1518
    %v1523 = vmul.f32 %v1500, %v1518
    %v1524 = vmul.f32 %v1501, %v1518
    %v1525 = vmul.f32 %v1502, %v1518
    %v1526 = vmul.f32 %v1503, %v1518
    %v1527 = vmul.f32 %v1504, %v1518
    %v1528 = vmul.f32 %v1505, %v1518
    %v1529 = vmul.f32 %v1506, %v1518
    %v1530 = vmul.f32 %v1507, %v1518
    %v1531 = vmul.f32 %v1508, %v1518
    %v1532 = vmul.f32 %v1509, %v1518
    %v1533 = vmul.f32 %v1510, %v1518
    %v1534 = vmul.f32 %v1511, %v1518
    %v1535 = vmul.f32 %v1512, %v1518
    %v1536 = vld [vmem:[%s6] sm:$0x1]
    %v1538 = vlaneseq
    %v1539 = vshrl.u32 %v1538, 7
    %v1540 = vsub.s32 0, %v1539
    %v1541 = vrot.slane %v1536, %v1540
    %v1543 = vadd.f32 %v1520, %v1541
    %v1544 = vadd.f32 %v1521, %v1541
    %v1545 = vadd.f32 %v1522, %v1541
    %v1546 = vadd.f32 %v1523, %v1541
    %v1547 = vadd.f32 %v1524, %v1541
    %v1548 = vadd.f32 %v1525, %v1541
    %v1549 = vadd.f32 %v1526, %v1541
    %v1550 = vadd.f32 %v1527, %v1541
    %v1551 = vadd.f32 %v1528, %v1541
    %v1552 = vadd.f32 %v1529, %v1541
    %v1553 = vadd.f32 %v1530, %v1541
    %v1554 = vadd.f32 %v1531, %v1541
    %v1555 = vadd.f32 %v1532, %v1541
    %v1556 = vadd.f32 %v1533, %v1541
    %v1557 = vadd.f32 %v1534, %v1541
    %v1558 = vadd.f32 %v1535, %v1541
    %1559 = vst [vmem:[#allocation5] sm:$0xff] %v1543
    %1560 = vst [vmem:[#allocation5 + $0x8] sm:$0xff] %v1544
    %1561 = vst [vmem:[#allocation5 + $0x10] sm:$0xff] %v1545
    %1562 = vst [vmem:[#allocation5 + $0x18] sm:$0xff] %v1546
    %1563 = vst [vmem:[#allocation5 + $0x20] sm:$0xff] %v1547
    %1564 = vst [vmem:[#allocation5 + $0x28] sm:$0xff] %v1548
    %1565 = vst [vmem:[#allocation5 + $0x30] sm:$0xff] %v1549
    %1566 = vst [vmem:[#allocation5 + $0x38] sm:$0xff] %v1550
    %1567 = vst [vmem:[#allocation5 + $0x40] sm:$0xff] %v1551
    %1568 = vst [vmem:[#allocation5 + $0x48] sm:$0xff] %v1552
    %1569 = vst [vmem:[#allocation5 + $0x50] sm:$0xff] %v1553
    %1570 = vst [vmem:[#allocation5 + $0x58] sm:$0xff] %v1554
    %1571 = vst [vmem:[#allocation5 + $0x60] sm:$0xff] %v1555
    %1572 = vst [vmem:[#allocation5 + $0x68] sm:$0xff] %v1556
    %1573 = vst [vmem:[#allocation5 + $0x70] sm:$0xff] %v1557
    %1574 = vst [vmem:[#allocation5 + $0x78] sm:$0xff] %v1558
    %v1575 = vld [vmem:[#allocation3] sm:$0xff]
    %v1576 = vld [vmem:[#allocation5] sm:$0xff]
    %vm1577 = vcmp.gt.f32.partialorder %v1575, 1.0
    %v1578 = vsel %vm1577, 1, 0
    %v1579 = vcvt.s32.f32 %v1578
    %v1580 = vmul.f32 %v1575, 0.9
    %v1581 = vadd.f32 %v1580, %v1576
    %v1582 = vsub.f32 %v1581, %v1579
    %vm1583 = vcmp.gt.f32.partialorder %v1582, 1.0
    %v1584 = vsel %vm1583, 1, 0
    %v1585 = vcvt.s32.f32 %v1584
    %1586 = vst [vmem:[#allocation9] sm:$0xff] %v1585
    %1587 = vst [vmem:[#allocation10] sm:$0xff] %v1582
    %s1588 = scalar_lea.vmem [#allocation5], 8
    %v1589 = vld [vmem:[%s1588] sm:$0xff]
    %v1590 = vmul.f32 %v1582, 0.9
    %v1591 = vadd.f32 %v1590, %v1589
    %v1592 = vsub.f32 %v1591, %v1585
    %vm1593 = vcmp.gt.f32.partialorder %v1592, 1.0
    %v1594 = vsel %vm1593, 1, 0
    %v1595 = vcvt.s32.f32 %v1594
    %s1596 = scalar_lea.vmem [#allocation9], 8
    %1597 = vst [vmem:[%s1596] sm:$0xff] %v1595
    %s1598 = scalar_lea.vmem [#allocation10], 8
    %1599 = vst [vmem:[%s1598] sm:$0xff] %v1592
    %s1600 = scalar_lea.vmem [#allocation5], 16
    %v1601 = vld [vmem:[%s1600] sm:$0xff]
    %v1602 = vmul.f32 %v1592, 0.9
    %v1603 = vadd.f32 %v1602, %v1601
    %v1604 = vsub.f32 %v1603, %v1595
    %vm1605 = vcmp.gt.f32.partialorder %v1604, 1.0
    %v1606 = vsel %vm1605, 1, 0
    %v1607 = vcvt.s32.f32 %v1606
    %s1608 = scalar_lea.vmem [#allocation9], 16
    %1609 = vst [vmem:[%s1608] sm:$0xff] %v1607
    %s1610 = scalar_lea.vmem [#allocation10], 16
    %1611 = vst [vmem:[%s1610] sm:$0xff] %v1604
    %s1612 = scalar_lea.vmem [#allocation5], 24
    %v1613 = vld [vmem:[%s1612] sm:$0xff]
    %v1614 = vmul.f32 %v1604, 0.9
    %v1615 = vadd.f32 %v1614, %v1613
    %v1616 = vsub.f32 %v1615, %v1607
    %vm1617 = vcmp.gt.f32.partialorder %v1616, 1.0
    %v1618 = vsel %vm1617, 1, 0
    %v1619 = vcvt.s32.f32 %v1618
    %s1620 = scalar_lea.vmem [#allocation9], 24
    %1621 = vst [vmem:[%s1620] sm:$0xff] %v1619
    %s1622 = scalar_lea.vmem [#allocation10], 24
    %1623 = vst [vmem:[%s1622] sm:$0xff] %v1616
    %s1624 = scalar_lea.vmem [#allocation5], 32
    %v1625 = vld [vmem:[%s1624] sm:$0xff]
    %v1626 = vmul.f32 %v1616, 0.9
    %v1627 = vadd.f32 %v1626, %v1625
    %v1628 = vsub.f32 %v1627, %v1619
    %vm1629 = vcmp.gt.f32.partialorder %v1628, 1.0
    %v1630 = vsel %vm1629, 1, 0
    %v1631 = vcvt.s32.f32 %v1630
    %s1632 = scalar_lea.vmem [#allocation9], 32
    %1633 = vst [vmem:[%s1632] sm:$0xff] %v1631
    %s1634 = scalar_lea.vmem [#allocation10], 32
    %1635 = vst [vmem:[%s1634] sm:$0xff] %v1628
    %s1636 = scalar_lea.vmem [#allocation5], 40
    %v1637 = vld [vmem:[%s1636] sm:$0xff]
    %v1638 = vmul.f32 %v1628, 0.9
    %v1639 = vadd.f32 %v1638, %v1637
    %v1640 = vsub.f32 %v1639, %v1631
    %vm1641 = vcmp.gt.f32.partialorder %v1640, 1.0
    %v1642 = vsel %vm1641, 1, 0
    %v1643 = vcvt.s32.f32 %v1642
    %s1644 = scalar_lea.vmem [#allocation9], 40
    %1645 = vst [vmem:[%s1644] sm:$0xff] %v1643
    %s1646 = scalar_lea.vmem [#allocation10], 40
    %1647 = vst [vmem:[%s1646] sm:$0xff] %v1640
    %s1648 = scalar_lea.vmem [#allocation5], 48
    %v1649 = vld [vmem:[%s1648] sm:$0xff]
    %v1650 = vmul.f32 %v1640, 0.9
    %v1651 = vadd.f32 %v1650, %v1649
    %v1652 = vsub.f32 %v1651, %v1643
    %vm1653 = vcmp.gt.f32.partialorder %v1652, 1.0
    %v1654 = vsel %vm1653, 1, 0
    %v1655 = vcvt.s32.f32 %v1654
    %s1656 = scalar_lea.vmem [#allocation9], 48
    %1657 = vst [vmem:[%s1656] sm:$0xff] %v1655
    %s1658 = scalar_lea.vmem [#allocation10], 48
    %1659 = vst [vmem:[%s1658] sm:$0xff] %v1652
    %s1660 = scalar_lea.vmem [#allocation5], 56
    %v1661 = vld [vmem:[%s1660] sm:$0xff]
    %v1662 = vmul.f32 %v1652, 0.9
    %v1663 = vadd.f32 %v1662, %v1661
    %v1664 = vsub.f32 %v1663, %v1655
    %vm1665 = vcmp.gt.f32.partialorder %v1664, 1.0
    %v1666 = vsel %vm1665, 1, 0
    %v1667 = vcvt.s32.f32 %v1666
    %s1668 = scalar_lea.vmem [#allocation9], 56
    %1669 = vst [vmem:[%s1668] sm:$0xff] %v1667
    %s1670 = scalar_lea.vmem [#allocation10], 56
    %1671 = vst [vmem:[%s1670] sm:$0xff] %v1664
    %s1672 = scalar_lea.vmem [#allocation5], 64
    %v1673 = vld [vmem:[%s1672] sm:$0xff]
    %v1674 = vmul.f32 %v1664, 0.9
    %v1675 = vadd.f32 %v1674, %v1673
    %v1676 = vsub.f32 %v1675, %v1667
    %vm1677 = vcmp.gt.f32.partialorder %v1676, 1.0
    %v1678 = vsel %vm1677, 1, 0
    %v1679 = vcvt.s32.f32 %v1678
    %s1680 = scalar_lea.vmem [#allocation9], 64
    %1681 = vst [vmem:[%s1680] sm:$0xff] %v1679
    %s1682 = scalar_lea.vmem [#allocation10], 64
    %1683 = vst [vmem:[%s1682] sm:$0xff] %v1676
    %s1684 = scalar_lea.vmem [#allocation5], 72
    %v1685 = vld [vmem:[%s1684] sm:$0xff]
    %v1686 = vmul.f32 %v1676, 0.9
    %v1687 = vadd.f32 %v1686, %v1685
    %v1688 = vsub.f32 %v1687, %v1679
    %vm1689 = vcmp.gt.f32.partialorder %v1688, 1.0
    %v1690 = vsel %vm1689, 1, 0
    %v1691 = vcvt.s32.f32 %v1690
    %s1692 = scalar_lea.vmem [#allocation9], 72
    %1693 = vst [vmem:[%s1692] sm:$0xff] %v1691
    %s1694 = scalar_lea.vmem [#allocation10], 72
    %1695 = vst [vmem:[%s1694] sm:$0xff] %v1688
    %s1696 = scalar_lea.vmem [#allocation5], 80
    %v1697 = vld [vmem:[%s1696] sm:$0xff]
    %v1698 = vmul.f32 %v1688, 0.9
    %v1699 = vadd.f32 %v1698, %v1697
    %v1700 = vsub.f32 %v1699, %v1691
    %vm1701 = vcmp.gt.f32.partialorder %v1700, 1.0
    %v1702 = vsel %vm1701, 1, 0
    %v1703 = vcvt.s32.f32 %v1702
    %s1704 = scalar_lea.vmem [#allocation9], 80
    %1705 = vst [vmem:[%s1704] sm:$0xff] %v1703
    %s1706 = scalar_lea.vmem [#allocation10], 80
    %1707 = vst [vmem:[%s1706] sm:$0xff] %v1700
    %s1708 = scalar_lea.vmem [#allocation5], 88
    %v1709 = vld [vmem:[%s1708] sm:$0xff]
    %v1710 = vmul.f32 %v1700, 0.9
    %v1711 = vadd.f32 %v1710, %v1709
    %v1712 = vsub.f32 %v1711, %v1703
    %vm1713 = vcmp.gt.f32.partialorder %v1712, 1.0
    %v1714 = vsel %vm1713, 1, 0
    %v1715 = vcvt.s32.f32 %v1714
    %s1716 = scalar_lea.vmem [#allocation9], 88
    %1717 = vst [vmem:[%s1716] sm:$0xff] %v1715
    %s1718 = scalar_lea.vmem [#allocation10], 88
    %1719 = vst [vmem:[%s1718] sm:$0xff] %v1712
    %s1720 = scalar_lea.vmem [#allocation5], 96
    %v1721 = vld [vmem:[%s1720] sm:$0xff]
    %v1722 = vmul.f32 %v1712, 0.9
    %v1723 = vadd.f32 %v1722, %v1721
    %v1724 = vsub.f32 %v1723, %v1715
    %vm1725 = vcmp.gt.f32.partialorder %v1724, 1.0
    %v1726 = vsel %vm1725, 1, 0
    %v1727 = vcvt.s32.f32 %v1726
    %s1728 = scalar_lea.vmem [#allocation9], 96
    %1729 = vst [vmem:[%s1728] sm:$0xff] %v1727
    %s1730 = scalar_lea.vmem [#allocation10], 96
    %1731 = vst [vmem:[%s1730] sm:$0xff] %v1724
    %s1732 = scalar_lea.vmem [#allocation5], 104
    %v1733 = vld [vmem:[%s1732] sm:$0xff]
    %v1734 = vmul.f32 %v1724, 0.9
    %v1735 = vadd.f32 %v1734, %v1733
    %v1736 = vsub.f32 %v1735, %v1727
    %vm1737 = vcmp.gt.f32.partialorder %v1736, 1.0
    %v1738 = vsel %vm1737, 1, 0
    %v1739 = vcvt.s32.f32 %v1738
    %s1740 = scalar_lea.vmem [#allocation9], 104
    %1741 = vst [vmem:[%s1740] sm:$0xff] %v1739
    %s1742 = scalar_lea.vmem [#allocation10], 104
    %1743 = vst [vmem:[%s1742] sm:$0xff] %v1736
    %s1744 = scalar_lea.vmem [#allocation5], 112
    %v1745 = vld [vmem:[%s1744] sm:$0xff]
    %v1746 = vmul.f32 %v1736, 0.9
    %v1747 = vadd.f32 %v1746, %v1745
    %v1748 = vsub.f32 %v1747, %v1739
    %vm1749 = vcmp.gt.f32.partialorder %v1748, 1.0
    %v1750 = vsel %vm1749, 1, 0
    %v1751 = vcvt.s32.f32 %v1750
    %s1752 = scalar_lea.vmem [#allocation9], 112
    %1753 = vst [vmem:[%s1752] sm:$0xff] %v1751
    %s1754 = scalar_lea.vmem [#allocation10], 112
    %1755 = vst [vmem:[%s1754] sm:$0xff] %v1748
    %s1756 = scalar_lea.vmem [#allocation5], 120
    %v1757 = vld [vmem:[%s1756] sm:$0xff]
    %v1758 = vmul.f32 %v1748, 0.9
    %v1759 = vadd.f32 %v1758, %v1757
    %v1760 = vsub.f32 %v1759, %v1751
    %vm1761 = vcmp.gt.f32.partialorder %v1760, 1.0
    %v1762 = vsel %vm1761, 1, 0
    %v1763 = vcvt.s32.f32 %v1762
    %s1764 = scalar_lea.vmem [#allocation9], 120
    %1765 = vst [vmem:[%s1764] sm:$0xff] %v1763
    %s1766 = scalar_lea.vmem [#allocation10], 120
    %1767 = vst [vmem:[%s1766] sm:$0xff] %v1760
    %1768 = vst [vmem:[#allocation3] sm:$0xff] %v1760
    // Predicated region
    $region42: #{tpu_custom_call.1} parent=1 // pred_check
      _
    $region43: #{tpu_custom_call.1} parent=1 // pred_check_branch
      %1770 = sbr.rel (0) target = $region45
    $region44: #{tpu_custom_call.1} parent=1 // pred_region
      %s1772 = ssub.s32 2048, 2048
      %1773 = vsyncadd [#allocation8], %s1772
      %s1774 = sshll.u32 [#allocation9], 4
      %s1775 = int_to_ptr.vmem [resolvable:$true] %s1774
      %1780 = dma.vmem_to_hbm [thread:$0]  %s1775, 2048, %s8, [#allocation8], 128, 128, 8
    $region45: #{tpu_custom_call.1} parent=1 // pred_fallthru
      _
    // Predicated region
    $region46: #{tpu_custom_call.1} parent=1 // pred_check
      _
    $region47: #{tpu_custom_call.1} parent=1 // pred_check_branch
      %1782 = sbr.rel (0) target = $region49
    $region48: #{tpu_custom_call.1} parent=1 // pred_region
      %s1784 = ssub.s32 2048, 2048
      %1785 = vsyncadd [#allocation11], %s1784
      %s1786 = sshll.u32 [#allocation10], 4
      %s1787 = int_to_ptr.vmem [resolvable:$true] %s1786
      %1792 = dma.vmem_to_hbm [thread:$0]  %s1787, 2048, %s9, [#allocation11], 128, 128, 8
    $region49: #{tpu_custom_call.1} parent=1 // pred_fallthru
      _
    // Predicated region
    $region50: #{tpu_custom_call.1} parent=1 // pred_check
      _
    $region51: #{tpu_custom_call.1} parent=1 // pred_check_branch
      %1794 = sbr.rel (0) target = $region53
    $region52: #{tpu_custom_call.1} parent=1 // pred_region
      %1795 = dma.done [#allocation8], 2048
    $region53: #{tpu_custom_call.1} parent=1 // pred_fallthru
      _
    // Predicated region
    $region54: #{tpu_custom_call.1} parent=1 // pred_check
      _
    $region55: #{tpu_custom_call.1} parent=1 // pred_check_branch
      %1797 = sbr.rel (0) target = $region57
    $region56: #{tpu_custom_call.1} parent=1 // pred_region
      %1798 = dma.done [#allocation11], 2048
    $region57: #{tpu_custom_call.1} parent=1 // pred_fallthru
      _
    %1799 = vsyncpa [#allocation7], 1
    %1800 = vsyncpa [#allocation8], 1
    %1801 = vsyncpa [#allocation11], 1

</llo_original>
